<compile_context>
chip_gen: v7x
topology: tpu7x:2x2x1
jax: 0.10.0
libtpu: 0.0.40
codegen_flags: <defaults>
</compile_context>

<pallas_src>
import jax
import jax.numpy as jnp
from jax import lax
from jax.experimental import pallas as pl
from jax.experimental.pallas import tpu as pltpu


def transe_gather_kernel(h_idx, r_idx, t_idx, n_idx,      # SMEM prefetch refs, (B_pad,)
                         ent_hbm, rel_hbm,                 # HBM refs (pl.ANY)
                         score_ref, neg_ref,               # (tb, D) VMEM output tiles
                         hbuf, rbuf, tbuf, nbuf,           # (2, tb, D) VMEM scratch
                         sems):                            # DMA sems, (4, 2)
    tb = score_ref.shape[0]
    step = pl.program_id(0)
    nsteps = pl.num_programs(0)
    slot = lax.rem(step, 2)

    def start_fetch(step_idx, slot_idx):
        base = step_idx * tb

        def body(j, carry):
            row = base + j
            pltpu.make_async_copy(ent_hbm.at[pl.ds(h_idx[row], 1), :],
                                  hbuf.at[slot_idx, pl.ds(j, 1), :],
                                  sems.at[0, slot_idx]).start()
            pltpu.make_async_copy(rel_hbm.at[pl.ds(r_idx[row], 1), :],
                                  rbuf.at[slot_idx, pl.ds(j, 1), :],
                                  sems.at[1, slot_idx]).start()
            pltpu.make_async_copy(ent_hbm.at[pl.ds(t_idx[row], 1), :],
                                  tbuf.at[slot_idx, pl.ds(j, 1), :],
                                  sems.at[2, slot_idx]).start()
            pltpu.make_async_copy(ent_hbm.at[pl.ds(n_idx[row], 1), :],
                                  nbuf.at[slot_idx, pl.ds(j, 1), :],
                                  sems.at[3, slot_idx]).start()
            return carry

        lax.fori_loop(0, tb, body, 0, unroll=True)

    def wait_fetch(slot_idx):
        # Wait descriptors only need the right semaphore + matching transfer
        # size; every row copy is an identical (1, D) transfer, so reuse row 0.
        def body(j, carry):
            pltpu.make_async_copy(ent_hbm.at[pl.ds(0, 1), :],
                                  hbuf.at[slot_idx, pl.ds(0, 1), :],
                                  sems.at[0, slot_idx]).wait()
            pltpu.make_async_copy(rel_hbm.at[pl.ds(0, 1), :],
                                  rbuf.at[slot_idx, pl.ds(0, 1), :],
                                  sems.at[1, slot_idx]).wait()
            pltpu.make_async_copy(ent_hbm.at[pl.ds(0, 1), :],
                                  tbuf.at[slot_idx, pl.ds(0, 1), :],
                                  sems.at[2, slot_idx]).wait()
            pltpu.make_async_copy(ent_hbm.at[pl.ds(0, 1), :],
                                  nbuf.at[slot_idx, pl.ds(0, 1), :],
                                  sems.at[3, slot_idx]).wait()
            return carry

        lax.fori_loop(0, tb, body, 0, unroll=True)

    # Prime the pipeline: the first step fetches its own rows into slot 0.
    @pl.when(step == 0)
    def _():
        start_fetch(0, 0)

    # Prefetch next step's rows into the other slot before blocking on ours.
    @pl.when(step + 1 < nsteps)
    def _():
        start_fetch(step + 1, 1 - slot)

    wait_fetch(slot)

    h_plus_r = hbuf[slot] + rbuf[slot]
    score_ref[...] = (h_plus_r - tbuf[slot]).astype(score_ref.dtype)
    neg_ref[...] = (h_plus_r - nbuf[slot]).astype(neg_ref.dtype)


def transe_forward(h_idx, r_idx, t_idx, neg_idx, ent_emb, rel_emb, *, tb=8):
    """score = E[h] + R[r] - E[t]; neg_score = E[h] + R[r] - E[neg_t]."""
    B = h_idx.shape[0]
    E, D = ent_emb.shape
    R, Dr = rel_emb.shape
    assert D == Dr
    assert tb % 8 == 0, tb

    # Pad the batch up to a multiple of tb; pad rows gather index 0 and are
    # sliced off afterwards.
    B_pad = ((B + tb - 1) // tb) * tb

    def prep(x):
        x = x.astype(jnp.int32).reshape(-1)
        if B_pad != B:
            x = jnp.pad(x, (0, B_pad - B))
        return x

    grid = (B_pad // tb,)
    out_spec = lambda: pl.BlockSpec((tb, D), lambda i, h, r, t, n: (i, 0))

    score, neg = pl.pallas_call(
        transe_gather_kernel,
        out_shape=(jax.ShapeDtypeStruct((B_pad, D), ent_emb.dtype),
                   jax.ShapeDtypeStruct((B_pad, D), ent_emb.dtype)),
        grid_spec=pltpu.PrefetchScalarGridSpec(
            num_scalar_prefetch=4,                      # h, r, t, neg_t -> SMEM
            grid=grid,
            in_specs=[pl.BlockSpec(memory_space=pl.ANY),   # entity table in HBM
                      pl.BlockSpec(memory_space=pl.ANY)],  # relation table in HBM
            out_specs=(out_spec(), out_spec()),
            scratch_shapes=[pltpu.VMEM((2, tb, D), ent_emb.dtype),  # E[h]
                            pltpu.VMEM((2, tb, D), rel_emb.dtype),  # R[r]
                            pltpu.VMEM((2, tb, D), ent_emb.dtype),  # E[t]
                            pltpu.VMEM((2, tb, D), ent_emb.dtype),  # E[neg_t]
                            pltpu.SemaphoreType.DMA((4, 2))]),
        compiler_params=pltpu.CompilerParams(
            # Cross-step double-buffer priming makes this axis stateful.
            dimension_semantics=("arbitrary",)),
    )(prep(h_idx), prep(r_idx), prep(t_idx), prep(neg_idx), ent_emb, rel_emb)

    # Match PyTorch output shape: (B, 1, emb_dim).
    return score[:B].reshape(B, 1, D), neg[:B].reshape(B, 1, D)


if __name__ == "__main__":
    # Small, module-consistent shapes.
    B, E, R, D = 32, 64, 16, 128   # batch, num entities, num relations, emb_dim

    key = jax.random.PRNGKey(0)
    k1, k2, k3, k4, k5, k6 = jax.random.split(key, 6)

    # Deterministic parameter init (xavier_normal_ on Embedding weights).
    ent_emb = jax.random.normal(k1, (E, D), jnp.float32) * (2.0 / (E + D)) ** 0.5
    rel_emb = jax.random.normal(k2, (R, D), jnp.float32) * (2.0 / (R + D)) ** 0.5
    # F.normalize(relation_embedding, 2, -1) as in __init__.
    rel_emb = rel_emb / jnp.linalg.norm(rel_emb, axis=-1, keepdims=True)

    # Indices already mapped through entity_word2idx / relation_word2idx
    # (that dict lookup is pure Python glue in the original module).
    h_idx = jax.random.randint(k3, (B,), 0, E, jnp.int32)
    r_idx = jax.random.randint(k4, (B,), 0, R, jnp.int32)
    t_idx = jax.random.randint(k5, (B,), 0, E, jnp.int32)
    # random.randint negative-tail sampling -> deterministic jax.random here.
    neg_idx = jax.random.randint(k6, (B,), 0, E, jnp.int32)

    score, neg_score = transe_forward(h_idx, r_idx, t_idx, neg_idx,
                                      ent_emb, rel_emb)
    jax.block_until_ready((score, neg_score))

    # Pure-JAX reference check of the forward semantics.
    ref_score = ent_emb[h_idx] + rel_emb[r_idx] - ent_emb[t_idx]
    ref_neg = ent_emb[h_idx] + rel_emb[r_idx] - ent_emb[neg_idx]
    assert score.shape == (B, 1, D) and neg_score.shape == (B, 1, D)
    assert jnp.allclose(score[:, 0, :], ref_score, atol=1e-6)
    assert jnp.allclose(neg_score[:, 0, :], ref_neg, atol=1e-6)

    print("KERNEL_OK")
</pallas_src>

<mosaic_0001>
module attributes {stable_mosaic.version = 11 : i64} {
  func.func @transe_gather_kernel(%arg0: i32, %arg1: memref<32xi32, #tpu.memory_space<smem>>, %arg2: memref<32xi32, #tpu.memory_space<smem>>, %arg3: memref<32xi32, #tpu.memory_space<smem>>, %arg4: memref<32xi32, #tpu.memory_space<smem>>, %arg5: memref<64x128xf32, #tpu.memory_space<any>>, %arg6: memref<16x128xf32, #tpu.memory_space<any>>, %arg7: memref<8x128xf32, #tpu.memory_space<vmem>>, %arg8: memref<8x128xf32, #tpu.memory_space<vmem>>, %arg9: memref<2x8x128xf32, #tpu.memory_space<vmem>>, %arg10: memref<2x8x128xf32, #tpu.memory_space<vmem>>, %arg11: memref<2x8x128xf32, #tpu.memory_space<vmem>>, %arg12: memref<2x8x128xf32, #tpu.memory_space<vmem>>, %arg13: memref<4x2x!tpu.dma_semaphore, #tpu.memory_space<semaphore_mem>>) attributes {dimension_semantics = [#tpu.dimension_semantics<arbitrary>], iteration_bounds = array<i64: 4>, scalar_prefetch = 4 : i64, scratch_operands = 5 : i64, tpu.core_type = #tpu.core_type<tc>, window_params = [{}, {}, {transform_indices = @transform_2, window_bounds = array<i64: 8, 128>}, {transform_indices = @transform_3, window_bounds = array<i64: 8, 128>}]} {
    %c2_i32 = arith.constant 2 : i32
    %0 = arith.remsi %arg0, %c2_i32 : i32
    %c0_i32 = arith.constant 0 : i32
    %1 = arith.cmpi eq, %arg0, %c0_i32 : i32
    %2 = arith.extui %1 : i1 to i32
    %c0_i32_0 = arith.constant 0 : i32
    %3 = arith.cmpi ne, %2, %c0_i32_0 : i32
    scf.if %3 {
      %c0_i32_177 = arith.constant 0 : i32
      %c0_i32_178 = arith.constant 0 : i32
      %185 = arith.addi %c0_i32_178, %c0_i32_177 : i32
      %186 = arith.index_cast %185 : i32 to index
      %187 = memref.load %arg1[%186] : memref<32xi32, #tpu.memory_space<smem>>
      %c0_i32_179 = arith.constant 0 : i32
      %c0_i32_180 = arith.constant 0 : i32
      %c0_i32_181 = arith.constant 0 : i32
      %c0_i32_182 = arith.constant 0 : i32
      %188 = tpu.memref_slice %arg5[%187, %c0_i32_182] : memref<64x128xf32, #tpu.memory_space<any>> -> memref<1x128xf32, #tpu.memory_space<any>>
      %c0_i32_183 = arith.constant 0 : i32
      %189 = tpu.memref_slice %arg9[%c0_i32_179, %c0_i32_177, %c0_i32_183] : memref<2x8x128xf32, #tpu.memory_space<vmem>> -> memref<1x1x128xf32, #tpu.memory_space<vmem>>
      %190 = tpu.memref_squeeze %189 : memref<1x1x128xf32, #tpu.memory_space<vmem>> -> memref<1x128xf32, #tpu.memory_space<vmem>>
      %191 = tpu.memref_slice %arg13[%c0_i32_180, %c0_i32_181] : memref<4x2x!tpu.dma_semaphore, #tpu.memory_space<semaphore_mem>> -> memref<1x1x!tpu.dma_semaphore, #tpu.memory_space<semaphore_mem>>
      %192 = tpu.memref_squeeze %191 : memref<1x1x!tpu.dma_semaphore, #tpu.memory_space<semaphore_mem>> -> memref<!tpu.dma_semaphore, #tpu.memory_space<semaphore_mem>>
      tpu.enqueue_dma source(%188 : memref<1x128xf32, #tpu.memory_space<any>>) target(%190 : memref<1x128xf32, #tpu.memory_space<vmem>>) target_semaphore(%192 : memref<!tpu.dma_semaphore, #tpu.memory_space<semaphore_mem>>)
      %193 = arith.index_cast %185 : i32 to index
      %194 = memref.load %arg2[%193] : memref<32xi32, #tpu.memory_space<smem>>
      %c0_i32_184 = arith.constant 0 : i32
      %c1_i32_185 = arith.constant 1 : i32
      %c0_i32_186 = arith.constant 0 : i32
      %c0_i32_187 = arith.constant 0 : i32
      %195 = tpu.memref_slice %arg6[%194, %c0_i32_187] : memref<16x128xf32, #tpu.memory_space<any>> -> memref<1x128xf32, #tpu.memory_space<any>>
      %c0_i32_188 = arith.constant 0 : i32
      %196 = tpu.memref_slice %arg10[%c0_i32_184, %c0_i32_177, %c0_i32_188] : memref<2x8x128xf32, #tpu.memory_space<vmem>> -> memref<1x1x128xf32, #tpu.memory_space<vmem>>
      %197 = tpu.memref_squeeze %196 : memref<1x1x128xf32, #tpu.memory_space<vmem>> -> memref<1x128xf32, #tpu.memory_space<vmem>>
      %198 = tpu.memref_slice %arg13[%c1_i32_185, %c0_i32_186] : memref<4x2x!tpu.dma_semaphore, #tpu.memory_space<semaphore_mem>> -> memref<1x1x!tpu.dma_semaphore, #tpu.memory_space<semaphore_mem>>
      %199 = tpu.memref_squeeze %198 : memref<1x1x!tpu.dma_semaphore, #tpu.memory_space<semaphore_mem>> -> memref<!tpu.dma_semaphore, #tpu.memory_space<semaphore_mem>>
      tpu.enqueue_dma source(%195 : memref<1x128xf32, #tpu.memory_space<any>>) target(%197 : memref<1x128xf32, #tpu.memory_space<vmem>>) target_semaphore(%199 : memref<!tpu.dma_semaphore, #tpu.memory_space<semaphore_mem>>)
      %200 = arith.index_cast %185 : i32 to index
      %201 = memref.load %arg3[%200] : memref<32xi32, #tpu.memory_space<smem>>
      %c0_i32_189 = arith.constant 0 : i32
      %c2_i32_190 = arith.constant 2 : i32
      %c0_i32_191 = arith.constant 0 : i32
      %c0_i32_192 = arith.constant 0 : i32
      %202 = tpu.memref_slice %arg5[%201, %c0_i32_192] : memref<64x128xf32, #tpu.memory_space<any>> -> memref<1x128xf32, #tpu.memory_space<any>>
      %c0_i32_193 = arith.constant 0 : i32
      %203 = tpu.memref_slice %arg11[%c0_i32_189, %c0_i32_177, %c0_i32_193] : memref<2x8x128xf32, #tpu.memory_space<vmem>> -> memref<1x1x128xf32, #tpu.memory_space<vmem>>
      %204 = tpu.memref_squeeze %203 : memref<1x1x128xf32, #tpu.memory_space<vmem>> -> memref<1x128xf32, #tpu.memory_space<vmem>>
      %205 = tpu.memref_slice %arg13[%c2_i32_190, %c0_i32_191] : memref<4x2x!tpu.dma_semaphore, #tpu.memory_space<semaphore_mem>> -> memref<1x1x!tpu.dma_semaphore, #tpu.memory_space<semaphore_mem>>
      %206 = tpu.memref_squeeze %205 : memref<1x1x!tpu.dma_semaphore, #tpu.memory_space<semaphore_mem>> -> memref<!tpu.dma_semaphore, #tpu.memory_space<semaphore_mem>>
      tpu.enqueue_dma source(%202 : memref<1x128xf32, #tpu.memory_space<any>>) target(%204 : memref<1x128xf32, #tpu.memory_space<vmem>>) target_semaphore(%206 : memref<!tpu.dma_semaphore, #tpu.memory_space<semaphore_mem>>)
      %207 = arith.index_cast %185 : i32 to index
      %208 = memref.load %arg4[%207] : memref<32xi32, #tpu.memory_space<smem>>
      %c0_i32_194 = arith.constant 0 : i32
      %c3_i32_195 = arith.constant 3 : i32
      %c0_i32_196 = arith.constant 0 : i32
      %c0_i32_197 = arith.constant 0 : i32
      %209 = tpu.memref_slice %arg5[%208, %c0_i32_197] : memref<64x128xf32, #tpu.memory_space<any>> -> memref<1x128xf32, #tpu.memory_space<any>>
      %c0_i32_198 = arith.constant 0 : i32
      %210 = tpu.memref_slice %arg12[%c0_i32_194, %c0_i32_177, %c0_i32_198] : memref<2x8x128xf32, #tpu.memory_space<vmem>> -> memref<1x1x128xf32, #tpu.memory_space<vmem>>
      %211 = tpu.memref_squeeze %210 : memref<1x1x128xf32, #tpu.memory_space<vmem>> -> memref<1x128xf32, #tpu.memory_space<vmem>>
      %212 = tpu.memref_slice %arg13[%c3_i32_195, %c0_i32_196] : memref<4x2x!tpu.dma_semaphore, #tpu.memory_space<semaphore_mem>> -> memref<1x1x!tpu.dma_semaphore, #tpu.memory_space<semaphore_mem>>
      %213 = tpu.memref_squeeze %212 : memref<1x1x!tpu.dma_semaphore, #tpu.memory_space<semaphore_mem>> -> memref<!tpu.dma_semaphore, #tpu.memory_space<semaphore_mem>>
      tpu.enqueue_dma source(%209 : memref<1x128xf32, #tpu.memory_space<any>>) target(%211 : memref<1x128xf32, #tpu.memory_space<vmem>>) target_semaphore(%213 : memref<!tpu.dma_semaphore, #tpu.memory_space<semaphore_mem>>)
      %c1_i32_199 = arith.constant 1 : i32
      %c0_i32_200 = arith.constant 0 : i32
      %214 = arith.addi %c0_i32_200, %c1_i32_199 : i32
      %215 = arith.index_cast %214 : i32 to index
      %216 = memref.load %arg1[%215] : memref<32xi32, #tpu.memory_space<smem>>
      %c0_i32_201 = arith.constant 0 : i32
      %c0_i32_202 = arith.constant 0 : i32
      %c0_i32_203 = arith.constant 0 : i32
      %c0_i32_204 = arith.constant 0 : i32
      %217 = tpu.memref_slice %arg5[%216, %c0_i32_204] : memref<64x128xf32, #tpu.memory_space<any>> -> memref<1x128xf32, #tpu.memory_space<any>>
      %c0_i32_205 = arith.constant 0 : i32
      %218 = tpu.memref_slice %arg9[%c0_i32_201, %c1_i32_199, %c0_i32_205] : memref<2x8x128xf32, #tpu.memory_space<vmem>> -> memref<1x1x128xf32, #tpu.memory_space<vmem>>
      %219 = tpu.memref_squeeze %218 : memref<1x1x128xf32, #tpu.memory_space<vmem>> -> memref<1x128xf32, #tpu.memory_space<vmem>>
      %220 = tpu.memref_slice %arg13[%c0_i32_202, %c0_i32_203] : memref<4x2x!tpu.dma_semaphore, #tpu.memory_space<semaphore_mem>> -> memref<1x1x!tpu.dma_semaphore, #tpu.memory_space<semaphore_mem>>
      %221 = tpu.memref_squeeze %220 : memref<1x1x!tpu.dma_semaphore, #tpu.memory_space<semaphore_mem>> -> memref<!tpu.dma_semaphore, #tpu.memory_space<semaphore_mem>>
      tpu.enqueue_dma source(%217 : memref<1x128xf32, #tpu.memory_space<any>>) target(%219 : memref<1x128xf32, #tpu.memory_space<vmem>>) target_semaphore(%221 : memref<!tpu.dma_semaphore, #tpu.memory_space<semaphore_mem>>)
      %222 = arith.index_cast %214 : i32 to index
      %223 = memref.load %arg2[%222] : memref<32xi32, #tpu.memory_space<smem>>
      %c0_i32_206 = arith.constant 0 : i32
      %c1_i32_207 = arith.constant 1 : i32
      %c0_i32_208 = arith.constant 0 : i32
      %c0_i32_209 = arith.constant 0 : i32
      %224 = tpu.memref_slice %arg6[%223, %c0_i32_209] : memref<16x128xf32, #tpu.memory_space<any>> -> memref<1x128xf32, #tpu.memory_space<any>>
      %c0_i32_210 = arith.constant 0 : i32
      %225 = tpu.memref_slice %arg10[%c0_i32_206, %c1_i32_199, %c0_i32_210] : memref<2x8x128xf32, #tpu.memory_space<vmem>> -> memref<1x1x128xf32, #tpu.memory_space<vmem>>
      %226 = tpu.memref_squeeze %225 : memref<1x1x128xf32, #tpu.memory_space<vmem>> -> memref<1x128xf32, #tpu.memory_space<vmem>>
      %227 = tpu.memref_slice %arg13[%c1_i32_207, %c0_i32_208] : memref<4x2x!tpu.dma_semaphore, #tpu.memory_space<semaphore_mem>> -> memref<1x1x!tpu.dma_semaphore, #tpu.memory_space<semaphore_mem>>
      %228 = tpu.memref_squeeze %227 : memref<1x1x!tpu.dma_semaphore, #tpu.memory_space<semaphore_mem>> -> memref<!tpu.dma_semaphore, #tpu.memory_space<semaphore_mem>>
      tpu.enqueue_dma source(%224 : memref<1x128xf32, #tpu.memory_space<any>>) target(%226 : memref<1x128xf32, #tpu.memory_space<vmem>>) target_semaphore(%228 : memref<!tpu.dma_semaphore, #tpu.memory_space<semaphore_mem>>)
      %229 = arith.index_cast %214 : i32 to index
      %230 = memref.load %arg3[%229] : memref<32xi32, #tpu.memory_space<smem>>
      %c0_i32_211 = arith.constant 0 : i32
      %c2_i32_212 = arith.constant 2 : i32
      %c0_i32_213 = arith.constant 0 : i32
      %c0_i32_214 = arith.constant 0 : i32
      %231 = tpu.memref_slice %arg5[%230, %c0_i32_214] : memref<64x128xf32, #tpu.memory_space<any>> -> memref<1x128xf32, #tpu.memory_space<any>>
      %c0_i32_215 = arith.constant 0 : i32
      %232 = tpu.memref_slice %arg11[%c0_i32_211, %c1_i32_199, %c0_i32_215] : memref<2x8x128xf32, #tpu.memory_space<vmem>> -> memref<1x1x128xf32, #tpu.memory_space<vmem>>
      %233 = tpu.memref_squeeze %232 : memref<1x1x128xf32, #tpu.memory_space<vmem>> -> memref<1x128xf32, #tpu.memory_space<vmem>>
      %234 = tpu.memref_slice %arg13[%c2_i32_212, %c0_i32_213] : memref<4x2x!tpu.dma_semaphore, #tpu.memory_space<semaphore_mem>> -> memref<1x1x!tpu.dma_semaphore, #tpu.memory_space<semaphore_mem>>
      %235 = tpu.memref_squeeze %234 : memref<1x1x!tpu.dma_semaphore, #tpu.memory_space<semaphore_mem>> -> memref<!tpu.dma_semaphore, #tpu.memory_space<semaphore_mem>>
      tpu.enqueue_dma source(%231 : memref<1x128xf32, #tpu.memory_space<any>>) target(%233 : memref<1x128xf32, #tpu.memory_space<vmem>>) target_semaphore(%235 : memref<!tpu.dma_semaphore, #tpu.memory_space<semaphore_mem>>)
      %236 = arith.index_cast %214 : i32 to index
      %237 = memref.load %arg4[%236] : memref<32xi32, #tpu.memory_space<smem>>
      %c0_i32_216 = arith.constant 0 : i32
      %c3_i32_217 = arith.constant 3 : i32
      %c0_i32_218 = arith.constant 0 : i32
      %c0_i32_219 = arith.constant 0 : i32
      %238 = tpu.memref_slice %arg5[%237, %c0_i32_219] : memref<64x128xf32, #tpu.memory_space<any>> -> memref<1x128xf32, #tpu.memory_space<any>>
      %c0_i32_220 = arith.constant 0 : i32
      %239 = tpu.memref_slice %arg12[%c0_i32_216, %c1_i32_199, %c0_i32_220] : memref<2x8x128xf32, #tpu.memory_space<vmem>> -> memref<1x1x128xf32, #tpu.memory_space<vmem>>
      %240 = tpu.memref_squeeze %239 : memref<1x1x128xf32, #tpu.memory_space<vmem>> -> memref<1x128xf32, #tpu.memory_space<vmem>>
      %241 = tpu.memref_slice %arg13[%c3_i32_217, %c0_i32_218] : memref<4x2x!tpu.dma_semaphore, #tpu.memory_space<semaphore_mem>> -> memref<1x1x!tpu.dma_semaphore, #tpu.memory_space<semaphore_mem>>
      %242 = tpu.memref_squeeze %241 : memref<1x1x!tpu.dma_semaphore, #tpu.memory_space<semaphore_mem>> -> memref<!tpu.dma_semaphore, #tpu.memory_space<semaphore_mem>>
      tpu.enqueue_dma source(%238 : memref<1x128xf32, #tpu.memory_space<any>>) target(%240 : memref<1x128xf32, #tpu.memory_space<vmem>>) target_semaphore(%242 : memref<!tpu.dma_semaphore, #tpu.memory_space<semaphore_mem>>)
      %c2_i32_221 = arith.constant 2 : i32
      %c0_i32_222 = arith.constant 0 : i32
      %243 = arith.addi %c0_i32_222, %c2_i32_221 : i32
      %244 = arith.index_cast %243 : i32 to index
      %245 = memref.load %arg1[%244] : memref<32xi32, #tpu.memory_space<smem>>
      %c0_i32_223 = arith.constant 0 : i32
      %c0_i32_224 = arith.constant 0 : i32
      %c0_i32_225 = arith.constant 0 : i32
      %c0_i32_226 = arith.constant 0 : i32
      %246 = tpu.memref_slice %arg5[%245, %c0_i32_226] : memref<64x128xf32, #tpu.memory_space<any>> -> memref<1x128xf32, #tpu.memory_space<any>>
      %c0_i32_227 = arith.constant 0 : i32
      %247 = tpu.memref_slice %arg9[%c0_i32_223, %c2_i32_221, %c0_i32_227] : memref<2x8x128xf32, #tpu.memory_space<vmem>> -> memref<1x1x128xf32, #tpu.memory_space<vmem>>
      %248 = tpu.memref_squeeze %247 : memref<1x1x128xf32, #tpu.memory_space<vmem>> -> memref<1x128xf32, #tpu.memory_space<vmem>>
      %249 = tpu.memref_slice %arg13[%c0_i32_224, %c0_i32_225] : memref<4x2x!tpu.dma_semaphore, #tpu.memory_space<semaphore_mem>> -> memref<1x1x!tpu.dma_semaphore, #tpu.memory_space<semaphore_mem>>
      %250 = tpu.memref_squeeze %249 : memref<1x1x!tpu.dma_semaphore, #tpu.memory_space<semaphore_mem>> -> memref<!tpu.dma_semaphore, #tpu.memory_space<semaphore_mem>>
      tpu.enqueue_dma source(%246 : memref<1x128xf32, #tpu.memory_space<any>>) target(%248 : memref<1x128xf32, #tpu.memory_space<vmem>>) target_semaphore(%250 : memref<!tpu.dma_semaphore, #tpu.memory_space<semaphore_mem>>)
      %251 = arith.index_cast %243 : i32 to index
      %252 = memref.load %arg2[%251] : memref<32xi32, #tpu.memory_space<smem>>
      %c0_i32_228 = arith.constant 0 : i32
      %c1_i32_229 = arith.constant 1 : i32
      %c0_i32_230 = arith.constant 0 : i32
      %c0_i32_231 = arith.constant 0 : i32
      %253 = tpu.memref_slice %arg6[%252, %c0_i32_231] : memref<16x128xf32, #tpu.memory_space<any>> -> memref<1x128xf32, #tpu.memory_space<any>>
      %c0_i32_232 = arith.constant 0 : i32
      %254 = tpu.memref_slice %arg10[%c0_i32_228, %c2_i32_221, %c0_i32_232] : memref<2x8x128xf32, #tpu.memory_space<vmem>> -> memref<1x1x128xf32, #tpu.memory_space<vmem>>
      %255 = tpu.memref_squeeze %254 : memref<1x1x128xf32, #tpu.memory_space<vmem>> -> memref<1x128xf32, #tpu.memory_space<vmem>>
      %256 = tpu.memref_slice %arg13[%c1_i32_229, %c0_i32_230] : memref<4x2x!tpu.dma_semaphore, #tpu.memory_space<semaphore_mem>> -> memref<1x1x!tpu.dma_semaphore, #tpu.memory_space<semaphore_mem>>
      %257 = tpu.memref_squeeze %256 : memref<1x1x!tpu.dma_semaphore, #tpu.memory_space<semaphore_mem>> -> memref<!tpu.dma_semaphore, #tpu.memory_space<semaphore_mem>>
      tpu.enqueue_dma source(%253 : memref<1x128xf32, #tpu.memory_space<any>>) target(%255 : memref<1x128xf32, #tpu.memory_space<vmem>>) target_semaphore(%257 : memref<!tpu.dma_semaphore, #tpu.memory_space<semaphore_mem>>)
      %258 = arith.index_cast %243 : i32 to index
      %259 = memref.load %arg3[%258] : memref<32xi32, #tpu.memory_space<smem>>
      %c0_i32_233 = arith.constant 0 : i32
      %c2_i32_234 = arith.constant 2 : i32
      %c0_i32_235 = arith.constant 0 : i32
      %c0_i32_236 = arith.constant 0 : i32
      %260 = tpu.memref_slice %arg5[%259, %c0_i32_236] : memref<64x128xf32, #tpu.memory_space<any>> -> memref<1x128xf32, #tpu.memory_space<any>>
      %c0_i32_237 = arith.constant 0 : i32
      %261 = tpu.memref_slice %arg11[%c0_i32_233, %c2_i32_221, %c0_i32_237] : memref<2x8x128xf32, #tpu.memory_space<vmem>> -> memref<1x1x128xf32, #tpu.memory_space<vmem>>
      %262 = tpu.memref_squeeze %261 : memref<1x1x128xf32, #tpu.memory_space<vmem>> -> memref<1x128xf32, #tpu.memory_space<vmem>>
      %263 = tpu.memref_slice %arg13[%c2_i32_234, %c0_i32_235] : memref<4x2x!tpu.dma_semaphore, #tpu.memory_space<semaphore_mem>> -> memref<1x1x!tpu.dma_semaphore, #tpu.memory_space<semaphore_mem>>
      %264 = tpu.memref_squeeze %263 : memref<1x1x!tpu.dma_semaphore, #tpu.memory_space<semaphore_mem>> -> memref<!tpu.dma_semaphore, #tpu.memory_space<semaphore_mem>>
      tpu.enqueue_dma source(%260 : memref<1x128xf32, #tpu.memory_space<any>>) target(%262 : memref<1x128xf32, #tpu.memory_space<vmem>>) target_semaphore(%264 : memref<!tpu.dma_semaphore, #tpu.memory_space<semaphore_mem>>)
      %265 = arith.index_cast %243 : i32 to index
      %266 = memref.load %arg4[%265] : memref<32xi32, #tpu.memory_space<smem>>
      %c0_i32_238 = arith.constant 0 : i32
      %c3_i32_239 = arith.constant 3 : i32
      %c0_i32_240 = arith.constant 0 : i32
      %c0_i32_241 = arith.constant 0 : i32
      %267 = tpu.memref_slice %arg5[%266, %c0_i32_241] : memref<64x128xf32, #tpu.memory_space<any>> -> memref<1x128xf32, #tpu.memory_space<any>>
      %c0_i32_242 = arith.constant 0 : i32
      %268 = tpu.memref_slice %arg12[%c0_i32_238, %c2_i32_221, %c0_i32_242] : memref<2x8x128xf32, #tpu.memory_space<vmem>> -> memref<1x1x128xf32, #tpu.memory_space<vmem>>
      %269 = tpu.memref_squeeze %268 : memref<1x1x128xf32, #tpu.memory_space<vmem>> -> memref<1x128xf32, #tpu.memory_space<vmem>>
      %270 = tpu.memref_slice %arg13[%c3_i32_239, %c0_i32_240] : memref<4x2x!tpu.dma_semaphore, #tpu.memory_space<semaphore_mem>> -> memref<1x1x!tpu.dma_semaphore, #tpu.memory_space<semaphore_mem>>
      %271 = tpu.memref_squeeze %270 : memref<1x1x!tpu.dma_semaphore, #tpu.memory_space<semaphore_mem>> -> memref<!tpu.dma_semaphore, #tpu.memory_space<semaphore_mem>>
      tpu.enqueue_dma source(%267 : memref<1x128xf32, #tpu.memory_space<any>>) target(%269 : memref<1x128xf32, #tpu.memory_space<vmem>>) target_semaphore(%271 : memref<!tpu.dma_semaphore, #tpu.memory_space<semaphore_mem>>)
      %c3_i32_243 = arith.constant 3 : i32
      %c0_i32_244 = arith.constant 0 : i32
      %272 = arith.addi %c0_i32_244, %c3_i32_243 : i32
      %273 = arith.index_cast %272 : i32 to index
      %274 = memref.load %arg1[%273] : memref<32xi32, #tpu.memory_space<smem>>
      %c0_i32_245 = arith.constant 0 : i32
      %c0_i32_246 = arith.constant 0 : i32
      %c0_i32_247 = arith.constant 0 : i32
      %c0_i32_248 = arith.constant 0 : i32
      %275 = tpu.memref_slice %arg5[%274, %c0_i32_248] : memref<64x128xf32, #tpu.memory_space<any>> -> memref<1x128xf32, #tpu.memory_space<any>>
      %c0_i32_249 = arith.constant 0 : i32
      %276 = tpu.memref_slice %arg9[%c0_i32_245, %c3_i32_243, %c0_i32_249] : memref<2x8x128xf32, #tpu.memory_space<vmem>> -> memref<1x1x128xf32, #tpu.memory_space<vmem>>
      %277 = tpu.memref_squeeze %276 : memref<1x1x128xf32, #tpu.memory_space<vmem>> -> memref<1x128xf32, #tpu.memory_space<vmem>>
      %278 = tpu.memref_slice %arg13[%c0_i32_246, %c0_i32_247] : memref<4x2x!tpu.dma_semaphore, #tpu.memory_space<semaphore_mem>> -> memref<1x1x!tpu.dma_semaphore, #tpu.memory_space<semaphore_mem>>
      %279 = tpu.memref_squeeze %278 : memref<1x1x!tpu.dma_semaphore, #tpu.memory_space<semaphore_mem>> -> memref<!tpu.dma_semaphore, #tpu.memory_space<semaphore_mem>>
      tpu.enqueue_dma source(%275 : memref<1x128xf32, #tpu.memory_space<any>>) target(%277 : memref<1x128xf32, #tpu.memory_space<vmem>>) target_semaphore(%279 : memref<!tpu.dma_semaphore, #tpu.memory_space<semaphore_mem>>)
      %280 = arith.index_cast %272 : i32 to index
      %281 = memref.load %arg2[%280] : memref<32xi32, #tpu.memory_space<smem>>
      %c0_i32_250 = arith.constant 0 : i32
      %c1_i32_251 = arith.constant 1 : i32
      %c0_i32_252 = arith.constant 0 : i32
      %c0_i32_253 = arith.constant 0 : i32
      %282 = tpu.memref_slice %arg6[%281, %c0_i32_253] : memref<16x128xf32, #tpu.memory_space<any>> -> memref<1x128xf32, #tpu.memory_space<any>>
      %c0_i32_254 = arith.constant 0 : i32
      %283 = tpu.memref_slice %arg10[%c0_i32_250, %c3_i32_243, %c0_i32_254] : memref<2x8x128xf32, #tpu.memory_space<vmem>> -> memref<1x1x128xf32, #tpu.memory_space<vmem>>
      %284 = tpu.memref_squeeze %283 : memref<1x1x128xf32, #tpu.memory_space<vmem>> -> memref<1x128xf32, #tpu.memory_space<vmem>>
      %285 = tpu.memref_slice %arg13[%c1_i32_251, %c0_i32_252] : memref<4x2x!tpu.dma_semaphore, #tpu.memory_space<semaphore_mem>> -> memref<1x1x!tpu.dma_semaphore, #tpu.memory_space<semaphore_mem>>
      %286 = tpu.memref_squeeze %285 : memref<1x1x!tpu.dma_semaphore, #tpu.memory_space<semaphore_mem>> -> memref<!tpu.dma_semaphore, #tpu.memory_space<semaphore_mem>>
      tpu.enqueue_dma source(%282 : memref<1x128xf32, #tpu.memory_space<any>>) target(%284 : memref<1x128xf32, #tpu.memory_space<vmem>>) target_semaphore(%286 : memref<!tpu.dma_semaphore, #tpu.memory_space<semaphore_mem>>)
      %287 = arith.index_cast %272 : i32 to index
      %288 = memref.load %arg3[%287] : memref<32xi32, #tpu.memory_space<smem>>
      %c0_i32_255 = arith.constant 0 : i32
      %c2_i32_256 = arith.constant 2 : i32
      %c0_i32_257 = arith.constant 0 : i32
      %c0_i32_258 = arith.constant 0 : i32
      %289 = tpu.memref_slice %arg5[%288, %c0_i32_258] : memref<64x128xf32, #tpu.memory_space<any>> -> memref<1x128xf32, #tpu.memory_space<any>>
      %c0_i32_259 = arith.constant 0 : i32
      %290 = tpu.memref_slice %arg11[%c0_i32_255, %c3_i32_243, %c0_i32_259] : memref<2x8x128xf32, #tpu.memory_space<vmem>> -> memref<1x1x128xf32, #tpu.memory_space<vmem>>
      %291 = tpu.memref_squeeze %290 : memref<1x1x128xf32, #tpu.memory_space<vmem>> -> memref<1x128xf32, #tpu.memory_space<vmem>>
      %292 = tpu.memref_slice %arg13[%c2_i32_256, %c0_i32_257] : memref<4x2x!tpu.dma_semaphore, #tpu.memory_space<semaphore_mem>> -> memref<1x1x!tpu.dma_semaphore, #tpu.memory_space<semaphore_mem>>
      %293 = tpu.memref_squeeze %292 : memref<1x1x!tpu.dma_semaphore, #tpu.memory_space<semaphore_mem>> -> memref<!tpu.dma_semaphore, #tpu.memory_space<semaphore_mem>>
      tpu.enqueue_dma source(%289 : memref<1x128xf32, #tpu.memory_space<any>>) target(%291 : memref<1x128xf32, #tpu.memory_space<vmem>>) target_semaphore(%293 : memref<!tpu.dma_semaphore, #tpu.memory_space<semaphore_mem>>)
      %294 = arith.index_cast %272 : i32 to index
      %295 = memref.load %arg4[%294] : memref<32xi32, #tpu.memory_space<smem>>
      %c0_i32_260 = arith.constant 0 : i32
      %c3_i32_261 = arith.constant 3 : i32
      %c0_i32_262 = arith.constant 0 : i32
      %c0_i32_263 = arith.constant 0 : i32
      %296 = tpu.memref_slice %arg5[%295, %c0_i32_263] : memref<64x128xf32, #tpu.memory_space<any>> -> memref<1x128xf32, #tpu.memory_space<any>>
      %c0_i32_264 = arith.constant 0 : i32
      %297 = tpu.memref_slice %arg12[%c0_i32_260, %c3_i32_243, %c0_i32_264] : memref<2x8x128xf32, #tpu.memory_space<vmem>> -> memref<1x1x128xf32, #tpu.memory_space<vmem>>
      %298 = tpu.memref_squeeze %297 : memref<1x1x128xf32, #tpu.memory_space<vmem>> -> memref<1x128xf32, #tpu.memory_space<vmem>>
      %299 = tpu.memref_slice %arg13[%c3_i32_261, %c0_i32_262] : memref<4x2x!tpu.dma_semaphore, #tpu.memory_space<semaphore_mem>> -> memref<1x1x!tpu.dma_semaphore, #tpu.memory_space<semaphore_mem>>
      %300 = tpu.memref_squeeze %299 : memref<1x1x!tpu.dma_semaphore, #tpu.memory_space<semaphore_mem>> -> memref<!tpu.dma_semaphore, #tpu.memory_space<semaphore_mem>>
      tpu.enqueue_dma source(%296 : memref<1x128xf32, #tpu.memory_space<any>>) target(%298 : memref<1x128xf32, #tpu.memory_space<vmem>>) target_semaphore(%300 : memref<!tpu.dma_semaphore, #tpu.memory_space<semaphore_mem>>)
      %c4_i32_265 = arith.constant 4 : i32
      %c0_i32_266 = arith.constant 0 : i32
      %301 = arith.addi %c0_i32_266, %c4_i32_265 : i32
      %302 = arith.index_cast %301 : i32 to index
      %303 = memref.load %arg1[%302] : memref<32xi32, #tpu.memory_space<smem>>
      %c0_i32_267 = arith.constant 0 : i32
      %c0_i32_268 = arith.constant 0 : i32
      %c0_i32_269 = arith.constant 0 : i32
      %c0_i32_270 = arith.constant 0 : i32
      %304 = tpu.memref_slice %arg5[%303, %c0_i32_270] : memref<64x128xf32, #tpu.memory_space<any>> -> memref<1x128xf32, #tpu.memory_space<any>>
      %c0_i32_271 = arith.constant 0 : i32
      %305 = tpu.memref_slice %arg9[%c0_i32_267, %c4_i32_265, %c0_i32_271] : memref<2x8x128xf32, #tpu.memory_space<vmem>> -> memref<1x1x128xf32, #tpu.memory_space<vmem>>
      %306 = tpu.memref_squeeze %305 : memref<1x1x128xf32, #tpu.memory_space<vmem>> -> memref<1x128xf32, #tpu.memory_space<vmem>>
      %307 = tpu.memref_slice %arg13[%c0_i32_268, %c0_i32_269] : memref<4x2x!tpu.dma_semaphore, #tpu.memory_space<semaphore_mem>> -> memref<1x1x!tpu.dma_semaphore, #tpu.memory_space<semaphore_mem>>
      %308 = tpu.memref_squeeze %307 : memref<1x1x!tpu.dma_semaphore, #tpu.memory_space<semaphore_mem>> -> memref<!tpu.dma_semaphore, #tpu.memory_space<semaphore_mem>>
      tpu.enqueue_dma source(%304 : memref<1x128xf32, #tpu.memory_space<any>>) target(%306 : memref<1x128xf32, #tpu.memory_space<vmem>>) target_semaphore(%308 : memref<!tpu.dma_semaphore, #tpu.memory_space<semaphore_mem>>)
      %309 = arith.index_cast %301 : i32 to index
      %310 = memref.load %arg2[%309] : memref<32xi32, #tpu.memory_space<smem>>
      %c0_i32_272 = arith.constant 0 : i32
      %c1_i32_273 = arith.constant 1 : i32
      %c0_i32_274 = arith.constant 0 : i32
      %c0_i32_275 = arith.constant 0 : i32
      %311 = tpu.memref_slice %arg6[%310, %c0_i32_275] : memref<16x128xf32, #tpu.memory_space<any>> -> memref<1x128xf32, #tpu.memory_space<any>>
      %c0_i32_276 = arith.constant 0 : i32
      %312 = tpu.memref_slice %arg10[%c0_i32_272, %c4_i32_265, %c0_i32_276] : memref<2x8x128xf32, #tpu.memory_space<vmem>> -> memref<1x1x128xf32, #tpu.memory_space<vmem>>
      %313 = tpu.memref_squeeze %312 : memref<1x1x128xf32, #tpu.memory_space<vmem>> -> memref<1x128xf32, #tpu.memory_space<vmem>>
      %314 = tpu.memref_slice %arg13[%c1_i32_273, %c0_i32_274] : memref<4x2x!tpu.dma_semaphore, #tpu.memory_space<semaphore_mem>> -> memref<1x1x!tpu.dma_semaphore, #tpu.memory_space<semaphore_mem>>
      %315 = tpu.memref_squeeze %314 : memref<1x1x!tpu.dma_semaphore, #tpu.memory_space<semaphore_mem>> -> memref<!tpu.dma_semaphore, #tpu.memory_space<semaphore_mem>>
      tpu.enqueue_dma source(%311 : memref<1x128xf32, #tpu.memory_space<any>>) target(%313 : memref<1x128xf32, #tpu.memory_space<vmem>>) target_semaphore(%315 : memref<!tpu.dma_semaphore, #tpu.memory_space<semaphore_mem>>)
      %316 = arith.index_cast %301 : i32 to index
      %317 = memref.load %arg3[%316] : memref<32xi32, #tpu.memory_space<smem>>
      %c0_i32_277 = arith.constant 0 : i32
      %c2_i32_278 = arith.constant 2 : i32
      %c0_i32_279 = arith.constant 0 : i32
      %c0_i32_280 = arith.constant 0 : i32
      %318 = tpu.memref_slice %arg5[%317, %c0_i32_280] : memref<64x128xf32, #tpu.memory_space<any>> -> memref<1x128xf32, #tpu.memory_space<any>>
      %c0_i32_281 = arith.constant 0 : i32
      %319 = tpu.memref_slice %arg11[%c0_i32_277, %c4_i32_265, %c0_i32_281] : memref<2x8x128xf32, #tpu.memory_space<vmem>> -> memref<1x1x128xf32, #tpu.memory_space<vmem>>
      %320 = tpu.memref_squeeze %319 : memref<1x1x128xf32, #tpu.memory_space<vmem>> -> memref<1x128xf32, #tpu.memory_space<vmem>>
      %321 = tpu.memref_slice %arg13[%c2_i32_278, %c0_i32_279] : memref<4x2x!tpu.dma_semaphore, #tpu.memory_space<semaphore_mem>> -> memref<1x1x!tpu.dma_semaphore, #tpu.memory_space<semaphore_mem>>
      %322 = tpu.memref_squeeze %321 : memref<1x1x!tpu.dma_semaphore, #tpu.memory_space<semaphore_mem>> -> memref<!tpu.dma_semaphore, #tpu.memory_space<semaphore_mem>>
      tpu.enqueue_dma source(%318 : memref<1x128xf32, #tpu.memory_space<any>>) target(%320 : memref<1x128xf32, #tpu.memory_space<vmem>>) target_semaphore(%322 : memref<!tpu.dma_semaphore, #tpu.memory_space<semaphore_mem>>)
      %323 = arith.index_cast %301 : i32 to index
      %324 = memref.load %arg4[%323] : memref<32xi32, #tpu.memory_space<smem>>
      %c0_i32_282 = arith.constant 0 : i32
      %c3_i32_283 = arith.constant 3 : i32
      %c0_i32_284 = arith.constant 0 : i32
      %c0_i32_285 = arith.constant 0 : i32
      %325 = tpu.memref_slice %arg5[%324, %c0_i32_285] : memref<64x128xf32, #tpu.memory_space<any>> -> memref<1x128xf32, #tpu.memory_space<any>>
      %c0_i32_286 = arith.constant 0 : i32
      %326 = tpu.memref_slice %arg12[%c0_i32_282, %c4_i32_265, %c0_i32_286] : memref<2x8x128xf32, #tpu.memory_space<vmem>> -> memref<1x1x128xf32, #tpu.memory_space<vmem>>
      %327 = tpu.memref_squeeze %326 : memref<1x1x128xf32, #tpu.memory_space<vmem>> -> memref<1x128xf32, #tpu.memory_space<vmem>>
      %328 = tpu.memref_slice %arg13[%c3_i32_283, %c0_i32_284] : memref<4x2x!tpu.dma_semaphore, #tpu.memory_space<semaphore_mem>> -> memref<1x1x!tpu.dma_semaphore, #tpu.memory_space<semaphore_mem>>
      %329 = tpu.memref_squeeze %328 : memref<1x1x!tpu.dma_semaphore, #tpu.memory_space<semaphore_mem>> -> memref<!tpu.dma_semaphore, #tpu.memory_space<semaphore_mem>>
      tpu.enqueue_dma source(%325 : memref<1x128xf32, #tpu.memory_space<any>>) target(%327 : memref<1x128xf32, #tpu.memory_space<vmem>>) target_semaphore(%329 : memref<!tpu.dma_semaphore, #tpu.memory_space<semaphore_mem>>)
      %c5_i32_287 = arith.constant 5 : i32
      %c0_i32_288 = arith.constant 0 : i32
      %330 = arith.addi %c0_i32_288, %c5_i32_287 : i32
      %331 = arith.index_cast %330 : i32 to index
      %332 = memref.load %arg1[%331] : memref<32xi32, #tpu.memory_space<smem>>
      %c0_i32_289 = arith.constant 0 : i32
      %c0_i32_290 = arith.constant 0 : i32
      %c0_i32_291 = arith.constant 0 : i32
      %c0_i32_292 = arith.constant 0 : i32
      %333 = tpu.memref_slice %arg5[%332, %c0_i32_292] : memref<64x128xf32, #tpu.memory_space<any>> -> memref<1x128xf32, #tpu.memory_space<any>>
      %c0_i32_293 = arith.constant 0 : i32
      %334 = tpu.memref_slice %arg9[%c0_i32_289, %c5_i32_287, %c0_i32_293] : memref<2x8x128xf32, #tpu.memory_space<vmem>> -> memref<1x1x128xf32, #tpu.memory_space<vmem>>
      %335 = tpu.memref_squeeze %334 : memref<1x1x128xf32, #tpu.memory_space<vmem>> -> memref<1x128xf32, #tpu.memory_space<vmem>>
      %336 = tpu.memref_slice %arg13[%c0_i32_290, %c0_i32_291] : memref<4x2x!tpu.dma_semaphore, #tpu.memory_space<semaphore_mem>> -> memref<1x1x!tpu.dma_semaphore, #tpu.memory_space<semaphore_mem>>
      %337 = tpu.memref_squeeze %336 : memref<1x1x!tpu.dma_semaphore, #tpu.memory_space<semaphore_mem>> -> memref<!tpu.dma_semaphore, #tpu.memory_space<semaphore_mem>>
      tpu.enqueue_dma source(%333 : memref<1x128xf32, #tpu.memory_space<any>>) target(%335 : memref<1x128xf32, #tpu.memory_space<vmem>>) target_semaphore(%337 : memref<!tpu.dma_semaphore, #tpu.memory_space<semaphore_mem>>)
      %338 = arith.index_cast %330 : i32 to index
      %339 = memref.load %arg2[%338] : memref<32xi32, #tpu.memory_space<smem>>
      %c0_i32_294 = arith.constant 0 : i32
      %c1_i32_295 = arith.constant 1 : i32
      %c0_i32_296 = arith.constant 0 : i32
      %c0_i32_297 = arith.constant 0 : i32
      %340 = tpu.memref_slice %arg6[%339, %c0_i32_297] : memref<16x128xf32, #tpu.memory_space<any>> -> memref<1x128xf32, #tpu.memory_space<any>>
      %c0_i32_298 = arith.constant 0 : i32
      %341 = tpu.memref_slice %arg10[%c0_i32_294, %c5_i32_287, %c0_i32_298] : memref<2x8x128xf32, #tpu.memory_space<vmem>> -> memref<1x1x128xf32, #tpu.memory_space<vmem>>
      %342 = tpu.memref_squeeze %341 : memref<1x1x128xf32, #tpu.memory_space<vmem>> -> memref<1x128xf32, #tpu.memory_space<vmem>>
      %343 = tpu.memref_slice %arg13[%c1_i32_295, %c0_i32_296] : memref<4x2x!tpu.dma_semaphore, #tpu.memory_space<semaphore_mem>> -> memref<1x1x!tpu.dma_semaphore, #tpu.memory_space<semaphore_mem>>
      %344 = tpu.memref_squeeze %343 : memref<1x1x!tpu.dma_semaphore, #tpu.memory_space<semaphore_mem>> -> memref<!tpu.dma_semaphore, #tpu.memory_space<semaphore_mem>>
      tpu.enqueue_dma source(%340 : memref<1x128xf32, #tpu.memory_space<any>>) target(%342 : memref<1x128xf32, #tpu.memory_space<vmem>>) target_semaphore(%344 : memref<!tpu.dma_semaphore, #tpu.memory_space<semaphore_mem>>)
      %345 = arith.index_cast %330 : i32 to index
      %346 = memref.load %arg3[%345] : memref<32xi32, #tpu.memory_space<smem>>
      %c0_i32_299 = arith.constant 0 : i32
      %c2_i32_300 = arith.constant 2 : i32
      %c0_i32_301 = arith.constant 0 : i32
      %c0_i32_302 = arith.constant 0 : i32
      %347 = tpu.memref_slice %arg5[%346, %c0_i32_302] : memref<64x128xf32, #tpu.memory_space<any>> -> memref<1x128xf32, #tpu.memory_space<any>>
      %c0_i32_303 = arith.constant 0 : i32
      %348 = tpu.memref_slice %arg11[%c0_i32_299, %c5_i32_287, %c0_i32_303] : memref<2x8x128xf32, #tpu.memory_space<vmem>> -> memref<1x1x128xf32, #tpu.memory_space<vmem>>
      %349 = tpu.memref_squeeze %348 : memref<1x1x128xf32, #tpu.memory_space<vmem>> -> memref<1x128xf32, #tpu.memory_space<vmem>>
      %350 = tpu.memref_slice %arg13[%c2_i32_300, %c0_i32_301] : memref<4x2x!tpu.dma_semaphore, #tpu.memory_space<semaphore_mem>> -> memref<1x1x!tpu.dma_semaphore, #tpu.memory_space<semaphore_mem>>
      %351 = tpu.memref_squeeze %350 : memref<1x1x!tpu.dma_semaphore, #tpu.memory_space<semaphore_mem>> -> memref<!tpu.dma_semaphore, #tpu.memory_space<semaphore_mem>>
      tpu.enqueue_dma source(%347 : memref<1x128xf32, #tpu.memory_space<any>>) target(%349 : memref<1x128xf32, #tpu.memory_space<vmem>>) target_semaphore(%351 : memref<!tpu.dma_semaphore, #tpu.memory_space<semaphore_mem>>)
      %352 = arith.index_cast %330 : i32 to index
      %353 = memref.load %arg4[%352] : memref<32xi32, #tpu.memory_space<smem>>
      %c0_i32_304 = arith.constant 0 : i32
      %c3_i32_305 = arith.constant 3 : i32
      %c0_i32_306 = arith.constant 0 : i32
      %c0_i32_307 = arith.constant 0 : i32
      %354 = tpu.memref_slice %arg5[%353, %c0_i32_307] : memref<64x128xf32, #tpu.memory_space<any>> -> memref<1x128xf32, #tpu.memory_space<any>>
      %c0_i32_308 = arith.constant 0 : i32
      %355 = tpu.memref_slice %arg12[%c0_i32_304, %c5_i32_287, %c0_i32_308] : memref<2x8x128xf32, #tpu.memory_space<vmem>> -> memref<1x1x128xf32, #tpu.memory_space<vmem>>
      %356 = tpu.memref_squeeze %355 : memref<1x1x128xf32, #tpu.memory_space<vmem>> -> memref<1x128xf32, #tpu.memory_space<vmem>>
      %357 = tpu.memref_slice %arg13[%c3_i32_305, %c0_i32_306] : memref<4x2x!tpu.dma_semaphore, #tpu.memory_space<semaphore_mem>> -> memref<1x1x!tpu.dma_semaphore, #tpu.memory_space<semaphore_mem>>
      %358 = tpu.memref_squeeze %357 : memref<1x1x!tpu.dma_semaphore, #tpu.memory_space<semaphore_mem>> -> memref<!tpu.dma_semaphore, #tpu.memory_space<semaphore_mem>>
      tpu.enqueue_dma source(%354 : memref<1x128xf32, #tpu.memory_space<any>>) target(%356 : memref<1x128xf32, #tpu.memory_space<vmem>>) target_semaphore(%358 : memref<!tpu.dma_semaphore, #tpu.memory_space<semaphore_mem>>)
      %c6_i32_309 = arith.constant 6 : i32
      %c0_i32_310 = arith.constant 0 : i32
      %359 = arith.addi %c0_i32_310, %c6_i32_309 : i32
      %360 = arith.index_cast %359 : i32 to index
      %361 = memref.load %arg1[%360] : memref<32xi32, #tpu.memory_space<smem>>
      %c0_i32_311 = arith.constant 0 : i32
      %c0_i32_312 = arith.constant 0 : i32
      %c0_i32_313 = arith.constant 0 : i32
      %c0_i32_314 = arith.constant 0 : i32
      %362 = tpu.memref_slice %arg5[%361, %c0_i32_314] : memref<64x128xf32, #tpu.memory_space<any>> -> memref<1x128xf32, #tpu.memory_space<any>>
      %c0_i32_315 = arith.constant 0 : i32
      %363 = tpu.memref_slice %arg9[%c0_i32_311, %c6_i32_309, %c0_i32_315] : memref<2x8x128xf32, #tpu.memory_space<vmem>> -> memref<1x1x128xf32, #tpu.memory_space<vmem>>
      %364 = tpu.memref_squeeze %363 : memref<1x1x128xf32, #tpu.memory_space<vmem>> -> memref<1x128xf32, #tpu.memory_space<vmem>>
      %365 = tpu.memref_slice %arg13[%c0_i32_312, %c0_i32_313] : memref<4x2x!tpu.dma_semaphore, #tpu.memory_space<semaphore_mem>> -> memref<1x1x!tpu.dma_semaphore, #tpu.memory_space<semaphore_mem>>
      %366 = tpu.memref_squeeze %365 : memref<1x1x!tpu.dma_semaphore, #tpu.memory_space<semaphore_mem>> -> memref<!tpu.dma_semaphore, #tpu.memory_space<semaphore_mem>>
      tpu.enqueue_dma source(%362 : memref<1x128xf32, #tpu.memory_space<any>>) target(%364 : memref<1x128xf32, #tpu.memory_space<vmem>>) target_semaphore(%366 : memref<!tpu.dma_semaphore, #tpu.memory_space<semaphore_mem>>)
      %367 = arith.index_cast %359 : i32 to index
      %368 = memref.load %arg2[%367] : memref<32xi32, #tpu.memory_space<smem>>
      %c0_i32_316 = arith.constant 0 : i32
      %c1_i32_317 = arith.constant 1 : i32
      %c0_i32_318 = arith.constant 0 : i32
      %c0_i32_319 = arith.constant 0 : i32
      %369 = tpu.memref_slice %arg6[%368, %c0_i32_319] : memref<16x128xf32, #tpu.memory_space<any>> -> memref<1x128xf32, #tpu.memory_space<any>>
      %c0_i32_320 = arith.constant 0 : i32
      %370 = tpu.memref_slice %arg10[%c0_i32_316, %c6_i32_309, %c0_i32_320] : memref<2x8x128xf32, #tpu.memory_space<vmem>> -> memref<1x1x128xf32, #tpu.memory_space<vmem>>
      %371 = tpu.memref_squeeze %370 : memref<1x1x128xf32, #tpu.memory_space<vmem>> -> memref<1x128xf32, #tpu.memory_space<vmem>>
      %372 = tpu.memref_slice %arg13[%c1_i32_317, %c0_i32_318] : memref<4x2x!tpu.dma_semaphore, #tpu.memory_space<semaphore_mem>> -> memref<1x1x!tpu.dma_semaphore, #tpu.memory_space<semaphore_mem>>
      %373 = tpu.memref_squeeze %372 : memref<1x1x!tpu.dma_semaphore, #tpu.memory_space<semaphore_mem>> -> memref<!tpu.dma_semaphore, #tpu.memory_space<semaphore_mem>>
      tpu.enqueue_dma source(%369 : memref<1x128xf32, #tpu.memory_space<any>>) target(%371 : memref<1x128xf32, #tpu.memory_space<vmem>>) target_semaphore(%373 : memref<!tpu.dma_semaphore, #tpu.memory_space<semaphore_mem>>)
      %374 = arith.index_cast %359 : i32 to index
      %375 = memref.load %arg3[%374] : memref<32xi32, #tpu.memory_space<smem>>
      %c0_i32_321 = arith.constant 0 : i32
      %c2_i32_322 = arith.constant 2 : i32
      %c0_i32_323 = arith.constant 0 : i32
      %c0_i32_324 = arith.constant 0 : i32
      %376 = tpu.memref_slice %arg5[%375, %c0_i32_324] : memref<64x128xf32, #tpu.memory_space<any>> -> memref<1x128xf32, #tpu.memory_space<any>>
      %c0_i32_325 = arith.constant 0 : i32
      %377 = tpu.memref_slice %arg11[%c0_i32_321, %c6_i32_309, %c0_i32_325] : memref<2x8x128xf32, #tpu.memory_space<vmem>> -> memref<1x1x128xf32, #tpu.memory_space<vmem>>
      %378 = tpu.memref_squeeze %377 : memref<1x1x128xf32, #tpu.memory_space<vmem>> -> memref<1x128xf32, #tpu.memory_space<vmem>>
      %379 = tpu.memref_slice %arg13[%c2_i32_322, %c0_i32_323] : memref<4x2x!tpu.dma_semaphore, #tpu.memory_space<semaphore_mem>> -> memref<1x1x!tpu.dma_semaphore, #tpu.memory_space<semaphore_mem>>
      %380 = tpu.memref_squeeze %379 : memref<1x1x!tpu.dma_semaphore, #tpu.memory_space<semaphore_mem>> -> memref<!tpu.dma_semaphore, #tpu.memory_space<semaphore_mem>>
      tpu.enqueue_dma source(%376 : memref<1x128xf32, #tpu.memory_space<any>>) target(%378 : memref<1x128xf32, #tpu.memory_space<vmem>>) target_semaphore(%380 : memref<!tpu.dma_semaphore, #tpu.memory_space<semaphore_mem>>)
      %381 = arith.index_cast %359 : i32 to index
      %382 = memref.load %arg4[%381] : memref<32xi32, #tpu.memory_space<smem>>
      %c0_i32_326 = arith.constant 0 : i32
      %c3_i32_327 = arith.constant 3 : i32
      %c0_i32_328 = arith.constant 0 : i32
      %c0_i32_329 = arith.constant 0 : i32
      %383 = tpu.memref_slice %arg5[%382, %c0_i32_329] : memref<64x128xf32, #tpu.memory_space<any>> -> memref<1x128xf32, #tpu.memory_space<any>>
      %c0_i32_330 = arith.constant 0 : i32
      %384 = tpu.memref_slice %arg12[%c0_i32_326, %c6_i32_309, %c0_i32_330] : memref<2x8x128xf32, #tpu.memory_space<vmem>> -> memref<1x1x128xf32, #tpu.memory_space<vmem>>
      %385 = tpu.memref_squeeze %384 : memref<1x1x128xf32, #tpu.memory_space<vmem>> -> memref<1x128xf32, #tpu.memory_space<vmem>>
      %386 = tpu.memref_slice %arg13[%c3_i32_327, %c0_i32_328] : memref<4x2x!tpu.dma_semaphore, #tpu.memory_space<semaphore_mem>> -> memref<1x1x!tpu.dma_semaphore, #tpu.memory_space<semaphore_mem>>
      %387 = tpu.memref_squeeze %386 : memref<1x1x!tpu.dma_semaphore, #tpu.memory_space<semaphore_mem>> -> memref<!tpu.dma_semaphore, #tpu.memory_space<semaphore_mem>>
      tpu.enqueue_dma source(%383 : memref<1x128xf32, #tpu.memory_space<any>>) target(%385 : memref<1x128xf32, #tpu.memory_space<vmem>>) target_semaphore(%387 : memref<!tpu.dma_semaphore, #tpu.memory_space<semaphore_mem>>)
      %c7_i32_331 = arith.constant 7 : i32
      %c0_i32_332 = arith.constant 0 : i32
      %388 = arith.addi %c0_i32_332, %c7_i32_331 : i32
      %389 = arith.index_cast %388 : i32 to index
      %390 = memref.load %arg1[%389] : memref<32xi32, #tpu.memory_space<smem>>
      %c0_i32_333 = arith.constant 0 : i32
      %c0_i32_334 = arith.constant 0 : i32
      %c0_i32_335 = arith.constant 0 : i32
      %c0_i32_336 = arith.constant 0 : i32
      %391 = tpu.memref_slice %arg5[%390, %c0_i32_336] : memref<64x128xf32, #tpu.memory_space<any>> -> memref<1x128xf32, #tpu.memory_space<any>>
      %c0_i32_337 = arith.constant 0 : i32
      %392 = tpu.memref_slice %arg9[%c0_i32_333, %c7_i32_331, %c0_i32_337] : memref<2x8x128xf32, #tpu.memory_space<vmem>> -> memref<1x1x128xf32, #tpu.memory_space<vmem>>
      %393 = tpu.memref_squeeze %392 : memref<1x1x128xf32, #tpu.memory_space<vmem>> -> memref<1x128xf32, #tpu.memory_space<vmem>>
      %394 = tpu.memref_slice %arg13[%c0_i32_334, %c0_i32_335] : memref<4x2x!tpu.dma_semaphore, #tpu.memory_space<semaphore_mem>> -> memref<1x1x!tpu.dma_semaphore, #tpu.memory_space<semaphore_mem>>
      %395 = tpu.memref_squeeze %394 : memref<1x1x!tpu.dma_semaphore, #tpu.memory_space<semaphore_mem>> -> memref<!tpu.dma_semaphore, #tpu.memory_space<semaphore_mem>>
      tpu.enqueue_dma source(%391 : memref<1x128xf32, #tpu.memory_space<any>>) target(%393 : memref<1x128xf32, #tpu.memory_space<vmem>>) target_semaphore(%395 : memref<!tpu.dma_semaphore, #tpu.memory_space<semaphore_mem>>)
      %396 = arith.index_cast %388 : i32 to index
      %397 = memref.load %arg2[%396] : memref<32xi32, #tpu.memory_space<smem>>
      %c0_i32_338 = arith.constant 0 : i32
      %c1_i32_339 = arith.constant 1 : i32
      %c0_i32_340 = arith.constant 0 : i32
      %c0_i32_341 = arith.constant 0 : i32
      %398 = tpu.memref_slice %arg6[%397, %c0_i32_341] : memref<16x128xf32, #tpu.memory_space<any>> -> memref<1x128xf32, #tpu.memory_space<any>>
      %c0_i32_342 = arith.constant 0 : i32
      %399 = tpu.memref_slice %arg10[%c0_i32_338, %c7_i32_331, %c0_i32_342] : memref<2x8x128xf32, #tpu.memory_space<vmem>> -> memref<1x1x128xf32, #tpu.memory_space<vmem>>
      %400 = tpu.memref_squeeze %399 : memref<1x1x128xf32, #tpu.memory_space<vmem>> -> memref<1x128xf32, #tpu.memory_space<vmem>>
      %401 = tpu.memref_slice %arg13[%c1_i32_339, %c0_i32_340] : memref<4x2x!tpu.dma_semaphore, #tpu.memory_space<semaphore_mem>> -> memref<1x1x!tpu.dma_semaphore, #tpu.memory_space<semaphore_mem>>
      %402 = tpu.memref_squeeze %401 : memref<1x1x!tpu.dma_semaphore, #tpu.memory_space<semaphore_mem>> -> memref<!tpu.dma_semaphore, #tpu.memory_space<semaphore_mem>>
      tpu.enqueue_dma source(%398 : memref<1x128xf32, #tpu.memory_space<any>>) target(%400 : memref<1x128xf32, #tpu.memory_space<vmem>>) target_semaphore(%402 : memref<!tpu.dma_semaphore, #tpu.memory_space<semaphore_mem>>)
      %403 = arith.index_cast %388 : i32 to index
      %404 = memref.load %arg3[%403] : memref<32xi32, #tpu.memory_space<smem>>
      %c0_i32_343 = arith.constant 0 : i32
      %c2_i32_344 = arith.constant 2 : i32
      %c0_i32_345 = arith.constant 0 : i32
      %c0_i32_346 = arith.constant 0 : i32
      %405 = tpu.memref_slice %arg5[%404, %c0_i32_346] : memref<64x128xf32, #tpu.memory_space<any>> -> memref<1x128xf32, #tpu.memory_space<any>>
      %c0_i32_347 = arith.constant 0 : i32
      %406 = tpu.memref_slice %arg11[%c0_i32_343, %c7_i32_331, %c0_i32_347] : memref<2x8x128xf32, #tpu.memory_space<vmem>> -> memref<1x1x128xf32, #tpu.memory_space<vmem>>
      %407 = tpu.memref_squeeze %406 : memref<1x1x128xf32, #tpu.memory_space<vmem>> -> memref<1x128xf32, #tpu.memory_space<vmem>>
      %408 = tpu.memref_slice %arg13[%c2_i32_344, %c0_i32_345] : memref<4x2x!tpu.dma_semaphore, #tpu.memory_space<semaphore_mem>> -> memref<1x1x!tpu.dma_semaphore, #tpu.memory_space<semaphore_mem>>
      %409 = tpu.memref_squeeze %408 : memref<1x1x!tpu.dma_semaphore, #tpu.memory_space<semaphore_mem>> -> memref<!tpu.dma_semaphore, #tpu.memory_space<semaphore_mem>>
      tpu.enqueue_dma source(%405 : memref<1x128xf32, #tpu.memory_space<any>>) target(%407 : memref<1x128xf32, #tpu.memory_space<vmem>>) target_semaphore(%409 : memref<!tpu.dma_semaphore, #tpu.memory_space<semaphore_mem>>)
      %410 = arith.index_cast %388 : i32 to index
      %411 = memref.load %arg4[%410] : memref<32xi32, #tpu.memory_space<smem>>
      %c0_i32_348 = arith.constant 0 : i32
      %c3_i32_349 = arith.constant 3 : i32
      %c0_i32_350 = arith.constant 0 : i32
      %c0_i32_351 = arith.constant 0 : i32
      %412 = tpu.memref_slice %arg5[%411, %c0_i32_351] : memref<64x128xf32, #tpu.memory_space<any>> -> memref<1x128xf32, #tpu.memory_space<any>>
      %c0_i32_352 = arith.constant 0 : i32
      %413 = tpu.memref_slice %arg12[%c0_i32_348, %c7_i32_331, %c0_i32_352] : memref<2x8x128xf32, #tpu.memory_space<vmem>> -> memref<1x1x128xf32, #tpu.memory_space<vmem>>
      %414 = tpu.memref_squeeze %413 : memref<1x1x128xf32, #tpu.memory_space<vmem>> -> memref<1x128xf32, #tpu.memory_space<vmem>>
      %415 = tpu.memref_slice %arg13[%c3_i32_349, %c0_i32_350] : memref<4x2x!tpu.dma_semaphore, #tpu.memory_space<semaphore_mem>> -> memref<1x1x!tpu.dma_semaphore, #tpu.memory_space<semaphore_mem>>
      %416 = tpu.memref_squeeze %415 : memref<1x1x!tpu.dma_semaphore, #tpu.memory_space<semaphore_mem>> -> memref<!tpu.dma_semaphore, #tpu.memory_space<semaphore_mem>>
      tpu.enqueue_dma source(%412 : memref<1x128xf32, #tpu.memory_space<any>>) target(%414 : memref<1x128xf32, #tpu.memory_space<vmem>>) target_semaphore(%416 : memref<!tpu.dma_semaphore, #tpu.memory_space<semaphore_mem>>)
      %c8_i32 = arith.constant 8 : i32
    } else {
    }
    %c1_i32 = arith.constant 1 : i32
    %4 = arith.addi %arg0, %c1_i32 : i32
    %c4_i32 = arith.constant 4 : i32
    %5 = arith.cmpi slt, %4, %c4_i32 : i32
    %6 = arith.extui %5 : i1 to i32
    %c0_i32_1 = arith.constant 0 : i32
    %7 = arith.cmpi ne, %6, %c0_i32_1 : i32
    scf.if %7 {
      %c1_i32_177 = arith.constant 1 : i32
      %185 = arith.addi %arg0, %c1_i32_177 : i32
      %c1_i32_178 = arith.constant 1 : i32
      %186 = arith.subi %c1_i32_178, %0 : i32
      %c8_i32 = arith.constant 8 : i32
      %187 = arith.muli %185, %c8_i32 : i32
      %c0_i32_179 = arith.constant 0 : i32
      %188 = arith.addi %187, %c0_i32_179 : i32
      %189 = arith.index_cast %188 : i32 to index
      %190 = memref.load %arg1[%189] : memref<32xi32, #tpu.memory_space<smem>>
      %c0_i32_180 = arith.constant 0 : i32
      %c0_i32_181 = arith.constant 0 : i32
      %191 = tpu.memref_slice %arg5[%190, %c0_i32_181] : memref<64x128xf32, #tpu.memory_space<any>> -> memref<1x128xf32, #tpu.memory_space<any>>
      %c0_i32_182 = arith.constant 0 : i32
      %192 = tpu.memref_slice %arg9[%186, %c0_i32_179, %c0_i32_182] : memref<2x8x128xf32, #tpu.memory_space<vmem>> -> memref<1x1x128xf32, #tpu.memory_space<vmem>>
      %193 = tpu.memref_squeeze %192 : memref<1x1x128xf32, #tpu.memory_space<vmem>> -> memref<1x128xf32, #tpu.memory_space<vmem>>
      %194 = tpu.memref_slice %arg13[%c0_i32_180, %186] : memref<4x2x!tpu.dma_semaphore, #tpu.memory_space<semaphore_mem>> -> memref<1x1x!tpu.dma_semaphore, #tpu.memory_space<semaphore_mem>>
      %195 = tpu.memref_squeeze %194 : memref<1x1x!tpu.dma_semaphore, #tpu.memory_space<semaphore_mem>> -> memref<!tpu.dma_semaphore, #tpu.memory_space<semaphore_mem>>
      tpu.enqueue_dma source(%191 : memref<1x128xf32, #tpu.memory_space<any>>) target(%193 : memref<1x128xf32, #tpu.memory_space<vmem>>) target_semaphore(%195 : memref<!tpu.dma_semaphore, #tpu.memory_space<semaphore_mem>>)
      %196 = arith.index_cast %188 : i32 to index
      %197 = memref.load %arg2[%196] : memref<32xi32, #tpu.memory_space<smem>>
      %c1_i32_183 = arith.constant 1 : i32
      %c0_i32_184 = arith.constant 0 : i32
      %198 = tpu.memref_slice %arg6[%197, %c0_i32_184] : memref<16x128xf32, #tpu.memory_space<any>> -> memref<1x128xf32, #tpu.memory_space<any>>
      %c0_i32_185 = arith.constant 0 : i32
      %199 = tpu.memref_slice %arg10[%186, %c0_i32_179, %c0_i32_185] : memref<2x8x128xf32, #tpu.memory_space<vmem>> -> memref<1x1x128xf32, #tpu.memory_space<vmem>>
      %200 = tpu.memref_squeeze %199 : memref<1x1x128xf32, #tpu.memory_space<vmem>> -> memref<1x128xf32, #tpu.memory_space<vmem>>
      %201 = tpu.memref_slice %arg13[%c1_i32_183, %186] : memref<4x2x!tpu.dma_semaphore, #tpu.memory_space<semaphore_mem>> -> memref<1x1x!tpu.dma_semaphore, #tpu.memory_space<semaphore_mem>>
      %202 = tpu.memref_squeeze %201 : memref<1x1x!tpu.dma_semaphore, #tpu.memory_space<semaphore_mem>> -> memref<!tpu.dma_semaphore, #tpu.memory_space<semaphore_mem>>
      tpu.enqueue_dma source(%198 : memref<1x128xf32, #tpu.memory_space<any>>) target(%200 : memref<1x128xf32, #tpu.memory_space<vmem>>) target_semaphore(%202 : memref<!tpu.dma_semaphore, #tpu.memory_space<semaphore_mem>>)
      %203 = arith.index_cast %188 : i32 to index
      %204 = memref.load %arg3[%203] : memref<32xi32, #tpu.memory_space<smem>>
      %c2_i32_186 = arith.constant 2 : i32
      %c0_i32_187 = arith.constant 0 : i32
      %205 = tpu.memref_slice %arg5[%204, %c0_i32_187] : memref<64x128xf32, #tpu.memory_space<any>> -> memref<1x128xf32, #tpu.memory_space<any>>
      %c0_i32_188 = arith.constant 0 : i32
      %206 = tpu.memref_slice %arg11[%186, %c0_i32_179, %c0_i32_188] : memref<2x8x128xf32, #tpu.memory_space<vmem>> -> memref<1x1x128xf32, #tpu.memory_space<vmem>>
      %207 = tpu.memref_squeeze %206 : memref<1x1x128xf32, #tpu.memory_space<vmem>> -> memref<1x128xf32, #tpu.memory_space<vmem>>
      %208 = tpu.memref_slice %arg13[%c2_i32_186, %186] : memref<4x2x!tpu.dma_semaphore, #tpu.memory_space<semaphore_mem>> -> memref<1x1x!tpu.dma_semaphore, #tpu.memory_space<semaphore_mem>>
      %209 = tpu.memref_squeeze %208 : memref<1x1x!tpu.dma_semaphore, #tpu.memory_space<semaphore_mem>> -> memref<!tpu.dma_semaphore, #tpu.memory_space<semaphore_mem>>
      tpu.enqueue_dma source(%205 : memref<1x128xf32, #tpu.memory_space<any>>) target(%207 : memref<1x128xf32, #tpu.memory_space<vmem>>) target_semaphore(%209 : memref<!tpu.dma_semaphore, #tpu.memory_space<semaphore_mem>>)
      %210 = arith.index_cast %188 : i32 to index
      %211 = memref.load %arg4[%210] : memref<32xi32, #tpu.memory_space<smem>>
      %c3_i32_189 = arith.constant 3 : i32
      %c0_i32_190 = arith.constant 0 : i32
      %212 = tpu.memref_slice %arg5[%211, %c0_i32_190] : memref<64x128xf32, #tpu.memory_space<any>> -> memref<1x128xf32, #tpu.memory_space<any>>
      %c0_i32_191 = arith.constant 0 : i32
      %213 = tpu.memref_slice %arg12[%186, %c0_i32_179, %c0_i32_191] : memref<2x8x128xf32, #tpu.memory_space<vmem>> -> memref<1x1x128xf32, #tpu.memory_space<vmem>>
      %214 = tpu.memref_squeeze %213 : memref<1x1x128xf32, #tpu.memory_space<vmem>> -> memref<1x128xf32, #tpu.memory_space<vmem>>
      %215 = tpu.memref_slice %arg13[%c3_i32_189, %186] : memref<4x2x!tpu.dma_semaphore, #tpu.memory_space<semaphore_mem>> -> memref<1x1x!tpu.dma_semaphore, #tpu.memory_space<semaphore_mem>>
      %216 = tpu.memref_squeeze %215 : memref<1x1x!tpu.dma_semaphore, #tpu.memory_space<semaphore_mem>> -> memref<!tpu.dma_semaphore, #tpu.memory_space<semaphore_mem>>
      tpu.enqueue_dma source(%212 : memref<1x128xf32, #tpu.memory_space<any>>) target(%214 : memref<1x128xf32, #tpu.memory_space<vmem>>) target_semaphore(%216 : memref<!tpu.dma_semaphore, #tpu.memory_space<semaphore_mem>>)
      %c1_i32_192 = arith.constant 1 : i32
      %217 = arith.addi %187, %c1_i32_192 : i32
      %218 = arith.index_cast %217 : i32 to index
      %219 = memref.load %arg1[%218] : memref<32xi32, #tpu.memory_space<smem>>
      %c0_i32_193 = arith.constant 0 : i32
      %c0_i32_194 = arith.constant 0 : i32
      %220 = tpu.memref_slice %arg5[%219, %c0_i32_194] : memref<64x128xf32, #tpu.memory_space<any>> -> memref<1x128xf32, #tpu.memory_space<any>>
      %c0_i32_195 = arith.constant 0 : i32
      %221 = tpu.memref_slice %arg9[%186, %c1_i32_192, %c0_i32_195] : memref<2x8x128xf32, #tpu.memory_space<vmem>> -> memref<1x1x128xf32, #tpu.memory_space<vmem>>
      %222 = tpu.memref_squeeze %221 : memref<1x1x128xf32, #tpu.memory_space<vmem>> -> memref<1x128xf32, #tpu.memory_space<vmem>>
      %223 = tpu.memref_slice %arg13[%c0_i32_193, %186] : memref<4x2x!tpu.dma_semaphore, #tpu.memory_space<semaphore_mem>> -> memref<1x1x!tpu.dma_semaphore, #tpu.memory_space<semaphore_mem>>
      %224 = tpu.memref_squeeze %223 : memref<1x1x!tpu.dma_semaphore, #tpu.memory_space<semaphore_mem>> -> memref<!tpu.dma_semaphore, #tpu.memory_space<semaphore_mem>>
      tpu.enqueue_dma source(%220 : memref<1x128xf32, #tpu.memory_space<any>>) target(%222 : memref<1x128xf32, #tpu.memory_space<vmem>>) target_semaphore(%224 : memref<!tpu.dma_semaphore, #tpu.memory_space<semaphore_mem>>)
      %225 = arith.index_cast %217 : i32 to index
      %226 = memref.load %arg2[%225] : memref<32xi32, #tpu.memory_space<smem>>
      %c1_i32_196 = arith.constant 1 : i32
      %c0_i32_197 = arith.constant 0 : i32
      %227 = tpu.memref_slice %arg6[%226, %c0_i32_197] : memref<16x128xf32, #tpu.memory_space<any>> -> memref<1x128xf32, #tpu.memory_space<any>>
      %c0_i32_198 = arith.constant 0 : i32
      %228 = tpu.memref_slice %arg10[%186, %c1_i32_192, %c0_i32_198] : memref<2x8x128xf32, #tpu.memory_space<vmem>> -> memref<1x1x128xf32, #tpu.memory_space<vmem>>
      %229 = tpu.memref_squeeze %228 : memref<1x1x128xf32, #tpu.memory_space<vmem>> -> memref<1x128xf32, #tpu.memory_space<vmem>>
      %230 = tpu.memref_slice %arg13[%c1_i32_196, %186] : memref<4x2x!tpu.dma_semaphore, #tpu.memory_space<semaphore_mem>> -> memref<1x1x!tpu.dma_semaphore, #tpu.memory_space<semaphore_mem>>
      %231 = tpu.memref_squeeze %230 : memref<1x1x!tpu.dma_semaphore, #tpu.memory_space<semaphore_mem>> -> memref<!tpu.dma_semaphore, #tpu.memory_space<semaphore_mem>>
      tpu.enqueue_dma source(%227 : memref<1x128xf32, #tpu.memory_space<any>>) target(%229 : memref<1x128xf32, #tpu.memory_space<vmem>>) target_semaphore(%231 : memref<!tpu.dma_semaphore, #tpu.memory_space<semaphore_mem>>)
      %232 = arith.index_cast %217 : i32 to index
      %233 = memref.load %arg3[%232] : memref<32xi32, #tpu.memory_space<smem>>
      %c2_i32_199 = arith.constant 2 : i32
      %c0_i32_200 = arith.constant 0 : i32
      %234 = tpu.memref_slice %arg5[%233, %c0_i32_200] : memref<64x128xf32, #tpu.memory_space<any>> -> memref<1x128xf32, #tpu.memory_space<any>>
      %c0_i32_201 = arith.constant 0 : i32
      %235 = tpu.memref_slice %arg11[%186, %c1_i32_192, %c0_i32_201] : memref<2x8x128xf32, #tpu.memory_space<vmem>> -> memref<1x1x128xf32, #tpu.memory_space<vmem>>
      %236 = tpu.memref_squeeze %235 : memref<1x1x128xf32, #tpu.memory_space<vmem>> -> memref<1x128xf32, #tpu.memory_space<vmem>>
      %237 = tpu.memref_slice %arg13[%c2_i32_199, %186] : memref<4x2x!tpu.dma_semaphore, #tpu.memory_space<semaphore_mem>> -> memref<1x1x!tpu.dma_semaphore, #tpu.memory_space<semaphore_mem>>
      %238 = tpu.memref_squeeze %237 : memref<1x1x!tpu.dma_semaphore, #tpu.memory_space<semaphore_mem>> -> memref<!tpu.dma_semaphore, #tpu.memory_space<semaphore_mem>>
      tpu.enqueue_dma source(%234 : memref<1x128xf32, #tpu.memory_space<any>>) target(%236 : memref<1x128xf32, #tpu.memory_space<vmem>>) target_semaphore(%238 : memref<!tpu.dma_semaphore, #tpu.memory_space<semaphore_mem>>)
      %239 = arith.index_cast %217 : i32 to index
      %240 = memref.load %arg4[%239] : memref<32xi32, #tpu.memory_space<smem>>
      %c3_i32_202 = arith.constant 3 : i32
      %c0_i32_203 = arith.constant 0 : i32
      %241 = tpu.memref_slice %arg5[%240, %c0_i32_203] : memref<64x128xf32, #tpu.memory_space<any>> -> memref<1x128xf32, #tpu.memory_space<any>>
      %c0_i32_204 = arith.constant 0 : i32
      %242 = tpu.memref_slice %arg12[%186, %c1_i32_192, %c0_i32_204] : memref<2x8x128xf32, #tpu.memory_space<vmem>> -> memref<1x1x128xf32, #tpu.memory_space<vmem>>
      %243 = tpu.memref_squeeze %242 : memref<1x1x128xf32, #tpu.memory_space<vmem>> -> memref<1x128xf32, #tpu.memory_space<vmem>>
      %244 = tpu.memref_slice %arg13[%c3_i32_202, %186] : memref<4x2x!tpu.dma_semaphore, #tpu.memory_space<semaphore_mem>> -> memref<1x1x!tpu.dma_semaphore, #tpu.memory_space<semaphore_mem>>
      %245 = tpu.memref_squeeze %244 : memref<1x1x!tpu.dma_semaphore, #tpu.memory_space<semaphore_mem>> -> memref<!tpu.dma_semaphore, #tpu.memory_space<semaphore_mem>>
      tpu.enqueue_dma source(%241 : memref<1x128xf32, #tpu.memory_space<any>>) target(%243 : memref<1x128xf32, #tpu.memory_space<vmem>>) target_semaphore(%245 : memref<!tpu.dma_semaphore, #tpu.memory_space<semaphore_mem>>)
      %c2_i32_205 = arith.constant 2 : i32
      %246 = arith.addi %187, %c2_i32_205 : i32
      %247 = arith.index_cast %246 : i32 to index
      %248 = memref.load %arg1[%247] : memref<32xi32, #tpu.memory_space<smem>>
      %c0_i32_206 = arith.constant 0 : i32
      %c0_i32_207 = arith.constant 0 : i32
      %249 = tpu.memref_slice %arg5[%248, %c0_i32_207] : memref<64x128xf32, #tpu.memory_space<any>> -> memref<1x128xf32, #tpu.memory_space<any>>
      %c0_i32_208 = arith.constant 0 : i32
      %250 = tpu.memref_slice %arg9[%186, %c2_i32_205, %c0_i32_208] : memref<2x8x128xf32, #tpu.memory_space<vmem>> -> memref<1x1x128xf32, #tpu.memory_space<vmem>>
      %251 = tpu.memref_squeeze %250 : memref<1x1x128xf32, #tpu.memory_space<vmem>> -> memref<1x128xf32, #tpu.memory_space<vmem>>
      %252 = tpu.memref_slice %arg13[%c0_i32_206, %186] : memref<4x2x!tpu.dma_semaphore, #tpu.memory_space<semaphore_mem>> -> memref<1x1x!tpu.dma_semaphore, #tpu.memory_space<semaphore_mem>>
      %253 = tpu.memref_squeeze %252 : memref<1x1x!tpu.dma_semaphore, #tpu.memory_space<semaphore_mem>> -> memref<!tpu.dma_semaphore, #tpu.memory_space<semaphore_mem>>
      tpu.enqueue_dma source(%249 : memref<1x128xf32, #tpu.memory_space<any>>) target(%251 : memref<1x128xf32, #tpu.memory_space<vmem>>) target_semaphore(%253 : memref<!tpu.dma_semaphore, #tpu.memory_space<semaphore_mem>>)
      %254 = arith.index_cast %246 : i32 to index
      %255 = memref.load %arg2[%254] : memref<32xi32, #tpu.memory_space<smem>>
      %c1_i32_209 = arith.constant 1 : i32
      %c0_i32_210 = arith.constant 0 : i32
      %256 = tpu.memref_slice %arg6[%255, %c0_i32_210] : memref<16x128xf32, #tpu.memory_space<any>> -> memref<1x128xf32, #tpu.memory_space<any>>
      %c0_i32_211 = arith.constant 0 : i32
      %257 = tpu.memref_slice %arg10[%186, %c2_i32_205, %c0_i32_211] : memref<2x8x128xf32, #tpu.memory_space<vmem>> -> memref<1x1x128xf32, #tpu.memory_space<vmem>>
      %258 = tpu.memref_squeeze %257 : memref<1x1x128xf32, #tpu.memory_space<vmem>> -> memref<1x128xf32, #tpu.memory_space<vmem>>
      %259 = tpu.memref_slice %arg13[%c1_i32_209, %186] : memref<4x2x!tpu.dma_semaphore, #tpu.memory_space<semaphore_mem>> -> memref<1x1x!tpu.dma_semaphore, #tpu.memory_space<semaphore_mem>>
      %260 = tpu.memref_squeeze %259 : memref<1x1x!tpu.dma_semaphore, #tpu.memory_space<semaphore_mem>> -> memref<!tpu.dma_semaphore, #tpu.memory_space<semaphore_mem>>
      tpu.enqueue_dma source(%256 : memref<1x128xf32, #tpu.memory_space<any>>) target(%258 : memref<1x128xf32, #tpu.memory_space<vmem>>) target_semaphore(%260 : memref<!tpu.dma_semaphore, #tpu.memory_space<semaphore_mem>>)
      %261 = arith.index_cast %246 : i32 to index
      %262 = memref.load %arg3[%261] : memref<32xi32, #tpu.memory_space<smem>>
      %c2_i32_212 = arith.constant 2 : i32
      %c0_i32_213 = arith.constant 0 : i32
      %263 = tpu.memref_slice %arg5[%262, %c0_i32_213] : memref<64x128xf32, #tpu.memory_space<any>> -> memref<1x128xf32, #tpu.memory_space<any>>
      %c0_i32_214 = arith.constant 0 : i32
      %264 = tpu.memref_slice %arg11[%186, %c2_i32_205, %c0_i32_214] : memref<2x8x128xf32, #tpu.memory_space<vmem>> -> memref<1x1x128xf32, #tpu.memory_space<vmem>>
      %265 = tpu.memref_squeeze %264 : memref<1x1x128xf32, #tpu.memory_space<vmem>> -> memref<1x128xf32, #tpu.memory_space<vmem>>
      %266 = tpu.memref_slice %arg13[%c2_i32_212, %186] : memref<4x2x!tpu.dma_semaphore, #tpu.memory_space<semaphore_mem>> -> memref<1x1x!tpu.dma_semaphore, #tpu.memory_space<semaphore_mem>>
      %267 = tpu.memref_squeeze %266 : memref<1x1x!tpu.dma_semaphore, #tpu.memory_space<semaphore_mem>> -> memref<!tpu.dma_semaphore, #tpu.memory_space<semaphore_mem>>
      tpu.enqueue_dma source(%263 : memref<1x128xf32, #tpu.memory_space<any>>) target(%265 : memref<1x128xf32, #tpu.memory_space<vmem>>) target_semaphore(%267 : memref<!tpu.dma_semaphore, #tpu.memory_space<semaphore_mem>>)
      %268 = arith.index_cast %246 : i32 to index
      %269 = memref.load %arg4[%268] : memref<32xi32, #tpu.memory_space<smem>>
      %c3_i32_215 = arith.constant 3 : i32
      %c0_i32_216 = arith.constant 0 : i32
      %270 = tpu.memref_slice %arg5[%269, %c0_i32_216] : memref<64x128xf32, #tpu.memory_space<any>> -> memref<1x128xf32, #tpu.memory_space<any>>
      %c0_i32_217 = arith.constant 0 : i32
      %271 = tpu.memref_slice %arg12[%186, %c2_i32_205, %c0_i32_217] : memref<2x8x128xf32, #tpu.memory_space<vmem>> -> memref<1x1x128xf32, #tpu.memory_space<vmem>>
      %272 = tpu.memref_squeeze %271 : memref<1x1x128xf32, #tpu.memory_space<vmem>> -> memref<1x128xf32, #tpu.memory_space<vmem>>
      %273 = tpu.memref_slice %arg13[%c3_i32_215, %186] : memref<4x2x!tpu.dma_semaphore, #tpu.memory_space<semaphore_mem>> -> memref<1x1x!tpu.dma_semaphore, #tpu.memory_space<semaphore_mem>>
      %274 = tpu.memref_squeeze %273 : memref<1x1x!tpu.dma_semaphore, #tpu.memory_space<semaphore_mem>> -> memref<!tpu.dma_semaphore, #tpu.memory_space<semaphore_mem>>
      tpu.enqueue_dma source(%270 : memref<1x128xf32, #tpu.memory_space<any>>) target(%272 : memref<1x128xf32, #tpu.memory_space<vmem>>) target_semaphore(%274 : memref<!tpu.dma_semaphore, #tpu.memory_space<semaphore_mem>>)
      %c3_i32_218 = arith.constant 3 : i32
      %275 = arith.addi %187, %c3_i32_218 : i32
      %276 = arith.index_cast %275 : i32 to index
      %277 = memref.load %arg1[%276] : memref<32xi32, #tpu.memory_space<smem>>
      %c0_i32_219 = arith.constant 0 : i32
      %c0_i32_220 = arith.constant 0 : i32
      %278 = tpu.memref_slice %arg5[%277, %c0_i32_220] : memref<64x128xf32, #tpu.memory_space<any>> -> memref<1x128xf32, #tpu.memory_space<any>>
      %c0_i32_221 = arith.constant 0 : i32
      %279 = tpu.memref_slice %arg9[%186, %c3_i32_218, %c0_i32_221] : memref<2x8x128xf32, #tpu.memory_space<vmem>> -> memref<1x1x128xf32, #tpu.memory_space<vmem>>
      %280 = tpu.memref_squeeze %279 : memref<1x1x128xf32, #tpu.memory_space<vmem>> -> memref<1x128xf32, #tpu.memory_space<vmem>>
      %281 = tpu.memref_slice %arg13[%c0_i32_219, %186] : memref<4x2x!tpu.dma_semaphore, #tpu.memory_space<semaphore_mem>> -> memref<1x1x!tpu.dma_semaphore, #tpu.memory_space<semaphore_mem>>
      %282 = tpu.memref_squeeze %281 : memref<1x1x!tpu.dma_semaphore, #tpu.memory_space<semaphore_mem>> -> memref<!tpu.dma_semaphore, #tpu.memory_space<semaphore_mem>>
      tpu.enqueue_dma source(%278 : memref<1x128xf32, #tpu.memory_space<any>>) target(%280 : memref<1x128xf32, #tpu.memory_space<vmem>>) target_semaphore(%282 : memref<!tpu.dma_semaphore, #tpu.memory_space<semaphore_mem>>)
      %283 = arith.index_cast %275 : i32 to index
      %284 = memref.load %arg2[%283] : memref<32xi32, #tpu.memory_space<smem>>
      %c1_i32_222 = arith.constant 1 : i32
      %c0_i32_223 = arith.constant 0 : i32
      %285 = tpu.memref_slice %arg6[%284, %c0_i32_223] : memref<16x128xf32, #tpu.memory_space<any>> -> memref<1x128xf32, #tpu.memory_space<any>>
      %c0_i32_224 = arith.constant 0 : i32
      %286 = tpu.memref_slice %arg10[%186, %c3_i32_218, %c0_i32_224] : memref<2x8x128xf32, #tpu.memory_space<vmem>> -> memref<1x1x128xf32, #tpu.memory_space<vmem>>
      %287 = tpu.memref_squeeze %286 : memref<1x1x128xf32, #tpu.memory_space<vmem>> -> memref<1x128xf32, #tpu.memory_space<vmem>>
      %288 = tpu.memref_slice %arg13[%c1_i32_222, %186] : memref<4x2x!tpu.dma_semaphore, #tpu.memory_space<semaphore_mem>> -> memref<1x1x!tpu.dma_semaphore, #tpu.memory_space<semaphore_mem>>
      %289 = tpu.memref_squeeze %288 : memref<1x1x!tpu.dma_semaphore, #tpu.memory_space<semaphore_mem>> -> memref<!tpu.dma_semaphore, #tpu.memory_space<semaphore_mem>>
      tpu.enqueue_dma source(%285 : memref<1x128xf32, #tpu.memory_space<any>>) target(%287 : memref<1x128xf32, #tpu.memory_space<vmem>>) target_semaphore(%289 : memref<!tpu.dma_semaphore, #tpu.memory_space<semaphore_mem>>)
      %290 = arith.index_cast %275 : i32 to index
      %291 = memref.load %arg3[%290] : memref<32xi32, #tpu.memory_space<smem>>
      %c2_i32_225 = arith.constant 2 : i32
      %c0_i32_226 = arith.constant 0 : i32
      %292 = tpu.memref_slice %arg5[%291, %c0_i32_226] : memref<64x128xf32, #tpu.memory_space<any>> -> memref<1x128xf32, #tpu.memory_space<any>>
      %c0_i32_227 = arith.constant 0 : i32
      %293 = tpu.memref_slice %arg11[%186, %c3_i32_218, %c0_i32_227] : memref<2x8x128xf32, #tpu.memory_space<vmem>> -> memref<1x1x128xf32, #tpu.memory_space<vmem>>
      %294 = tpu.memref_squeeze %293 : memref<1x1x128xf32, #tpu.memory_space<vmem>> -> memref<1x128xf32, #tpu.memory_space<vmem>>
      %295 = tpu.memref_slice %arg13[%c2_i32_225, %186] : memref<4x2x!tpu.dma_semaphore, #tpu.memory_space<semaphore_mem>> -> memref<1x1x!tpu.dma_semaphore, #tpu.memory_space<semaphore_mem>>
      %296 = tpu.memref_squeeze %295 : memref<1x1x!tpu.dma_semaphore, #tpu.memory_space<semaphore_mem>> -> memref<!tpu.dma_semaphore, #tpu.memory_space<semaphore_mem>>
      tpu.enqueue_dma source(%292 : memref<1x128xf32, #tpu.memory_space<any>>) target(%294 : memref<1x128xf32, #tpu.memory_space<vmem>>) target_semaphore(%296 : memref<!tpu.dma_semaphore, #tpu.memory_space<semaphore_mem>>)
      %297 = arith.index_cast %275 : i32 to index
      %298 = memref.load %arg4[%297] : memref<32xi32, #tpu.memory_space<smem>>
      %c3_i32_228 = arith.constant 3 : i32
      %c0_i32_229 = arith.constant 0 : i32
      %299 = tpu.memref_slice %arg5[%298, %c0_i32_229] : memref<64x128xf32, #tpu.memory_space<any>> -> memref<1x128xf32, #tpu.memory_space<any>>
      %c0_i32_230 = arith.constant 0 : i32
      %300 = tpu.memref_slice %arg12[%186, %c3_i32_218, %c0_i32_230] : memref<2x8x128xf32, #tpu.memory_space<vmem>> -> memref<1x1x128xf32, #tpu.memory_space<vmem>>
      %301 = tpu.memref_squeeze %300 : memref<1x1x128xf32, #tpu.memory_space<vmem>> -> memref<1x128xf32, #tpu.memory_space<vmem>>
      %302 = tpu.memref_slice %arg13[%c3_i32_228, %186] : memref<4x2x!tpu.dma_semaphore, #tpu.memory_space<semaphore_mem>> -> memref<1x1x!tpu.dma_semaphore, #tpu.memory_space<semaphore_mem>>
      %303 = tpu.memref_squeeze %302 : memref<1x1x!tpu.dma_semaphore, #tpu.memory_space<semaphore_mem>> -> memref<!tpu.dma_semaphore, #tpu.memory_space<semaphore_mem>>
      tpu.enqueue_dma source(%299 : memref<1x128xf32, #tpu.memory_space<any>>) target(%301 : memref<1x128xf32, #tpu.memory_space<vmem>>) target_semaphore(%303 : memref<!tpu.dma_semaphore, #tpu.memory_space<semaphore_mem>>)
      %c4_i32_231 = arith.constant 4 : i32
      %304 = arith.addi %187, %c4_i32_231 : i32
      %305 = arith.index_cast %304 : i32 to index
      %306 = memref.load %arg1[%305] : memref<32xi32, #tpu.memory_space<smem>>
      %c0_i32_232 = arith.constant 0 : i32
      %c0_i32_233 = arith.constant 0 : i32
      %307 = tpu.memref_slice %arg5[%306, %c0_i32_233] : memref<64x128xf32, #tpu.memory_space<any>> -> memref<1x128xf32, #tpu.memory_space<any>>
      %c0_i32_234 = arith.constant 0 : i32
      %308 = tpu.memref_slice %arg9[%186, %c4_i32_231, %c0_i32_234] : memref<2x8x128xf32, #tpu.memory_space<vmem>> -> memref<1x1x128xf32, #tpu.memory_space<vmem>>
      %309 = tpu.memref_squeeze %308 : memref<1x1x128xf32, #tpu.memory_space<vmem>> -> memref<1x128xf32, #tpu.memory_space<vmem>>
      %310 = tpu.memref_slice %arg13[%c0_i32_232, %186] : memref<4x2x!tpu.dma_semaphore, #tpu.memory_space<semaphore_mem>> -> memref<1x1x!tpu.dma_semaphore, #tpu.memory_space<semaphore_mem>>
      %311 = tpu.memref_squeeze %310 : memref<1x1x!tpu.dma_semaphore, #tpu.memory_space<semaphore_mem>> -> memref<!tpu.dma_semaphore, #tpu.memory_space<semaphore_mem>>
      tpu.enqueue_dma source(%307 : memref<1x128xf32, #tpu.memory_space<any>>) target(%309 : memref<1x128xf32, #tpu.memory_space<vmem>>) target_semaphore(%311 : memref<!tpu.dma_semaphore, #tpu.memory_space<semaphore_mem>>)
      %312 = arith.index_cast %304 : i32 to index
      %313 = memref.load %arg2[%312] : memref<32xi32, #tpu.memory_space<smem>>
      %c1_i32_235 = arith.constant 1 : i32
      %c0_i32_236 = arith.constant 0 : i32
      %314 = tpu.memref_slice %arg6[%313, %c0_i32_236] : memref<16x128xf32, #tpu.memory_space<any>> -> memref<1x128xf32, #tpu.memory_space<any>>
      %c0_i32_237 = arith.constant 0 : i32
      %315 = tpu.memref_slice %arg10[%186, %c4_i32_231, %c0_i32_237] : memref<2x8x128xf32, #tpu.memory_space<vmem>> -> memref<1x1x128xf32, #tpu.memory_space<vmem>>
      %316 = tpu.memref_squeeze %315 : memref<1x1x128xf32, #tpu.memory_space<vmem>> -> memref<1x128xf32, #tpu.memory_space<vmem>>
      %317 = tpu.memref_slice %arg13[%c1_i32_235, %186] : memref<4x2x!tpu.dma_semaphore, #tpu.memory_space<semaphore_mem>> -> memref<1x1x!tpu.dma_semaphore, #tpu.memory_space<semaphore_mem>>
      %318 = tpu.memref_squeeze %317 : memref<1x1x!tpu.dma_semaphore, #tpu.memory_space<semaphore_mem>> -> memref<!tpu.dma_semaphore, #tpu.memory_space<semaphore_mem>>
      tpu.enqueue_dma source(%314 : memref<1x128xf32, #tpu.memory_space<any>>) target(%316 : memref<1x128xf32, #tpu.memory_space<vmem>>) target_semaphore(%318 : memref<!tpu.dma_semaphore, #tpu.memory_space<semaphore_mem>>)
      %319 = arith.index_cast %304 : i32 to index
      %320 = memref.load %arg3[%319] : memref<32xi32, #tpu.memory_space<smem>>
      %c2_i32_238 = arith.constant 2 : i32
      %c0_i32_239 = arith.constant 0 : i32
      %321 = tpu.memref_slice %arg5[%320, %c0_i32_239] : memref<64x128xf32, #tpu.memory_space<any>> -> memref<1x128xf32, #tpu.memory_space<any>>
      %c0_i32_240 = arith.constant 0 : i32
      %322 = tpu.memref_slice %arg11[%186, %c4_i32_231, %c0_i32_240] : memref<2x8x128xf32, #tpu.memory_space<vmem>> -> memref<1x1x128xf32, #tpu.memory_space<vmem>>
      %323 = tpu.memref_squeeze %322 : memref<1x1x128xf32, #tpu.memory_space<vmem>> -> memref<1x128xf32, #tpu.memory_space<vmem>>
      %324 = tpu.memref_slice %arg13[%c2_i32_238, %186] : memref<4x2x!tpu.dma_semaphore, #tpu.memory_space<semaphore_mem>> -> memref<1x1x!tpu.dma_semaphore, #tpu.memory_space<semaphore_mem>>
      %325 = tpu.memref_squeeze %324 : memref<1x1x!tpu.dma_semaphore, #tpu.memory_space<semaphore_mem>> -> memref<!tpu.dma_semaphore, #tpu.memory_space<semaphore_mem>>
      tpu.enqueue_dma source(%321 : memref<1x128xf32, #tpu.memory_space<any>>) target(%323 : memref<1x128xf32, #tpu.memory_space<vmem>>) target_semaphore(%325 : memref<!tpu.dma_semaphore, #tpu.memory_space<semaphore_mem>>)
      %326 = arith.index_cast %304 : i32 to index
      %327 = memref.load %arg4[%326] : memref<32xi32, #tpu.memory_space<smem>>
      %c3_i32_241 = arith.constant 3 : i32
      %c0_i32_242 = arith.constant 0 : i32
      %328 = tpu.memref_slice %arg5[%327, %c0_i32_242] : memref<64x128xf32, #tpu.memory_space<any>> -> memref<1x128xf32, #tpu.memory_space<any>>
      %c0_i32_243 = arith.constant 0 : i32
      %329 = tpu.memref_slice %arg12[%186, %c4_i32_231, %c0_i32_243] : memref<2x8x128xf32, #tpu.memory_space<vmem>> -> memref<1x1x128xf32, #tpu.memory_space<vmem>>
      %330 = tpu.memref_squeeze %329 : memref<1x1x128xf32, #tpu.memory_space<vmem>> -> memref<1x128xf32, #tpu.memory_space<vmem>>
      %331 = tpu.memref_slice %arg13[%c3_i32_241, %186] : memref<4x2x!tpu.dma_semaphore, #tpu.memory_space<semaphore_mem>> -> memref<1x1x!tpu.dma_semaphore, #tpu.memory_space<semaphore_mem>>
      %332 = tpu.memref_squeeze %331 : memref<1x1x!tpu.dma_semaphore, #tpu.memory_space<semaphore_mem>> -> memref<!tpu.dma_semaphore, #tpu.memory_space<semaphore_mem>>
      tpu.enqueue_dma source(%328 : memref<1x128xf32, #tpu.memory_space<any>>) target(%330 : memref<1x128xf32, #tpu.memory_space<vmem>>) target_semaphore(%332 : memref<!tpu.dma_semaphore, #tpu.memory_space<semaphore_mem>>)
      %c5_i32_244 = arith.constant 5 : i32
      %333 = arith.addi %187, %c5_i32_244 : i32
      %334 = arith.index_cast %333 : i32 to index
      %335 = memref.load %arg1[%334] : memref<32xi32, #tpu.memory_space<smem>>
      %c0_i32_245 = arith.constant 0 : i32
      %c0_i32_246 = arith.constant 0 : i32
      %336 = tpu.memref_slice %arg5[%335, %c0_i32_246] : memref<64x128xf32, #tpu.memory_space<any>> -> memref<1x128xf32, #tpu.memory_space<any>>
      %c0_i32_247 = arith.constant 0 : i32
      %337 = tpu.memref_slice %arg9[%186, %c5_i32_244, %c0_i32_247] : memref<2x8x128xf32, #tpu.memory_space<vmem>> -> memref<1x1x128xf32, #tpu.memory_space<vmem>>
      %338 = tpu.memref_squeeze %337 : memref<1x1x128xf32, #tpu.memory_space<vmem>> -> memref<1x128xf32, #tpu.memory_space<vmem>>
      %339 = tpu.memref_slice %arg13[%c0_i32_245, %186] : memref<4x2x!tpu.dma_semaphore, #tpu.memory_space<semaphore_mem>> -> memref<1x1x!tpu.dma_semaphore, #tpu.memory_space<semaphore_mem>>
      %340 = tpu.memref_squeeze %339 : memref<1x1x!tpu.dma_semaphore, #tpu.memory_space<semaphore_mem>> -> memref<!tpu.dma_semaphore, #tpu.memory_space<semaphore_mem>>
      tpu.enqueue_dma source(%336 : memref<1x128xf32, #tpu.memory_space<any>>) target(%338 : memref<1x128xf32, #tpu.memory_space<vmem>>) target_semaphore(%340 : memref<!tpu.dma_semaphore, #tpu.memory_space<semaphore_mem>>)
      %341 = arith.index_cast %333 : i32 to index
      %342 = memref.load %arg2[%341] : memref<32xi32, #tpu.memory_space<smem>>
      %c1_i32_248 = arith.constant 1 : i32
      %c0_i32_249 = arith.constant 0 : i32
      %343 = tpu.memref_slice %arg6[%342, %c0_i32_249] : memref<16x128xf32, #tpu.memory_space<any>> -> memref<1x128xf32, #tpu.memory_space<any>>
      %c0_i32_250 = arith.constant 0 : i32
      %344 = tpu.memref_slice %arg10[%186, %c5_i32_244, %c0_i32_250] : memref<2x8x128xf32, #tpu.memory_space<vmem>> -> memref<1x1x128xf32, #tpu.memory_space<vmem>>
      %345 = tpu.memref_squeeze %344 : memref<1x1x128xf32, #tpu.memory_space<vmem>> -> memref<1x128xf32, #tpu.memory_space<vmem>>
      %346 = tpu.memref_slice %arg13[%c1_i32_248, %186] : memref<4x2x!tpu.dma_semaphore, #tpu.memory_space<semaphore_mem>> -> memref<1x1x!tpu.dma_semaphore, #tpu.memory_space<semaphore_mem>>
      %347 = tpu.memref_squeeze %346 : memref<1x1x!tpu.dma_semaphore, #tpu.memory_space<semaphore_mem>> -> memref<!tpu.dma_semaphore, #tpu.memory_space<semaphore_mem>>
      tpu.enqueue_dma source(%343 : memref<1x128xf32, #tpu.memory_space<any>>) target(%345 : memref<1x128xf32, #tpu.memory_space<vmem>>) target_semaphore(%347 : memref<!tpu.dma_semaphore, #tpu.memory_space<semaphore_mem>>)
      %348 = arith.index_cast %333 : i32 to index
      %349 = memref.load %arg3[%348] : memref<32xi32, #tpu.memory_space<smem>>
      %c2_i32_251 = arith.constant 2 : i32
      %c0_i32_252 = arith.constant 0 : i32
      %350 = tpu.memref_slice %arg5[%349, %c0_i32_252] : memref<64x128xf32, #tpu.memory_space<any>> -> memref<1x128xf32, #tpu.memory_space<any>>
      %c0_i32_253 = arith.constant 0 : i32
      %351 = tpu.memref_slice %arg11[%186, %c5_i32_244, %c0_i32_253] : memref<2x8x128xf32, #tpu.memory_space<vmem>> -> memref<1x1x128xf32, #tpu.memory_space<vmem>>
      %352 = tpu.memref_squeeze %351 : memref<1x1x128xf32, #tpu.memory_space<vmem>> -> memref<1x128xf32, #tpu.memory_space<vmem>>
      %353 = tpu.memref_slice %arg13[%c2_i32_251, %186] : memref<4x2x!tpu.dma_semaphore, #tpu.memory_space<semaphore_mem>> -> memref<1x1x!tpu.dma_semaphore, #tpu.memory_space<semaphore_mem>>
      %354 = tpu.memref_squeeze %353 : memref<1x1x!tpu.dma_semaphore, #tpu.memory_space<semaphore_mem>> -> memref<!tpu.dma_semaphore, #tpu.memory_space<semaphore_mem>>
      tpu.enqueue_dma source(%350 : memref<1x128xf32, #tpu.memory_space<any>>) target(%352 : memref<1x128xf32, #tpu.memory_space<vmem>>) target_semaphore(%354 : memref<!tpu.dma_semaphore, #tpu.memory_space<semaphore_mem>>)
      %355 = arith.index_cast %333 : i32 to index
      %356 = memref.load %arg4[%355] : memref<32xi32, #tpu.memory_space<smem>>
      %c3_i32_254 = arith.constant 3 : i32
      %c0_i32_255 = arith.constant 0 : i32
      %357 = tpu.memref_slice %arg5[%356, %c0_i32_255] : memref<64x128xf32, #tpu.memory_space<any>> -> memref<1x128xf32, #tpu.memory_space<any>>
      %c0_i32_256 = arith.constant 0 : i32
      %358 = tpu.memref_slice %arg12[%186, %c5_i32_244, %c0_i32_256] : memref<2x8x128xf32, #tpu.memory_space<vmem>> -> memref<1x1x128xf32, #tpu.memory_space<vmem>>
      %359 = tpu.memref_squeeze %358 : memref<1x1x128xf32, #tpu.memory_space<vmem>> -> memref<1x128xf32, #tpu.memory_space<vmem>>
      %360 = tpu.memref_slice %arg13[%c3_i32_254, %186] : memref<4x2x!tpu.dma_semaphore, #tpu.memory_space<semaphore_mem>> -> memref<1x1x!tpu.dma_semaphore, #tpu.memory_space<semaphore_mem>>
      %361 = tpu.memref_squeeze %360 : memref<1x1x!tpu.dma_semaphore, #tpu.memory_space<semaphore_mem>> -> memref<!tpu.dma_semaphore, #tpu.memory_space<semaphore_mem>>
      tpu.enqueue_dma source(%357 : memref<1x128xf32, #tpu.memory_space<any>>) target(%359 : memref<1x128xf32, #tpu.memory_space<vmem>>) target_semaphore(%361 : memref<!tpu.dma_semaphore, #tpu.memory_space<semaphore_mem>>)
      %c6_i32_257 = arith.constant 6 : i32
      %362 = arith.addi %187, %c6_i32_257 : i32
      %363 = arith.index_cast %362 : i32 to index
      %364 = memref.load %arg1[%363] : memref<32xi32, #tpu.memory_space<smem>>
      %c0_i32_258 = arith.constant 0 : i32
      %c0_i32_259 = arith.constant 0 : i32
      %365 = tpu.memref_slice %arg5[%364, %c0_i32_259] : memref<64x128xf32, #tpu.memory_space<any>> -> memref<1x128xf32, #tpu.memory_space<any>>
      %c0_i32_260 = arith.constant 0 : i32
      %366 = tpu.memref_slice %arg9[%186, %c6_i32_257, %c0_i32_260] : memref<2x8x128xf32, #tpu.memory_space<vmem>> -> memref<1x1x128xf32, #tpu.memory_space<vmem>>
      %367 = tpu.memref_squeeze %366 : memref<1x1x128xf32, #tpu.memory_space<vmem>> -> memref<1x128xf32, #tpu.memory_space<vmem>>
      %368 = tpu.memref_slice %arg13[%c0_i32_258, %186] : memref<4x2x!tpu.dma_semaphore, #tpu.memory_space<semaphore_mem>> -> memref<1x1x!tpu.dma_semaphore, #tpu.memory_space<semaphore_mem>>
      %369 = tpu.memref_squeeze %368 : memref<1x1x!tpu.dma_semaphore, #tpu.memory_space<semaphore_mem>> -> memref<!tpu.dma_semaphore, #tpu.memory_space<semaphore_mem>>
      tpu.enqueue_dma source(%365 : memref<1x128xf32, #tpu.memory_space<any>>) target(%367 : memref<1x128xf32, #tpu.memory_space<vmem>>) target_semaphore(%369 : memref<!tpu.dma_semaphore, #tpu.memory_space<semaphore_mem>>)
      %370 = arith.index_cast %362 : i32 to index
      %371 = memref.load %arg2[%370] : memref<32xi32, #tpu.memory_space<smem>>
      %c1_i32_261 = arith.constant 1 : i32
      %c0_i32_262 = arith.constant 0 : i32
      %372 = tpu.memref_slice %arg6[%371, %c0_i32_262] : memref<16x128xf32, #tpu.memory_space<any>> -> memref<1x128xf32, #tpu.memory_space<any>>
      %c0_i32_263 = arith.constant 0 : i32
      %373 = tpu.memref_slice %arg10[%186, %c6_i32_257, %c0_i32_263] : memref<2x8x128xf32, #tpu.memory_space<vmem>> -> memref<1x1x128xf32, #tpu.memory_space<vmem>>
      %374 = tpu.memref_squeeze %373 : memref<1x1x128xf32, #tpu.memory_space<vmem>> -> memref<1x128xf32, #tpu.memory_space<vmem>>
      %375 = tpu.memref_slice %arg13[%c1_i32_261, %186] : memref<4x2x!tpu.dma_semaphore, #tpu.memory_space<semaphore_mem>> -> memref<1x1x!tpu.dma_semaphore, #tpu.memory_space<semaphore_mem>>
      %376 = tpu.memref_squeeze %375 : memref<1x1x!tpu.dma_semaphore, #tpu.memory_space<semaphore_mem>> -> memref<!tpu.dma_semaphore, #tpu.memory_space<semaphore_mem>>
      tpu.enqueue_dma source(%372 : memref<1x128xf32, #tpu.memory_space<any>>) target(%374 : memref<1x128xf32, #tpu.memory_space<vmem>>) target_semaphore(%376 : memref<!tpu.dma_semaphore, #tpu.memory_space<semaphore_mem>>)
      %377 = arith.index_cast %362 : i32 to index
      %378 = memref.load %arg3[%377] : memref<32xi32, #tpu.memory_space<smem>>
      %c2_i32_264 = arith.constant 2 : i32
      %c0_i32_265 = arith.constant 0 : i32
      %379 = tpu.memref_slice %arg5[%378, %c0_i32_265] : memref<64x128xf32, #tpu.memory_space<any>> -> memref<1x128xf32, #tpu.memory_space<any>>
      %c0_i32_266 = arith.constant 0 : i32
      %380 = tpu.memref_slice %arg11[%186, %c6_i32_257, %c0_i32_266] : memref<2x8x128xf32, #tpu.memory_space<vmem>> -> memref<1x1x128xf32, #tpu.memory_space<vmem>>
      %381 = tpu.memref_squeeze %380 : memref<1x1x128xf32, #tpu.memory_space<vmem>> -> memref<1x128xf32, #tpu.memory_space<vmem>>
      %382 = tpu.memref_slice %arg13[%c2_i32_264, %186] : memref<4x2x!tpu.dma_semaphore, #tpu.memory_space<semaphore_mem>> -> memref<1x1x!tpu.dma_semaphore, #tpu.memory_space<semaphore_mem>>
      %383 = tpu.memref_squeeze %382 : memref<1x1x!tpu.dma_semaphore, #tpu.memory_space<semaphore_mem>> -> memref<!tpu.dma_semaphore, #tpu.memory_space<semaphore_mem>>
      tpu.enqueue_dma source(%379 : memref<1x128xf32, #tpu.memory_space<any>>) target(%381 : memref<1x128xf32, #tpu.memory_space<vmem>>) target_semaphore(%383 : memref<!tpu.dma_semaphore, #tpu.memory_space<semaphore_mem>>)
      %384 = arith.index_cast %362 : i32 to index
      %385 = memref.load %arg4[%384] : memref<32xi32, #tpu.memory_space<smem>>
      %c3_i32_267 = arith.constant 3 : i32
      %c0_i32_268 = arith.constant 0 : i32
      %386 = tpu.memref_slice %arg5[%385, %c0_i32_268] : memref<64x128xf32, #tpu.memory_space<any>> -> memref<1x128xf32, #tpu.memory_space<any>>
      %c0_i32_269 = arith.constant 0 : i32
      %387 = tpu.memref_slice %arg12[%186, %c6_i32_257, %c0_i32_269] : memref<2x8x128xf32, #tpu.memory_space<vmem>> -> memref<1x1x128xf32, #tpu.memory_space<vmem>>
      %388 = tpu.memref_squeeze %387 : memref<1x1x128xf32, #tpu.memory_space<vmem>> -> memref<1x128xf32, #tpu.memory_space<vmem>>
      %389 = tpu.memref_slice %arg13[%c3_i32_267, %186] : memref<4x2x!tpu.dma_semaphore, #tpu.memory_space<semaphore_mem>> -> memref<1x1x!tpu.dma_semaphore, #tpu.memory_space<semaphore_mem>>
      %390 = tpu.memref_squeeze %389 : memref<1x1x!tpu.dma_semaphore, #tpu.memory_space<semaphore_mem>> -> memref<!tpu.dma_semaphore, #tpu.memory_space<semaphore_mem>>
      tpu.enqueue_dma source(%386 : memref<1x128xf32, #tpu.memory_space<any>>) target(%388 : memref<1x128xf32, #tpu.memory_space<vmem>>) target_semaphore(%390 : memref<!tpu.dma_semaphore, #tpu.memory_space<semaphore_mem>>)
      %c7_i32_270 = arith.constant 7 : i32
      %391 = arith.addi %187, %c7_i32_270 : i32
      %392 = arith.index_cast %391 : i32 to index
      %393 = memref.load %arg1[%392] : memref<32xi32, #tpu.memory_space<smem>>
      %c0_i32_271 = arith.constant 0 : i32
      %c0_i32_272 = arith.constant 0 : i32
      %394 = tpu.memref_slice %arg5[%393, %c0_i32_272] : memref<64x128xf32, #tpu.memory_space<any>> -> memref<1x128xf32, #tpu.memory_space<any>>
      %c0_i32_273 = arith.constant 0 : i32
      %395 = tpu.memref_slice %arg9[%186, %c7_i32_270, %c0_i32_273] : memref<2x8x128xf32, #tpu.memory_space<vmem>> -> memref<1x1x128xf32, #tpu.memory_space<vmem>>
      %396 = tpu.memref_squeeze %395 : memref<1x1x128xf32, #tpu.memory_space<vmem>> -> memref<1x128xf32, #tpu.memory_space<vmem>>
      %397 = tpu.memref_slice %arg13[%c0_i32_271, %186] : memref<4x2x!tpu.dma_semaphore, #tpu.memory_space<semaphore_mem>> -> memref<1x1x!tpu.dma_semaphore, #tpu.memory_space<semaphore_mem>>
      %398 = tpu.memref_squeeze %397 : memref<1x1x!tpu.dma_semaphore, #tpu.memory_space<semaphore_mem>> -> memref<!tpu.dma_semaphore, #tpu.memory_space<semaphore_mem>>
      tpu.enqueue_dma source(%394 : memref<1x128xf32, #tpu.memory_space<any>>) target(%396 : memref<1x128xf32, #tpu.memory_space<vmem>>) target_semaphore(%398 : memref<!tpu.dma_semaphore, #tpu.memory_space<semaphore_mem>>)
      %399 = arith.index_cast %391 : i32 to index
      %400 = memref.load %arg2[%399] : memref<32xi32, #tpu.memory_space<smem>>
      %c1_i32_274 = arith.constant 1 : i32
      %c0_i32_275 = arith.constant 0 : i32
      %401 = tpu.memref_slice %arg6[%400, %c0_i32_275] : memref<16x128xf32, #tpu.memory_space<any>> -> memref<1x128xf32, #tpu.memory_space<any>>
      %c0_i32_276 = arith.constant 0 : i32
      %402 = tpu.memref_slice %arg10[%186, %c7_i32_270, %c0_i32_276] : memref<2x8x128xf32, #tpu.memory_space<vmem>> -> memref<1x1x128xf32, #tpu.memory_space<vmem>>
      %403 = tpu.memref_squeeze %402 : memref<1x1x128xf32, #tpu.memory_space<vmem>> -> memref<1x128xf32, #tpu.memory_space<vmem>>
      %404 = tpu.memref_slice %arg13[%c1_i32_274, %186] : memref<4x2x!tpu.dma_semaphore, #tpu.memory_space<semaphore_mem>> -> memref<1x1x!tpu.dma_semaphore, #tpu.memory_space<semaphore_mem>>
      %405 = tpu.memref_squeeze %404 : memref<1x1x!tpu.dma_semaphore, #tpu.memory_space<semaphore_mem>> -> memref<!tpu.dma_semaphore, #tpu.memory_space<semaphore_mem>>
      tpu.enqueue_dma source(%401 : memref<1x128xf32, #tpu.memory_space<any>>) target(%403 : memref<1x128xf32, #tpu.memory_space<vmem>>) target_semaphore(%405 : memref<!tpu.dma_semaphore, #tpu.memory_space<semaphore_mem>>)
      %406 = arith.index_cast %391 : i32 to index
      %407 = memref.load %arg3[%406] : memref<32xi32, #tpu.memory_space<smem>>
      %c2_i32_277 = arith.constant 2 : i32
      %c0_i32_278 = arith.constant 0 : i32
      %408 = tpu.memref_slice %arg5[%407, %c0_i32_278] : memref<64x128xf32, #tpu.memory_space<any>> -> memref<1x128xf32, #tpu.memory_space<any>>
      %c0_i32_279 = arith.constant 0 : i32
      %409 = tpu.memref_slice %arg11[%186, %c7_i32_270, %c0_i32_279] : memref<2x8x128xf32, #tpu.memory_space<vmem>> -> memref<1x1x128xf32, #tpu.memory_space<vmem>>
      %410 = tpu.memref_squeeze %409 : memref<1x1x128xf32, #tpu.memory_space<vmem>> -> memref<1x128xf32, #tpu.memory_space<vmem>>
      %411 = tpu.memref_slice %arg13[%c2_i32_277, %186] : memref<4x2x!tpu.dma_semaphore, #tpu.memory_space<semaphore_mem>> -> memref<1x1x!tpu.dma_semaphore, #tpu.memory_space<semaphore_mem>>
      %412 = tpu.memref_squeeze %411 : memref<1x1x!tpu.dma_semaphore, #tpu.memory_space<semaphore_mem>> -> memref<!tpu.dma_semaphore, #tpu.memory_space<semaphore_mem>>
      tpu.enqueue_dma source(%408 : memref<1x128xf32, #tpu.memory_space<any>>) target(%410 : memref<1x128xf32, #tpu.memory_space<vmem>>) target_semaphore(%412 : memref<!tpu.dma_semaphore, #tpu.memory_space<semaphore_mem>>)
      %413 = arith.index_cast %391 : i32 to index
      %414 = memref.load %arg4[%413] : memref<32xi32, #tpu.memory_space<smem>>
      %c3_i32_280 = arith.constant 3 : i32
      %c0_i32_281 = arith.constant 0 : i32
      %415 = tpu.memref_slice %arg5[%414, %c0_i32_281] : memref<64x128xf32, #tpu.memory_space<any>> -> memref<1x128xf32, #tpu.memory_space<any>>
      %c0_i32_282 = arith.constant 0 : i32
      %416 = tpu.memref_slice %arg12[%186, %c7_i32_270, %c0_i32_282] : memref<2x8x128xf32, #tpu.memory_space<vmem>> -> memref<1x1x128xf32, #tpu.memory_space<vmem>>
      %417 = tpu.memref_squeeze %416 : memref<1x1x128xf32, #tpu.memory_space<vmem>> -> memref<1x128xf32, #tpu.memory_space<vmem>>
      %418 = tpu.memref_slice %arg13[%c3_i32_280, %186] : memref<4x2x!tpu.dma_semaphore, #tpu.memory_space<semaphore_mem>> -> memref<1x1x!tpu.dma_semaphore, #tpu.memory_space<semaphore_mem>>
      %419 = tpu.memref_squeeze %418 : memref<1x1x!tpu.dma_semaphore, #tpu.memory_space<semaphore_mem>> -> memref<!tpu.dma_semaphore, #tpu.memory_space<semaphore_mem>>
      tpu.enqueue_dma source(%415 : memref<1x128xf32, #tpu.memory_space<any>>) target(%417 : memref<1x128xf32, #tpu.memory_space<vmem>>) target_semaphore(%419 : memref<!tpu.dma_semaphore, #tpu.memory_space<semaphore_mem>>)
      %c8_i32_283 = arith.constant 8 : i32
    } else {
    }
    %c0_i32_2 = arith.constant 0 : i32
    %c0_i32_3 = arith.constant 0 : i32
    %c0_i32_4 = arith.constant 0 : i32
    %c0_i32_5 = arith.constant 0 : i32
    %8 = tpu.memref_slice %arg5[%c0_i32_4, %c0_i32_5] : memref<64x128xf32, #tpu.memory_space<any>> -> memref<1x128xf32, #tpu.memory_space<any>>
    %c0_i32_6 = arith.constant 0 : i32
    %c0_i32_7 = arith.constant 0 : i32
    %9 = tpu.memref_slice %arg9[%0, %c0_i32_6, %c0_i32_7] : memref<2x8x128xf32, #tpu.memory_space<vmem>> -> memref<1x1x128xf32, #tpu.memory_space<vmem>>
    %10 = tpu.memref_squeeze %9 : memref<1x1x128xf32, #tpu.memory_space<vmem>> -> memref<1x128xf32, #tpu.memory_space<vmem>>
    %11 = tpu.memref_slice %arg13[%c0_i32_3, %0] : memref<4x2x!tpu.dma_semaphore, #tpu.memory_space<semaphore_mem>> -> memref<1x1x!tpu.dma_semaphore, #tpu.memory_space<semaphore_mem>>
    %12 = tpu.memref_squeeze %11 : memref<1x1x!tpu.dma_semaphore, #tpu.memory_space<semaphore_mem>> -> memref<!tpu.dma_semaphore, #tpu.memory_space<semaphore_mem>>
    tpu.wait_dma2 semaphore(%12 : memref<!tpu.dma_semaphore, #tpu.memory_space<semaphore_mem>>) src(%8 : memref<1x128xf32, #tpu.memory_space<any>>) dst(%10 : memref<1x128xf32, #tpu.memory_space<vmem>>)
    %c1_i32_8 = arith.constant 1 : i32
    %c0_i32_9 = arith.constant 0 : i32
    %c0_i32_10 = arith.constant 0 : i32
    %13 = tpu.memref_slice %arg6[%c0_i32_9, %c0_i32_10] : memref<16x128xf32, #tpu.memory_space<any>> -> memref<1x128xf32, #tpu.memory_space<any>>
    %c0_i32_11 = arith.constant 0 : i32
    %c0_i32_12 = arith.constant 0 : i32
    %14 = tpu.memref_slice %arg10[%0, %c0_i32_11, %c0_i32_12] : memref<2x8x128xf32, #tpu.memory_space<vmem>> -> memref<1x1x128xf32, #tpu.memory_space<vmem>>
    %15 = tpu.memref_squeeze %14 : memref<1x1x128xf32, #tpu.memory_space<vmem>> -> memref<1x128xf32, #tpu.memory_space<vmem>>
    %16 = tpu.memref_slice %arg13[%c1_i32_8, %0] : memref<4x2x!tpu.dma_semaphore, #tpu.memory_space<semaphore_mem>> -> memref<1x1x!tpu.dma_semaphore, #tpu.memory_space<semaphore_mem>>
    %17 = tpu.memref_squeeze %16 : memref<1x1x!tpu.dma_semaphore, #tpu.memory_space<semaphore_mem>> -> memref<!tpu.dma_semaphore, #tpu.memory_space<semaphore_mem>>
    tpu.wait_dma2 semaphore(%17 : memref<!tpu.dma_semaphore, #tpu.memory_space<semaphore_mem>>) src(%13 : memref<1x128xf32, #tpu.memory_space<any>>) dst(%15 : memref<1x128xf32, #tpu.memory_space<vmem>>)
    %c2_i32_13 = arith.constant 2 : i32
    %c0_i32_14 = arith.constant 0 : i32
    %c0_i32_15 = arith.constant 0 : i32
    %18 = tpu.memref_slice %arg5[%c0_i32_14, %c0_i32_15] : memref<64x128xf32, #tpu.memory_space<any>> -> memref<1x128xf32, #tpu.memory_space<any>>
    %c0_i32_16 = arith.constant 0 : i32
    %c0_i32_17 = arith.constant 0 : i32
    %19 = tpu.memref_slice %arg11[%0, %c0_i32_16, %c0_i32_17] : memref<2x8x128xf32, #tpu.memory_space<vmem>> -> memref<1x1x128xf32, #tpu.memory_space<vmem>>
    %20 = tpu.memref_squeeze %19 : memref<1x1x128xf32, #tpu.memory_space<vmem>> -> memref<1x128xf32, #tpu.memory_space<vmem>>
    %21 = tpu.memref_slice %arg13[%c2_i32_13, %0] : memref<4x2x!tpu.dma_semaphore, #tpu.memory_space<semaphore_mem>> -> memref<1x1x!tpu.dma_semaphore, #tpu.memory_space<semaphore_mem>>
    %22 = tpu.memref_squeeze %21 : memref<1x1x!tpu.dma_semaphore, #tpu.memory_space<semaphore_mem>> -> memref<!tpu.dma_semaphore, #tpu.memory_space<semaphore_mem>>
    tpu.wait_dma2 semaphore(%22 : memref<!tpu.dma_semaphore, #tpu.memory_space<semaphore_mem>>) src(%18 : memref<1x128xf32, #tpu.memory_space<any>>) dst(%20 : memref<1x128xf32, #tpu.memory_space<vmem>>)
    %c3_i32 = arith.constant 3 : i32
    %c0_i32_18 = arith.constant 0 : i32
    %c0_i32_19 = arith.constant 0 : i32
    %23 = tpu.memref_slice %arg5[%c0_i32_18, %c0_i32_19] : memref<64x128xf32, #tpu.memory_space<any>> -> memref<1x128xf32, #tpu.memory_space<any>>
    %c0_i32_20 = arith.constant 0 : i32
    %c0_i32_21 = arith.constant 0 : i32
    %24 = tpu.memref_slice %arg12[%0, %c0_i32_20, %c0_i32_21] : memref<2x8x128xf32, #tpu.memory_space<vmem>> -> memref<1x1x128xf32, #tpu.memory_space<vmem>>
    %25 = tpu.memref_squeeze %24 : memref<1x1x128xf32, #tpu.memory_space<vmem>> -> memref<1x128xf32, #tpu.memory_space<vmem>>
    %26 = tpu.memref_slice %arg13[%c3_i32, %0] : memref<4x2x!tpu.dma_semaphore, #tpu.memory_space<semaphore_mem>> -> memref<1x1x!tpu.dma_semaphore, #tpu.memory_space<semaphore_mem>>
    %27 = tpu.memref_squeeze %26 : memref<1x1x!tpu.dma_semaphore, #tpu.memory_space<semaphore_mem>> -> memref<!tpu.dma_semaphore, #tpu.memory_space<semaphore_mem>>
    tpu.wait_dma2 semaphore(%27 : memref<!tpu.dma_semaphore, #tpu.memory_space<semaphore_mem>>) src(%23 : memref<1x128xf32, #tpu.memory_space<any>>) dst(%25 : memref<1x128xf32, #tpu.memory_space<vmem>>)
    %c1_i32_22 = arith.constant 1 : i32
    %c0_i32_23 = arith.constant 0 : i32
    %c0_i32_24 = arith.constant 0 : i32
    %c0_i32_25 = arith.constant 0 : i32
    %28 = tpu.memref_slice %arg5[%c0_i32_24, %c0_i32_25] : memref<64x128xf32, #tpu.memory_space<any>> -> memref<1x128xf32, #tpu.memory_space<any>>
    %c0_i32_26 = arith.constant 0 : i32
    %c0_i32_27 = arith.constant 0 : i32
    %29 = tpu.memref_slice %arg9[%0, %c0_i32_26, %c0_i32_27] : memref<2x8x128xf32, #tpu.memory_space<vmem>> -> memref<1x1x128xf32, #tpu.memory_space<vmem>>
    %30 = tpu.memref_squeeze %29 : memref<1x1x128xf32, #tpu.memory_space<vmem>> -> memref<1x128xf32, #tpu.memory_space<vmem>>
    %31 = tpu.memref_slice %arg13[%c0_i32_23, %0] : memref<4x2x!tpu.dma_semaphore, #tpu.memory_space<semaphore_mem>> -> memref<1x1x!tpu.dma_semaphore, #tpu.memory_space<semaphore_mem>>
    %32 = tpu.memref_squeeze %31 : memref<1x1x!tpu.dma_semaphore, #tpu.memory_space<semaphore_mem>> -> memref<!tpu.dma_semaphore, #tpu.memory_space<semaphore_mem>>
    tpu.wait_dma2 semaphore(%32 : memref<!tpu.dma_semaphore, #tpu.memory_space<semaphore_mem>>) src(%28 : memref<1x128xf32, #tpu.memory_space<any>>) dst(%30 : memref<1x128xf32, #tpu.memory_space<vmem>>)
    %c1_i32_28 = arith.constant 1 : i32
    %c0_i32_29 = arith.constant 0 : i32
    %c0_i32_30 = arith.constant 0 : i32
    %33 = tpu.memref_slice %arg6[%c0_i32_29, %c0_i32_30] : memref<16x128xf32, #tpu.memory_space<any>> -> memref<1x128xf32, #tpu.memory_space<any>>
    %c0_i32_31 = arith.constant 0 : i32
    %c0_i32_32 = arith.constant 0 : i32
    %34 = tpu.memref_slice %arg10[%0, %c0_i32_31, %c0_i32_32] : memref<2x8x128xf32, #tpu.memory_space<vmem>> -> memref<1x1x128xf32, #tpu.memory_space<vmem>>
    %35 = tpu.memref_squeeze %34 : memref<1x1x128xf32, #tpu.memory_space<vmem>> -> memref<1x128xf32, #tpu.memory_space<vmem>>
    %36 = tpu.memref_slice %arg13[%c1_i32_28, %0] : memref<4x2x!tpu.dma_semaphore, #tpu.memory_space<semaphore_mem>> -> memref<1x1x!tpu.dma_semaphore, #tpu.memory_space<semaphore_mem>>
    %37 = tpu.memref_squeeze %36 : memref<1x1x!tpu.dma_semaphore, #tpu.memory_space<semaphore_mem>> -> memref<!tpu.dma_semaphore, #tpu.memory_space<semaphore_mem>>
    tpu.wait_dma2 semaphore(%37 : memref<!tpu.dma_semaphore, #tpu.memory_space<semaphore_mem>>) src(%33 : memref<1x128xf32, #tpu.memory_space<any>>) dst(%35 : memref<1x128xf32, #tpu.memory_space<vmem>>)
    %c2_i32_33 = arith.constant 2 : i32
    %c0_i32_34 = arith.constant 0 : i32
    %c0_i32_35 = arith.constant 0 : i32
    %38 = tpu.memref_slice %arg5[%c0_i32_34, %c0_i32_35] : memref<64x128xf32, #tpu.memory_space<any>> -> memref<1x128xf32, #tpu.memory_space<any>>
    %c0_i32_36 = arith.constant 0 : i32
    %c0_i32_37 = arith.constant 0 : i32
    %39 = tpu.memref_slice %arg11[%0, %c0_i32_36, %c0_i32_37] : memref<2x8x128xf32, #tpu.memory_space<vmem>> -> memref<1x1x128xf32, #tpu.memory_space<vmem>>
    %40 = tpu.memref_squeeze %39 : memref<1x1x128xf32, #tpu.memory_space<vmem>> -> memref<1x128xf32, #tpu.memory_space<vmem>>
    %41 = tpu.memref_slice %arg13[%c2_i32_33, %0] : memref<4x2x!tpu.dma_semaphore, #tpu.memory_space<semaphore_mem>> -> memref<1x1x!tpu.dma_semaphore, #tpu.memory_space<semaphore_mem>>
    %42 = tpu.memref_squeeze %41 : memref<1x1x!tpu.dma_semaphore, #tpu.memory_space<semaphore_mem>> -> memref<!tpu.dma_semaphore, #tpu.memory_space<semaphore_mem>>
    tpu.wait_dma2 semaphore(%42 : memref<!tpu.dma_semaphore, #tpu.memory_space<semaphore_mem>>) src(%38 : memref<1x128xf32, #tpu.memory_space<any>>) dst(%40 : memref<1x128xf32, #tpu.memory_space<vmem>>)
    %c3_i32_38 = arith.constant 3 : i32
    %c0_i32_39 = arith.constant 0 : i32
    %c0_i32_40 = arith.constant 0 : i32
    %43 = tpu.memref_slice %arg5[%c0_i32_39, %c0_i32_40] : memref<64x128xf32, #tpu.memory_space<any>> -> memref<1x128xf32, #tpu.memory_space<any>>
    %c0_i32_41 = arith.constant 0 : i32
    %c0_i32_42 = arith.constant 0 : i32
    %44 = tpu.memref_slice %arg12[%0, %c0_i32_41, %c0_i32_42] : memref<2x8x128xf32, #tpu.memory_space<vmem>> -> memref<1x1x128xf32, #tpu.memory_space<vmem>>
    %45 = tpu.memref_squeeze %44 : memref<1x1x128xf32, #tpu.memory_space<vmem>> -> memref<1x128xf32, #tpu.memory_space<vmem>>
    %46 = tpu.memref_slice %arg13[%c3_i32_38, %0] : memref<4x2x!tpu.dma_semaphore, #tpu.memory_space<semaphore_mem>> -> memref<1x1x!tpu.dma_semaphore, #tpu.memory_space<semaphore_mem>>
    %47 = tpu.memref_squeeze %46 : memref<1x1x!tpu.dma_semaphore, #tpu.memory_space<semaphore_mem>> -> memref<!tpu.dma_semaphore, #tpu.memory_space<semaphore_mem>>
    tpu.wait_dma2 semaphore(%47 : memref<!tpu.dma_semaphore, #tpu.memory_space<semaphore_mem>>) src(%43 : memref<1x128xf32, #tpu.memory_space<any>>) dst(%45 : memref<1x128xf32, #tpu.memory_space<vmem>>)
    %c2_i32_43 = arith.constant 2 : i32
    %c0_i32_44 = arith.constant 0 : i32
    %c0_i32_45 = arith.constant 0 : i32
    %c0_i32_46 = arith.constant 0 : i32
    %48 = tpu.memref_slice %arg5[%c0_i32_45, %c0_i32_46] : memref<64x128xf32, #tpu.memory_space<any>> -> memref<1x128xf32, #tpu.memory_space<any>>
    %c0_i32_47 = arith.constant 0 : i32
    %c0_i32_48 = arith.constant 0 : i32
    %49 = tpu.memref_slice %arg9[%0, %c0_i32_47, %c0_i32_48] : memref<2x8x128xf32, #tpu.memory_space<vmem>> -> memref<1x1x128xf32, #tpu.memory_space<vmem>>
    %50 = tpu.memref_squeeze %49 : memref<1x1x128xf32, #tpu.memory_space<vmem>> -> memref<1x128xf32, #tpu.memory_space<vmem>>
    %51 = tpu.memref_slice %arg13[%c0_i32_44, %0] : memref<4x2x!tpu.dma_semaphore, #tpu.memory_space<semaphore_mem>> -> memref<1x1x!tpu.dma_semaphore, #tpu.memory_space<semaphore_mem>>
    %52 = tpu.memref_squeeze %51 : memref<1x1x!tpu.dma_semaphore, #tpu.memory_space<semaphore_mem>> -> memref<!tpu.dma_semaphore, #tpu.memory_space<semaphore_mem>>
    tpu.wait_dma2 semaphore(%52 : memref<!tpu.dma_semaphore, #tpu.memory_space<semaphore_mem>>) src(%48 : memref<1x128xf32, #tpu.memory_space<any>>) dst(%50 : memref<1x128xf32, #tpu.memory_space<vmem>>)
    %c1_i32_49 = arith.constant 1 : i32
    %c0_i32_50 = arith.constant 0 : i32
    %c0_i32_51 = arith.constant 0 : i32
    %53 = tpu.memref_slice %arg6[%c0_i32_50, %c0_i32_51] : memref<16x128xf32, #tpu.memory_space<any>> -> memref<1x128xf32, #tpu.memory_space<any>>
    %c0_i32_52 = arith.constant 0 : i32
    %c0_i32_53 = arith.constant 0 : i32
    %54 = tpu.memref_slice %arg10[%0, %c0_i32_52, %c0_i32_53] : memref<2x8x128xf32, #tpu.memory_space<vmem>> -> memref<1x1x128xf32, #tpu.memory_space<vmem>>
    %55 = tpu.memref_squeeze %54 : memref<1x1x128xf32, #tpu.memory_space<vmem>> -> memref<1x128xf32, #tpu.memory_space<vmem>>
    %56 = tpu.memref_slice %arg13[%c1_i32_49, %0] : memref<4x2x!tpu.dma_semaphore, #tpu.memory_space<semaphore_mem>> -> memref<1x1x!tpu.dma_semaphore, #tpu.memory_space<semaphore_mem>>
    %57 = tpu.memref_squeeze %56 : memref<1x1x!tpu.dma_semaphore, #tpu.memory_space<semaphore_mem>> -> memref<!tpu.dma_semaphore, #tpu.memory_space<semaphore_mem>>
    tpu.wait_dma2 semaphore(%57 : memref<!tpu.dma_semaphore, #tpu.memory_space<semaphore_mem>>) src(%53 : memref<1x128xf32, #tpu.memory_space<any>>) dst(%55 : memref<1x128xf32, #tpu.memory_space<vmem>>)
    %c2_i32_54 = arith.constant 2 : i32
    %c0_i32_55 = arith.constant 0 : i32
    %c0_i32_56 = arith.constant 0 : i32
    %58 = tpu.memref_slice %arg5[%c0_i32_55, %c0_i32_56] : memref<64x128xf32, #tpu.memory_space<any>> -> memref<1x128xf32, #tpu.memory_space<any>>
    %c0_i32_57 = arith.constant 0 : i32
    %c0_i32_58 = arith.constant 0 : i32
    %59 = tpu.memref_slice %arg11[%0, %c0_i32_57, %c0_i32_58] : memref<2x8x128xf32, #tpu.memory_space<vmem>> -> memref<1x1x128xf32, #tpu.memory_space<vmem>>
    %60 = tpu.memref_squeeze %59 : memref<1x1x128xf32, #tpu.memory_space<vmem>> -> memref<1x128xf32, #tpu.memory_space<vmem>>
    %61 = tpu.memref_slice %arg13[%c2_i32_54, %0] : memref<4x2x!tpu.dma_semaphore, #tpu.memory_space<semaphore_mem>> -> memref<1x1x!tpu.dma_semaphore, #tpu.memory_space<semaphore_mem>>
    %62 = tpu.memref_squeeze %61 : memref<1x1x!tpu.dma_semaphore, #tpu.memory_space<semaphore_mem>> -> memref<!tpu.dma_semaphore, #tpu.memory_space<semaphore_mem>>
    tpu.wait_dma2 semaphore(%62 : memref<!tpu.dma_semaphore, #tpu.memory_space<semaphore_mem>>) src(%58 : memref<1x128xf32, #tpu.memory_space<any>>) dst(%60 : memref<1x128xf32, #tpu.memory_space<vmem>>)
    %c3_i32_59 = arith.constant 3 : i32
    %c0_i32_60 = arith.constant 0 : i32
    %c0_i32_61 = arith.constant 0 : i32
    %63 = tpu.memref_slice %arg5[%c0_i32_60, %c0_i32_61] : memref<64x128xf32, #tpu.memory_space<any>> -> memref<1x128xf32, #tpu.memory_space<any>>
    %c0_i32_62 = arith.constant 0 : i32
    %c0_i32_63 = arith.constant 0 : i32
    %64 = tpu.memref_slice %arg12[%0, %c0_i32_62, %c0_i32_63] : memref<2x8x128xf32, #tpu.memory_space<vmem>> -> memref<1x1x128xf32, #tpu.memory_space<vmem>>
    %65 = tpu.memref_squeeze %64 : memref<1x1x128xf32, #tpu.memory_space<vmem>> -> memref<1x128xf32, #tpu.memory_space<vmem>>
    %66 = tpu.memref_slice %arg13[%c3_i32_59, %0] : memref<4x2x!tpu.dma_semaphore, #tpu.memory_space<semaphore_mem>> -> memref<1x1x!tpu.dma_semaphore, #tpu.memory_space<semaphore_mem>>
    %67 = tpu.memref_squeeze %66 : memref<1x1x!tpu.dma_semaphore, #tpu.memory_space<semaphore_mem>> -> memref<!tpu.dma_semaphore, #tpu.memory_space<semaphore_mem>>
    tpu.wait_dma2 semaphore(%67 : memref<!tpu.dma_semaphore, #tpu.memory_space<semaphore_mem>>) src(%63 : memref<1x128xf32, #tpu.memory_space<any>>) dst(%65 : memref<1x128xf32, #tpu.memory_space<vmem>>)
    %c3_i32_64 = arith.constant 3 : i32
    %c0_i32_65 = arith.constant 0 : i32
    %c0_i32_66 = arith.constant 0 : i32
    %c0_i32_67 = arith.constant 0 : i32
    %68 = tpu.memref_slice %arg5[%c0_i32_66, %c0_i32_67] : memref<64x128xf32, #tpu.memory_space<any>> -> memref<1x128xf32, #tpu.memory_space<any>>
    %c0_i32_68 = arith.constant 0 : i32
    %c0_i32_69 = arith.constant 0 : i32
    %69 = tpu.memref_slice %arg9[%0, %c0_i32_68, %c0_i32_69] : memref<2x8x128xf32, #tpu.memory_space<vmem>> -> memref<1x1x128xf32, #tpu.memory_space<vmem>>
    %70 = tpu.memref_squeeze %69 : memref<1x1x128xf32, #tpu.memory_space<vmem>> -> memref<1x128xf32, #tpu.memory_space<vmem>>
    %71 = tpu.memref_slice %arg13[%c0_i32_65, %0] : memref<4x2x!tpu.dma_semaphore, #tpu.memory_space<semaphore_mem>> -> memref<1x1x!tpu.dma_semaphore, #tpu.memory_space<semaphore_mem>>
    %72 = tpu.memref_squeeze %71 : memref<1x1x!tpu.dma_semaphore, #tpu.memory_space<semaphore_mem>> -> memref<!tpu.dma_semaphore, #tpu.memory_space<semaphore_mem>>
    tpu.wait_dma2 semaphore(%72 : memref<!tpu.dma_semaphore, #tpu.memory_space<semaphore_mem>>) src(%68 : memref<1x128xf32, #tpu.memory_space<any>>) dst(%70 : memref<1x128xf32, #tpu.memory_space<vmem>>)
    %c1_i32_70 = arith.constant 1 : i32
    %c0_i32_71 = arith.constant 0 : i32
    %c0_i32_72 = arith.constant 0 : i32
    %73 = tpu.memref_slice %arg6[%c0_i32_71, %c0_i32_72] : memref<16x128xf32, #tpu.memory_space<any>> -> memref<1x128xf32, #tpu.memory_space<any>>
    %c0_i32_73 = arith.constant 0 : i32
    %c0_i32_74 = arith.constant 0 : i32
    %74 = tpu.memref_slice %arg10[%0, %c0_i32_73, %c0_i32_74] : memref<2x8x128xf32, #tpu.memory_space<vmem>> -> memref<1x1x128xf32, #tpu.memory_space<vmem>>
    %75 = tpu.memref_squeeze %74 : memref<1x1x128xf32, #tpu.memory_space<vmem>> -> memref<1x128xf32, #tpu.memory_space<vmem>>
    %76 = tpu.memref_slice %arg13[%c1_i32_70, %0] : memref<4x2x!tpu.dma_semaphore, #tpu.memory_space<semaphore_mem>> -> memref<1x1x!tpu.dma_semaphore, #tpu.memory_space<semaphore_mem>>
    %77 = tpu.memref_squeeze %76 : memref<1x1x!tpu.dma_semaphore, #tpu.memory_space<semaphore_mem>> -> memref<!tpu.dma_semaphore, #tpu.memory_space<semaphore_mem>>
    tpu.wait_dma2 semaphore(%77 : memref<!tpu.dma_semaphore, #tpu.memory_space<semaphore_mem>>) src(%73 : memref<1x128xf32, #tpu.memory_space<any>>) dst(%75 : memref<1x128xf32, #tpu.memory_space<vmem>>)
    %c2_i32_75 = arith.constant 2 : i32
    %c0_i32_76 = arith.constant 0 : i32
    %c0_i32_77 = arith.constant 0 : i32
    %78 = tpu.memref_slice %arg5[%c0_i32_76, %c0_i32_77] : memref<64x128xf32, #tpu.memory_space<any>> -> memref<1x128xf32, #tpu.memory_space<any>>
    %c0_i32_78 = arith.constant 0 : i32
    %c0_i32_79 = arith.constant 0 : i32
    %79 = tpu.memref_slice %arg11[%0, %c0_i32_78, %c0_i32_79] : memref<2x8x128xf32, #tpu.memory_space<vmem>> -> memref<1x1x128xf32, #tpu.memory_space<vmem>>
    %80 = tpu.memref_squeeze %79 : memref<1x1x128xf32, #tpu.memory_space<vmem>> -> memref<1x128xf32, #tpu.memory_space<vmem>>
    %81 = tpu.memref_slice %arg13[%c2_i32_75, %0] : memref<4x2x!tpu.dma_semaphore, #tpu.memory_space<semaphore_mem>> -> memref<1x1x!tpu.dma_semaphore, #tpu.memory_space<semaphore_mem>>
    %82 = tpu.memref_squeeze %81 : memref<1x1x!tpu.dma_semaphore, #tpu.memory_space<semaphore_mem>> -> memref<!tpu.dma_semaphore, #tpu.memory_space<semaphore_mem>>
    tpu.wait_dma2 semaphore(%82 : memref<!tpu.dma_semaphore, #tpu.memory_space<semaphore_mem>>) src(%78 : memref<1x128xf32, #tpu.memory_space<any>>) dst(%80 : memref<1x128xf32, #tpu.memory_space<vmem>>)
    %c3_i32_80 = arith.constant 3 : i32
    %c0_i32_81 = arith.constant 0 : i32
    %c0_i32_82 = arith.constant 0 : i32
    %83 = tpu.memref_slice %arg5[%c0_i32_81, %c0_i32_82] : memref<64x128xf32, #tpu.memory_space<any>> -> memref<1x128xf32, #tpu.memory_space<any>>
    %c0_i32_83 = arith.constant 0 : i32
    %c0_i32_84 = arith.constant 0 : i32
    %84 = tpu.memref_slice %arg12[%0, %c0_i32_83, %c0_i32_84] : memref<2x8x128xf32, #tpu.memory_space<vmem>> -> memref<1x1x128xf32, #tpu.memory_space<vmem>>
    %85 = tpu.memref_squeeze %84 : memref<1x1x128xf32, #tpu.memory_space<vmem>> -> memref<1x128xf32, #tpu.memory_space<vmem>>
    %86 = tpu.memref_slice %arg13[%c3_i32_80, %0] : memref<4x2x!tpu.dma_semaphore, #tpu.memory_space<semaphore_mem>> -> memref<1x1x!tpu.dma_semaphore, #tpu.memory_space<semaphore_mem>>
    %87 = tpu.memref_squeeze %86 : memref<1x1x!tpu.dma_semaphore, #tpu.memory_space<semaphore_mem>> -> memref<!tpu.dma_semaphore, #tpu.memory_space<semaphore_mem>>
    tpu.wait_dma2 semaphore(%87 : memref<!tpu.dma_semaphore, #tpu.memory_space<semaphore_mem>>) src(%83 : memref<1x128xf32, #tpu.memory_space<any>>) dst(%85 : memref<1x128xf32, #tpu.memory_space<vmem>>)
    %c4_i32_85 = arith.constant 4 : i32
    %c0_i32_86 = arith.constant 0 : i32
    %c0_i32_87 = arith.constant 0 : i32
    %c0_i32_88 = arith.constant 0 : i32
    %88 = tpu.memref_slice %arg5[%c0_i32_87, %c0_i32_88] : memref<64x128xf32, #tpu.memory_space<any>> -> memref<1x128xf32, #tpu.memory_space<any>>
    %c0_i32_89 = arith.constant 0 : i32
    %c0_i32_90 = arith.constant 0 : i32
    %89 = tpu.memref_slice %arg9[%0, %c0_i32_89, %c0_i32_90] : memref<2x8x128xf32, #tpu.memory_space<vmem>> -> memref<1x1x128xf32, #tpu.memory_space<vmem>>
    %90 = tpu.memref_squeeze %89 : memref<1x1x128xf32, #tpu.memory_space<vmem>> -> memref<1x128xf32, #tpu.memory_space<vmem>>
    %91 = tpu.memref_slice %arg13[%c0_i32_86, %0] : memref<4x2x!tpu.dma_semaphore, #tpu.memory_space<semaphore_mem>> -> memref<1x1x!tpu.dma_semaphore, #tpu.memory_space<semaphore_mem>>
    %92 = tpu.memref_squeeze %91 : memref<1x1x!tpu.dma_semaphore, #tpu.memory_space<semaphore_mem>> -> memref<!tpu.dma_semaphore, #tpu.memory_space<semaphore_mem>>
    tpu.wait_dma2 semaphore(%92 : memref<!tpu.dma_semaphore, #tpu.memory_space<semaphore_mem>>) src(%88 : memref<1x128xf32, #tpu.memory_space<any>>) dst(%90 : memref<1x128xf32, #tpu.memory_space<vmem>>)
    %c1_i32_91 = arith.constant 1 : i32
    %c0_i32_92 = arith.constant 0 : i32
    %c0_i32_93 = arith.constant 0 : i32
    %93 = tpu.memref_slice %arg6[%c0_i32_92, %c0_i32_93] : memref<16x128xf32, #tpu.memory_space<any>> -> memref<1x128xf32, #tpu.memory_space<any>>
    %c0_i32_94 = arith.constant 0 : i32
    %c0_i32_95 = arith.constant 0 : i32
    %94 = tpu.memref_slice %arg10[%0, %c0_i32_94, %c0_i32_95] : memref<2x8x128xf32, #tpu.memory_space<vmem>> -> memref<1x1x128xf32, #tpu.memory_space<vmem>>
    %95 = tpu.memref_squeeze %94 : memref<1x1x128xf32, #tpu.memory_space<vmem>> -> memref<1x128xf32, #tpu.memory_space<vmem>>
    %96 = tpu.memref_slice %arg13[%c1_i32_91, %0] : memref<4x2x!tpu.dma_semaphore, #tpu.memory_space<semaphore_mem>> -> memref<1x1x!tpu.dma_semaphore, #tpu.memory_space<semaphore_mem>>
    %97 = tpu.memref_squeeze %96 : memref<1x1x!tpu.dma_semaphore, #tpu.memory_space<semaphore_mem>> -> memref<!tpu.dma_semaphore, #tpu.memory_space<semaphore_mem>>
    tpu.wait_dma2 semaphore(%97 : memref<!tpu.dma_semaphore, #tpu.memory_space<semaphore_mem>>) src(%93 : memref<1x128xf32, #tpu.memory_space<any>>) dst(%95 : memref<1x128xf32, #tpu.memory_space<vmem>>)
    %c2_i32_96 = arith.constant 2 : i32
    %c0_i32_97 = arith.constant 0 : i32
    %c0_i32_98 = arith.constant 0 : i32
    %98 = tpu.memref_slice %arg5[%c0_i32_97, %c0_i32_98] : memref<64x128xf32, #tpu.memory_space<any>> -> memref<1x128xf32, #tpu.memory_space<any>>
    %c0_i32_99 = arith.constant 0 : i32
    %c0_i32_100 = arith.constant 0 : i32
    %99 = tpu.memref_slice %arg11[%0, %c0_i32_99, %c0_i32_100] : memref<2x8x128xf32, #tpu.memory_space<vmem>> -> memref<1x1x128xf32, #tpu.memory_space<vmem>>
    %100 = tpu.memref_squeeze %99 : memref<1x1x128xf32, #tpu.memory_space<vmem>> -> memref<1x128xf32, #tpu.memory_space<vmem>>
    %101 = tpu.memref_slice %arg13[%c2_i32_96, %0] : memref<4x2x!tpu.dma_semaphore, #tpu.memory_space<semaphore_mem>> -> memref<1x1x!tpu.dma_semaphore, #tpu.memory_space<semaphore_mem>>
    %102 = tpu.memref_squeeze %101 : memref<1x1x!tpu.dma_semaphore, #tpu.memory_space<semaphore_mem>> -> memref<!tpu.dma_semaphore, #tpu.memory_space<semaphore_mem>>
    tpu.wait_dma2 semaphore(%102 : memref<!tpu.dma_semaphore, #tpu.memory_space<semaphore_mem>>) src(%98 : memref<1x128xf32, #tpu.memory_space<any>>) dst(%100 : memref<1x128xf32, #tpu.memory_space<vmem>>)
    %c3_i32_101 = arith.constant 3 : i32
    %c0_i32_102 = arith.constant 0 : i32
    %c0_i32_103 = arith.constant 0 : i32
    %103 = tpu.memref_slice %arg5[%c0_i32_102, %c0_i32_103] : memref<64x128xf32, #tpu.memory_space<any>> -> memref<1x128xf32, #tpu.memory_space<any>>
    %c0_i32_104 = arith.constant 0 : i32
    %c0_i32_105 = arith.constant 0 : i32
    %104 = tpu.memref_slice %arg12[%0, %c0_i32_104, %c0_i32_105] : memref<2x8x128xf32, #tpu.memory_space<vmem>> -> memref<1x1x128xf32, #tpu.memory_space<vmem>>
    %105 = tpu.memref_squeeze %104 : memref<1x1x128xf32, #tpu.memory_space<vmem>> -> memref<1x128xf32, #tpu.memory_space<vmem>>
    %106 = tpu.memref_slice %arg13[%c3_i32_101, %0] : memref<4x2x!tpu.dma_semaphore, #tpu.memory_space<semaphore_mem>> -> memref<1x1x!tpu.dma_semaphore, #tpu.memory_space<semaphore_mem>>
    %107 = tpu.memref_squeeze %106 : memref<1x1x!tpu.dma_semaphore, #tpu.memory_space<semaphore_mem>> -> memref<!tpu.dma_semaphore, #tpu.memory_space<semaphore_mem>>
    tpu.wait_dma2 semaphore(%107 : memref<!tpu.dma_semaphore, #tpu.memory_space<semaphore_mem>>) src(%103 : memref<1x128xf32, #tpu.memory_space<any>>) dst(%105 : memref<1x128xf32, #tpu.memory_space<vmem>>)
    %c5_i32 = arith.constant 5 : i32
    %c0_i32_106 = arith.constant 0 : i32
    %c0_i32_107 = arith.constant 0 : i32
    %c0_i32_108 = arith.constant 0 : i32
    %108 = tpu.memref_slice %arg5[%c0_i32_107, %c0_i32_108] : memref<64x128xf32, #tpu.memory_space<any>> -> memref<1x128xf32, #tpu.memory_space<any>>
    %c0_i32_109 = arith.constant 0 : i32
    %c0_i32_110 = arith.constant 0 : i32
    %109 = tpu.memref_slice %arg9[%0, %c0_i32_109, %c0_i32_110] : memref<2x8x128xf32, #tpu.memory_space<vmem>> -> memref<1x1x128xf32, #tpu.memory_space<vmem>>
    %110 = tpu.memref_squeeze %109 : memref<1x1x128xf32, #tpu.memory_space<vmem>> -> memref<1x128xf32, #tpu.memory_space<vmem>>
    %111 = tpu.memref_slice %arg13[%c0_i32_106, %0] : memref<4x2x!tpu.dma_semaphore, #tpu.memory_space<semaphore_mem>> -> memref<1x1x!tpu.dma_semaphore, #tpu.memory_space<semaphore_mem>>
    %112 = tpu.memref_squeeze %111 : memref<1x1x!tpu.dma_semaphore, #tpu.memory_space<semaphore_mem>> -> memref<!tpu.dma_semaphore, #tpu.memory_space<semaphore_mem>>
    tpu.wait_dma2 semaphore(%112 : memref<!tpu.dma_semaphore, #tpu.memory_space<semaphore_mem>>) src(%108 : memref<1x128xf32, #tpu.memory_space<any>>) dst(%110 : memref<1x128xf32, #tpu.memory_space<vmem>>)
    %c1_i32_111 = arith.constant 1 : i32
    %c0_i32_112 = arith.constant 0 : i32
    %c0_i32_113 = arith.constant 0 : i32
    %113 = tpu.memref_slice %arg6[%c0_i32_112, %c0_i32_113] : memref<16x128xf32, #tpu.memory_space<any>> -> memref<1x128xf32, #tpu.memory_space<any>>
    %c0_i32_114 = arith.constant 0 : i32
    %c0_i32_115 = arith.constant 0 : i32
    %114 = tpu.memref_slice %arg10[%0, %c0_i32_114, %c0_i32_115] : memref<2x8x128xf32, #tpu.memory_space<vmem>> -> memref<1x1x128xf32, #tpu.memory_space<vmem>>
    %115 = tpu.memref_squeeze %114 : memref<1x1x128xf32, #tpu.memory_space<vmem>> -> memref<1x128xf32, #tpu.memory_space<vmem>>
    %116 = tpu.memref_slice %arg13[%c1_i32_111, %0] : memref<4x2x!tpu.dma_semaphore, #tpu.memory_space<semaphore_mem>> -> memref<1x1x!tpu.dma_semaphore, #tpu.memory_space<semaphore_mem>>
    %117 = tpu.memref_squeeze %116 : memref<1x1x!tpu.dma_semaphore, #tpu.memory_space<semaphore_mem>> -> memref<!tpu.dma_semaphore, #tpu.memory_space<semaphore_mem>>
    tpu.wait_dma2 semaphore(%117 : memref<!tpu.dma_semaphore, #tpu.memory_space<semaphore_mem>>) src(%113 : memref<1x128xf32, #tpu.memory_space<any>>) dst(%115 : memref<1x128xf32, #tpu.memory_space<vmem>>)
    %c2_i32_116 = arith.constant 2 : i32
    %c0_i32_117 = arith.constant 0 : i32
    %c0_i32_118 = arith.constant 0 : i32
    %118 = tpu.memref_slice %arg5[%c0_i32_117, %c0_i32_118] : memref<64x128xf32, #tpu.memory_space<any>> -> memref<1x128xf32, #tpu.memory_space<any>>
    %c0_i32_119 = arith.constant 0 : i32
    %c0_i32_120 = arith.constant 0 : i32
    %119 = tpu.memref_slice %arg11[%0, %c0_i32_119, %c0_i32_120] : memref<2x8x128xf32, #tpu.memory_space<vmem>> -> memref<1x1x128xf32, #tpu.memory_space<vmem>>
    %120 = tpu.memref_squeeze %119 : memref<1x1x128xf32, #tpu.memory_space<vmem>> -> memref<1x128xf32, #tpu.memory_space<vmem>>
    %121 = tpu.memref_slice %arg13[%c2_i32_116, %0] : memref<4x2x!tpu.dma_semaphore, #tpu.memory_space<semaphore_mem>> -> memref<1x1x!tpu.dma_semaphore, #tpu.memory_space<semaphore_mem>>
    %122 = tpu.memref_squeeze %121 : memref<1x1x!tpu.dma_semaphore, #tpu.memory_space<semaphore_mem>> -> memref<!tpu.dma_semaphore, #tpu.memory_space<semaphore_mem>>
    tpu.wait_dma2 semaphore(%122 : memref<!tpu.dma_semaphore, #tpu.memory_space<semaphore_mem>>) src(%118 : memref<1x128xf32, #tpu.memory_space<any>>) dst(%120 : memref<1x128xf32, #tpu.memory_space<vmem>>)
    %c3_i32_121 = arith.constant 3 : i32
    %c0_i32_122 = arith.constant 0 : i32
    %c0_i32_123 = arith.constant 0 : i32
    %123 = tpu.memref_slice %arg5[%c0_i32_122, %c0_i32_123] : memref<64x128xf32, #tpu.memory_space<any>> -> memref<1x128xf32, #tpu.memory_space<any>>
    %c0_i32_124 = arith.constant 0 : i32
    %c0_i32_125 = arith.constant 0 : i32
    %124 = tpu.memref_slice %arg12[%0, %c0_i32_124, %c0_i32_125] : memref<2x8x128xf32, #tpu.memory_space<vmem>> -> memref<1x1x128xf32, #tpu.memory_space<vmem>>
    %125 = tpu.memref_squeeze %124 : memref<1x1x128xf32, #tpu.memory_space<vmem>> -> memref<1x128xf32, #tpu.memory_space<vmem>>
    %126 = tpu.memref_slice %arg13[%c3_i32_121, %0] : memref<4x2x!tpu.dma_semaphore, #tpu.memory_space<semaphore_mem>> -> memref<1x1x!tpu.dma_semaphore, #tpu.memory_space<semaphore_mem>>
    %127 = tpu.memref_squeeze %126 : memref<1x1x!tpu.dma_semaphore, #tpu.memory_space<semaphore_mem>> -> memref<!tpu.dma_semaphore, #tpu.memory_space<semaphore_mem>>
    tpu.wait_dma2 semaphore(%127 : memref<!tpu.dma_semaphore, #tpu.memory_space<semaphore_mem>>) src(%123 : memref<1x128xf32, #tpu.memory_space<any>>) dst(%125 : memref<1x128xf32, #tpu.memory_space<vmem>>)
    %c6_i32 = arith.constant 6 : i32
    %c0_i32_126 = arith.constant 0 : i32
    %c0_i32_127 = arith.constant 0 : i32
    %c0_i32_128 = arith.constant 0 : i32
    %128 = tpu.memref_slice %arg5[%c0_i32_127, %c0_i32_128] : memref<64x128xf32, #tpu.memory_space<any>> -> memref<1x128xf32, #tpu.memory_space<any>>
    %c0_i32_129 = arith.constant 0 : i32
    %c0_i32_130 = arith.constant 0 : i32
    %129 = tpu.memref_slice %arg9[%0, %c0_i32_129, %c0_i32_130] : memref<2x8x128xf32, #tpu.memory_space<vmem>> -> memref<1x1x128xf32, #tpu.memory_space<vmem>>
    %130 = tpu.memref_squeeze %129 : memref<1x1x128xf32, #tpu.memory_space<vmem>> -> memref<1x128xf32, #tpu.memory_space<vmem>>
    %131 = tpu.memref_slice %arg13[%c0_i32_126, %0] : memref<4x2x!tpu.dma_semaphore, #tpu.memory_space<semaphore_mem>> -> memref<1x1x!tpu.dma_semaphore, #tpu.memory_space<semaphore_mem>>
    %132 = tpu.memref_squeeze %131 : memref<1x1x!tpu.dma_semaphore, #tpu.memory_space<semaphore_mem>> -> memref<!tpu.dma_semaphore, #tpu.memory_space<semaphore_mem>>
    tpu.wait_dma2 semaphore(%132 : memref<!tpu.dma_semaphore, #tpu.memory_space<semaphore_mem>>) src(%128 : memref<1x128xf32, #tpu.memory_space<any>>) dst(%130 : memref<1x128xf32, #tpu.memory_space<vmem>>)
    %c1_i32_131 = arith.constant 1 : i32
    %c0_i32_132 = arith.constant 0 : i32
    %c0_i32_133 = arith.constant 0 : i32
    %133 = tpu.memref_slice %arg6[%c0_i32_132, %c0_i32_133] : memref<16x128xf32, #tpu.memory_space<any>> -> memref<1x128xf32, #tpu.memory_space<any>>
    %c0_i32_134 = arith.constant 0 : i32
    %c0_i32_135 = arith.constant 0 : i32
    %134 = tpu.memref_slice %arg10[%0, %c0_i32_134, %c0_i32_135] : memref<2x8x128xf32, #tpu.memory_space<vmem>> -> memref<1x1x128xf32, #tpu.memory_space<vmem>>
    %135 = tpu.memref_squeeze %134 : memref<1x1x128xf32, #tpu.memory_space<vmem>> -> memref<1x128xf32, #tpu.memory_space<vmem>>
    %136 = tpu.memref_slice %arg13[%c1_i32_131, %0] : memref<4x2x!tpu.dma_semaphore, #tpu.memory_space<semaphore_mem>> -> memref<1x1x!tpu.dma_semaphore, #tpu.memory_space<semaphore_mem>>
    %137 = tpu.memref_squeeze %136 : memref<1x1x!tpu.dma_semaphore, #tpu.memory_space<semaphore_mem>> -> memref<!tpu.dma_semaphore, #tpu.memory_space<semaphore_mem>>
    tpu.wait_dma2 semaphore(%137 : memref<!tpu.dma_semaphore, #tpu.memory_space<semaphore_mem>>) src(%133 : memref<1x128xf32, #tpu.memory_space<any>>) dst(%135 : memref<1x128xf32, #tpu.memory_space<vmem>>)
    %c2_i32_136 = arith.constant 2 : i32
    %c0_i32_137 = arith.constant 0 : i32
    %c0_i32_138 = arith.constant 0 : i32
    %138 = tpu.memref_slice %arg5[%c0_i32_137, %c0_i32_138] : memref<64x128xf32, #tpu.memory_space<any>> -> memref<1x128xf32, #tpu.memory_space<any>>
    %c0_i32_139 = arith.constant 0 : i32
    %c0_i32_140 = arith.constant 0 : i32
    %139 = tpu.memref_slice %arg11[%0, %c0_i32_139, %c0_i32_140] : memref<2x8x128xf32, #tpu.memory_space<vmem>> -> memref<1x1x128xf32, #tpu.memory_space<vmem>>
    %140 = tpu.memref_squeeze %139 : memref<1x1x128xf32, #tpu.memory_space<vmem>> -> memref<1x128xf32, #tpu.memory_space<vmem>>
    %141 = tpu.memref_slice %arg13[%c2_i32_136, %0] : memref<4x2x!tpu.dma_semaphore, #tpu.memory_space<semaphore_mem>> -> memref<1x1x!tpu.dma_semaphore, #tpu.memory_space<semaphore_mem>>
    %142 = tpu.memref_squeeze %141 : memref<1x1x!tpu.dma_semaphore, #tpu.memory_space<semaphore_mem>> -> memref<!tpu.dma_semaphore, #tpu.memory_space<semaphore_mem>>
    tpu.wait_dma2 semaphore(%142 : memref<!tpu.dma_semaphore, #tpu.memory_space<semaphore_mem>>) src(%138 : memref<1x128xf32, #tpu.memory_space<any>>) dst(%140 : memref<1x128xf32, #tpu.memory_space<vmem>>)
    %c3_i32_141 = arith.constant 3 : i32
    %c0_i32_142 = arith.constant 0 : i32
    %c0_i32_143 = arith.constant 0 : i32
    %143 = tpu.memref_slice %arg5[%c0_i32_142, %c0_i32_143] : memref<64x128xf32, #tpu.memory_space<any>> -> memref<1x128xf32, #tpu.memory_space<any>>
    %c0_i32_144 = arith.constant 0 : i32
    %c0_i32_145 = arith.constant 0 : i32
    %144 = tpu.memref_slice %arg12[%0, %c0_i32_144, %c0_i32_145] : memref<2x8x128xf32, #tpu.memory_space<vmem>> -> memref<1x1x128xf32, #tpu.memory_space<vmem>>
    %145 = tpu.memref_squeeze %144 : memref<1x1x128xf32, #tpu.memory_space<vmem>> -> memref<1x128xf32, #tpu.memory_space<vmem>>
    %146 = tpu.memref_slice %arg13[%c3_i32_141, %0] : memref<4x2x!tpu.dma_semaphore, #tpu.memory_space<semaphore_mem>> -> memref<1x1x!tpu.dma_semaphore, #tpu.memory_space<semaphore_mem>>
    %147 = tpu.memref_squeeze %146 : memref<1x1x!tpu.dma_semaphore, #tpu.memory_space<semaphore_mem>> -> memref<!tpu.dma_semaphore, #tpu.memory_space<semaphore_mem>>
    tpu.wait_dma2 semaphore(%147 : memref<!tpu.dma_semaphore, #tpu.memory_space<semaphore_mem>>) src(%143 : memref<1x128xf32, #tpu.memory_space<any>>) dst(%145 : memref<1x128xf32, #tpu.memory_space<vmem>>)
    %c7_i32 = arith.constant 7 : i32
    %c0_i32_146 = arith.constant 0 : i32
    %c0_i32_147 = arith.constant 0 : i32
    %c0_i32_148 = arith.constant 0 : i32
    %148 = tpu.memref_slice %arg5[%c0_i32_147, %c0_i32_148] : memref<64x128xf32, #tpu.memory_space<any>> -> memref<1x128xf32, #tpu.memory_space<any>>
    %c0_i32_149 = arith.constant 0 : i32
    %c0_i32_150 = arith.constant 0 : i32
    %149 = tpu.memref_slice %arg9[%0, %c0_i32_149, %c0_i32_150] : memref<2x8x128xf32, #tpu.memory_space<vmem>> -> memref<1x1x128xf32, #tpu.memory_space<vmem>>
    %150 = tpu.memref_squeeze %149 : memref<1x1x128xf32, #tpu.memory_space<vmem>> -> memref<1x128xf32, #tpu.memory_space<vmem>>
    %151 = tpu.memref_slice %arg13[%c0_i32_146, %0] : memref<4x2x!tpu.dma_semaphore, #tpu.memory_space<semaphore_mem>> -> memref<1x1x!tpu.dma_semaphore, #tpu.memory_space<semaphore_mem>>
    %152 = tpu.memref_squeeze %151 : memref<1x1x!tpu.dma_semaphore, #tpu.memory_space<semaphore_mem>> -> memref<!tpu.dma_semaphore, #tpu.memory_space<semaphore_mem>>
    tpu.wait_dma2 semaphore(%152 : memref<!tpu.dma_semaphore, #tpu.memory_space<semaphore_mem>>) src(%148 : memref<1x128xf32, #tpu.memory_space<any>>) dst(%150 : memref<1x128xf32, #tpu.memory_space<vmem>>)
    %c1_i32_151 = arith.constant 1 : i32
    %c0_i32_152 = arith.constant 0 : i32
    %c0_i32_153 = arith.constant 0 : i32
    %153 = tpu.memref_slice %arg6[%c0_i32_152, %c0_i32_153] : memref<16x128xf32, #tpu.memory_space<any>> -> memref<1x128xf32, #tpu.memory_space<any>>
    %c0_i32_154 = arith.constant 0 : i32
    %c0_i32_155 = arith.constant 0 : i32
    %154 = tpu.memref_slice %arg10[%0, %c0_i32_154, %c0_i32_155] : memref<2x8x128xf32, #tpu.memory_space<vmem>> -> memref<1x1x128xf32, #tpu.memory_space<vmem>>
    %155 = tpu.memref_squeeze %154 : memref<1x1x128xf32, #tpu.memory_space<vmem>> -> memref<1x128xf32, #tpu.memory_space<vmem>>
    %156 = tpu.memref_slice %arg13[%c1_i32_151, %0] : memref<4x2x!tpu.dma_semaphore, #tpu.memory_space<semaphore_mem>> -> memref<1x1x!tpu.dma_semaphore, #tpu.memory_space<semaphore_mem>>
    %157 = tpu.memref_squeeze %156 : memref<1x1x!tpu.dma_semaphore, #tpu.memory_space<semaphore_mem>> -> memref<!tpu.dma_semaphore, #tpu.memory_space<semaphore_mem>>
    tpu.wait_dma2 semaphore(%157 : memref<!tpu.dma_semaphore, #tpu.memory_space<semaphore_mem>>) src(%153 : memref<1x128xf32, #tpu.memory_space<any>>) dst(%155 : memref<1x128xf32, #tpu.memory_space<vmem>>)
    %c2_i32_156 = arith.constant 2 : i32
    %c0_i32_157 = arith.constant 0 : i32
    %c0_i32_158 = arith.constant 0 : i32
    %158 = tpu.memref_slice %arg5[%c0_i32_157, %c0_i32_158] : memref<64x128xf32, #tpu.memory_space<any>> -> memref<1x128xf32, #tpu.memory_space<any>>
    %c0_i32_159 = arith.constant 0 : i32
    %c0_i32_160 = arith.constant 0 : i32
    %159 = tpu.memref_slice %arg11[%0, %c0_i32_159, %c0_i32_160] : memref<2x8x128xf32, #tpu.memory_space<vmem>> -> memref<1x1x128xf32, #tpu.memory_space<vmem>>
    %160 = tpu.memref_squeeze %159 : memref<1x1x128xf32, #tpu.memory_space<vmem>> -> memref<1x128xf32, #tpu.memory_space<vmem>>
    %161 = tpu.memref_slice %arg13[%c2_i32_156, %0] : memref<4x2x!tpu.dma_semaphore, #tpu.memory_space<semaphore_mem>> -> memref<1x1x!tpu.dma_semaphore, #tpu.memory_space<semaphore_mem>>
    %162 = tpu.memref_squeeze %161 : memref<1x1x!tpu.dma_semaphore, #tpu.memory_space<semaphore_mem>> -> memref<!tpu.dma_semaphore, #tpu.memory_space<semaphore_mem>>
    tpu.wait_dma2 semaphore(%162 : memref<!tpu.dma_semaphore, #tpu.memory_space<semaphore_mem>>) src(%158 : memref<1x128xf32, #tpu.memory_space<any>>) dst(%160 : memref<1x128xf32, #tpu.memory_space<vmem>>)
    %c3_i32_161 = arith.constant 3 : i32
    %c0_i32_162 = arith.constant 0 : i32
    %c0_i32_163 = arith.constant 0 : i32
    %163 = tpu.memref_slice %arg5[%c0_i32_162, %c0_i32_163] : memref<64x128xf32, #tpu.memory_space<any>> -> memref<1x128xf32, #tpu.memory_space<any>>
    %c0_i32_164 = arith.constant 0 : i32
    %c0_i32_165 = arith.constant 0 : i32
    %164 = tpu.memref_slice %arg12[%0, %c0_i32_164, %c0_i32_165] : memref<2x8x128xf32, #tpu.memory_space<vmem>> -> memref<1x1x128xf32, #tpu.memory_space<vmem>>
    %165 = tpu.memref_squeeze %164 : memref<1x1x128xf32, #tpu.memory_space<vmem>> -> memref<1x128xf32, #tpu.memory_space<vmem>>
    %166 = tpu.memref_slice %arg13[%c3_i32_161, %0] : memref<4x2x!tpu.dma_semaphore, #tpu.memory_space<semaphore_mem>> -> memref<1x1x!tpu.dma_semaphore, #tpu.memory_space<semaphore_mem>>
    %167 = tpu.memref_squeeze %166 : memref<1x1x!tpu.dma_semaphore, #tpu.memory_space<semaphore_mem>> -> memref<!tpu.dma_semaphore, #tpu.memory_space<semaphore_mem>>
    tpu.wait_dma2 semaphore(%167 : memref<!tpu.dma_semaphore, #tpu.memory_space<semaphore_mem>>) src(%163 : memref<1x128xf32, #tpu.memory_space<any>>) dst(%165 : memref<1x128xf32, #tpu.memory_space<vmem>>)
    %168 = arith.index_cast %0 : i32 to index
    %c0 = arith.constant 0 : index
    %c0_166 = arith.constant 0 : index
    %169 = vector.load %arg9[%168, %c0, %c0_166] : memref<2x8x128xf32, #tpu.memory_space<vmem>>, vector<1x8x128xf32>
    %170 = vector.shape_cast %169 : vector<1x8x128xf32> to vector<8x128xf32>
    %171 = arith.index_cast %0 : i32 to index
    %c0_167 = arith.constant 0 : index
    %c0_168 = arith.constant 0 : index
    %172 = vector.load %arg10[%171, %c0_167, %c0_168] : memref<2x8x128xf32, #tpu.memory_space<vmem>>, vector<1x8x128xf32>
    %173 = vector.shape_cast %172 : vector<1x8x128xf32> to vector<8x128xf32>
    %174 = arith.addf %170, %173 : vector<8x128xf32>
    %175 = arith.index_cast %0 : i32 to index
    %c0_169 = arith.constant 0 : index
    %c0_170 = arith.constant 0 : index
    %176 = vector.load %arg11[%175, %c0_169, %c0_170] : memref<2x8x128xf32, #tpu.memory_space<vmem>>, vector<1x8x128xf32>
    %177 = vector.shape_cast %176 : vector<1x8x128xf32> to vector<8x128xf32>
    %178 = arith.subf %174, %177 : vector<8x128xf32>
    %c0_171 = arith.constant 0 : index
    %c0_172 = arith.constant 0 : index
    %179 = vector.load %arg7[%c0_171, %c0_172] : memref<8x128xf32, #tpu.memory_space<vmem>>, vector<8x128xf32>
    tpu.vector_store %arg7[%c0_171, %c0_172], %178 {strides = array<i32>} : memref<8x128xf32, #tpu.memory_space<vmem>>, vector<8x128xf32>,
    %180 = arith.index_cast %0 : i32 to index
    %c0_173 = arith.constant 0 : index
    %c0_174 = arith.constant 0 : index
    %181 = vector.load %arg12[%180, %c0_173, %c0_174] : memref<2x8x128xf32, #tpu.memory_space<vmem>>, vector<1x8x128xf32>
    %182 = vector.shape_cast %181 : vector<1x8x128xf32> to vector<8x128xf32>
    %183 = arith.subf %174, %182 : vector<8x128xf32>
    %c0_175 = arith.constant 0 : index
    %c0_176 = arith.constant 0 : index
    %184 = vector.load %arg8[%c0_175, %c0_176] : memref<8x128xf32, #tpu.memory_space<vmem>>, vector<8x128xf32>
    tpu.vector_store %arg8[%c0_175, %c0_176], %183 {strides = array<i32>} : memref<8x128xf32, #tpu.memory_space<vmem>>, vector<8x128xf32>,
    return
  }
  func.func @transform_2(%arg0: i32, %arg1: memref<32xi32, #tpu.memory_space<smem>>, %arg2: memref<32xi32, #tpu.memory_space<smem>>, %arg3: memref<32xi32, #tpu.memory_space<smem>>, %arg4: memref<32xi32, #tpu.memory_space<smem>>) -> (i32, i32) {
    %c0_i32 = arith.constant 0 : i32
    %c0_i32_0 = arith.constant 0 : i32
    return %arg0, %c0_i32 : i32, i32
  }
  func.func @transform_3(%arg0: i32, %arg1: memref<32xi32, #tpu.memory_space<smem>>, %arg2: memref<32xi32, #tpu.memory_space<smem>>, %arg3: memref<32xi32, #tpu.memory_space<smem>>, %arg4: memref<32xi32, #tpu.memory_space<smem>>) -> (i32, i32) {
    %c0_i32 = arith.constant 0 : i32
    %c0_i32_0 = arith.constant 0 : i32
    return %arg0, %c0_i32 : i32, i32
  }
}

</mosaic_0001>

<llo_original>
// kernel: tpu_custom_call.1
$region0: #{tpu_custom_call.1}
  #allocation0 [shape = 'u32[]', space=smem, size = 0x4, offset = 0x4, fixed_abs, tag = 'smem constant byte address 0x4 - core index']
  #allocation1 [shape = 'u32[144,128]{1,0:T(1,128)}', space=vmem, size = 0x12000, scoped, tag = 'internal scratch']
  #allocation2 [shape = 'f32[2,8,128]{2,1,0:T(8,128)}', space=vmem, size = 0x2000, scoped, tag = 'scratch operand']
  #allocation3 [shape = 'f32[2,8,128]{2,1,0:T(8,128)}', space=vmem, size = 0x2000, scoped, tag = 'scratch operand']
  #allocation4 [shape = 'f32[2,8,128]{2,1,0:T(8,128)}', space=vmem, size = 0x2000, scoped, tag = 'scratch operand']
  #allocation5 [shape = 'f32[2,8,128]{2,1,0:T(8,128)}', space=vmem, size = 0x2000, scoped, tag = 'scratch operand']
  #allocation6 [shape = 's32[8]{0}', space=sflag, size = 0x20, scoped, tag = 'scratch operand']
  #allocation7 [shape = 's32[1]{0}', space=sflag, size = 0x4, scoped, tag = 'scoped memory for tpu_custom_call.1']
  #allocation8 [shape = 'u8[512]{0}', space=smem, size = 0x200, scoped, tag = 'prefetched SMEM operand 0']
  #allocation9 [shape = 'u8[512]{0}', space=smem, size = 0x200, scoped, tag = 'prefetched SMEM operand 1']
  #allocation10 [shape = 'u8[512]{0}', space=smem, size = 0x200, scoped, tag = 'prefetched SMEM operand 2']
  #allocation11 [shape = 'u8[512]{0}', space=smem, size = 0x200, scoped, tag = 'prefetched SMEM operand 3']
  #allocation16 [shape = 's32[]', space=sflag, size = 0x4, offset = 0, fixed_abs, tag = 'sflag constant byte address 0x0 - dummy sync flag']
  #allocation17 [shape = 's32[]', space=sflag, size = 0x4, offset = 0, fixed_abs, tag = 'sflag constant byte address 0x0 - dummy sync flag']
  #allocation18 [shape = 'u32[]', space=smem, size = 0x4, offset = 0x44, fixed_abs, tag = 'smem constant byte address 0x44 - assertion arg 0']
  #allocation19 [shape = 'u32[]', space=smem, size = 0x4, offset = 0x48, fixed_abs, tag = 'smem constant byte address 0x48 - assertion arg 1']
  #allocation20 [shape = 's32[]', space=sflag, size = 0x4, offset = 0, fixed_abs, tag = 'sflag constant byte address 0x0 - dummy sync flag']
  #allocation21 [shape = 's32[]', space=sflag, size = 0x4, offset = 0, fixed_abs, tag = 'sflag constant byte address 0x0 - dummy sync flag']
  #allocation22 [shape = 's32[]', space=sflag, size = 0x4, offset = 0, fixed_abs, tag = 'sflag constant byte address 0x0 - dummy sync flag']
  #allocation23 [shape = 's32[]', space=sflag, size = 0x4, offset = 0, fixed_abs, tag = 'sflag constant byte address 0x0 - dummy sync flag']
  #allocation24 [shape = 's32[]', space=sflag, size = 0x4, offset = 0, fixed_abs, tag = 'sflag constant byte address 0x0 - dummy sync flag']
  #allocation25 [shape = 's32[]', space=sflag, size = 0x4, offset = 0, fixed_abs, tag = 'sflag constant byte address 0x0 - dummy sync flag']
  #allocation26 [shape = 's32[]', space=sflag, size = 0x4, offset = 0, fixed_abs, tag = 'sflag constant byte address 0x0 - dummy sync flag']
  #allocation27 [shape = 's32[]', space=sflag, size = 0x4, offset = 0, fixed_abs, tag = 'sflag constant byte address 0x0 - dummy sync flag']
  #allocation28 [shape = 's32[]', space=sflag, size = 0x4, offset = 0, fixed_abs, tag = 'sflag constant byte address 0x0 - dummy sync flag']
  #allocation29 [shape = 's32[]', space=sflag, size = 0x4, offset = 0, fixed_abs, tag = 'sflag constant byte address 0x0 - dummy sync flag']
  #allocation30 [shape = 's32[]', space=sflag, size = 0x4, offset = 0, fixed_abs, tag = 'sflag constant byte address 0x0 - dummy sync flag']
  #allocation31 [shape = 's32[]', space=sflag, size = 0x4, offset = 0, fixed_abs, tag = 'sflag constant byte address 0x0 - dummy sync flag']
  #allocation32 [shape = 's32[]', space=sflag, size = 0x4, offset = 0, fixed_abs, tag = 'sflag constant byte address 0x0 - dummy sync flag']
  #allocation33 [shape = 's32[]', space=sflag, size = 0x4, offset = 0, fixed_abs, tag = 'sflag constant byte address 0x0 - dummy sync flag']
  #allocation34 [shape = 's32[]', space=sflag, size = 0x4, offset = 0, fixed_abs, tag = 'sflag constant byte address 0x0 - dummy sync flag']
  #allocation35 [shape = 's32[]', space=sflag, size = 0x4, offset = 0, fixed_abs, tag = 'sflag constant byte address 0x0 - dummy sync flag']
  #allocation36 [shape = 's32[]', space=sflag, size = 0x4, offset = 0, fixed_abs, tag = 'sflag constant byte address 0x0 - dummy sync flag']
  #allocation37 [shape = 's32[]', space=sflag, size = 0x4, offset = 0, fixed_abs, tag = 'sflag constant byte address 0x0 - dummy sync flag']
  #allocation38 [shape = 's32[]', space=sflag, size = 0x4, offset = 0, fixed_abs, tag = 'sflag constant byte address 0x0 - dummy sync flag']
  #allocation39 [shape = 's32[]', space=sflag, size = 0x4, offset = 0, fixed_abs, tag = 'sflag constant byte address 0x0 - dummy sync flag']
  #allocation40 [shape = 's32[]', space=sflag, size = 0x4, offset = 0, fixed_abs, tag = 'sflag constant byte address 0x0 - dummy sync flag']
  #allocation41 [shape = 's32[]', space=sflag, size = 0x4, offset = 0, fixed_abs, tag = 'sflag constant byte address 0x0 - dummy sync flag']
  #allocation42 [shape = 's32[]', space=sflag, size = 0x4, offset = 0, fixed_abs, tag = 'sflag constant byte address 0x0 - dummy sync flag']
  #allocation43 [shape = 's32[]', space=sflag, size = 0x4, offset = 0, fixed_abs, tag = 'sflag constant byte address 0x0 - dummy sync flag']
  #allocation44 [shape = 's32[]', space=sflag, size = 0x4, offset = 0, fixed_abs, tag = 'sflag constant byte address 0x0 - dummy sync flag']
  #allocation45 [shape = 's32[]', space=sflag, size = 0x4, offset = 0, fixed_abs, tag = 'sflag constant byte address 0x0 - dummy sync flag']
  #allocation46 [shape = 's32[]', space=sflag, size = 0x4, offset = 0, fixed_abs, tag = 'sflag constant byte address 0x0 - dummy sync flag']
  #allocation47 [shape = 's32[]', space=sflag, size = 0x4, offset = 0, fixed_abs, tag = 'sflag constant byte address 0x0 - dummy sync flag']
  #allocation48 [shape = 's32[]', space=sflag, size = 0x4, offset = 0, fixed_abs, tag = 'sflag constant byte address 0x0 - dummy sync flag']
  #allocation49 [shape = 's32[]', space=sflag, size = 0x4, offset = 0, fixed_abs, tag = 'sflag constant byte address 0x0 - dummy sync flag']
  #allocation50 [shape = 's32[]', space=sflag, size = 0x4, offset = 0, fixed_abs, tag = 'sflag constant byte address 0x0 - dummy sync flag']
  #allocation51 [shape = 's32[]', space=sflag, size = 0x4, offset = 0, fixed_abs, tag = 'sflag constant byte address 0x0 - dummy sync flag']
  #allocation52 [shape = 's32[]', space=sflag, size = 0x4, offset = 0, fixed_abs, tag = 'sflag constant byte address 0x0 - dummy sync flag']
  #allocation53 [shape = 's32[]', space=sflag, size = 0x4, offset = 0, fixed_abs, tag = 'sflag constant byte address 0x0 - dummy sync flag']
  #allocation54 [shape = 's32[]', space=sflag, size = 0x4, offset = 0, fixed_abs, tag = 'sflag constant byte address 0x0 - dummy sync flag']
  #allocation55 [shape = 's32[]', space=sflag, size = 0x4, offset = 0, fixed_abs, tag = 'sflag constant byte address 0x0 - dummy sync flag']
  #allocation56 [shape = 's32[]', space=sflag, size = 0x4, offset = 0, fixed_abs, tag = 'sflag constant byte address 0x0 - dummy sync flag']
  #allocation57 [shape = 's32[]', space=sflag, size = 0x4, offset = 0, fixed_abs, tag = 'sflag constant byte address 0x0 - dummy sync flag']
  #allocation58 [shape = 's32[]', space=sflag, size = 0x4, offset = 0, fixed_abs, tag = 'sflag constant byte address 0x0 - dummy sync flag']
  #allocation59 [shape = 's32[]', space=sflag, size = 0x4, offset = 0, fixed_abs, tag = 'sflag constant byte address 0x0 - dummy sync flag']
  #allocation60 [shape = 's32[]', space=sflag, size = 0x4, offset = 0, fixed_abs, tag = 'sflag constant byte address 0x0 - dummy sync flag']
  #allocation61 [shape = 's32[]', space=sflag, size = 0x4, offset = 0, fixed_abs, tag = 'sflag constant byte address 0x0 - dummy sync flag']
  #allocation62 [shape = 's32[]', space=sflag, size = 0x4, offset = 0, fixed_abs, tag = 'sflag constant byte address 0x0 - dummy sync flag']
  #allocation63 [shape = 's32[]', space=sflag, size = 0x4, offset = 0, fixed_abs, tag = 'sflag constant byte address 0x0 - dummy sync flag']
  #allocation64 [shape = 's32[]', space=sflag, size = 0x4, offset = 0, fixed_abs, tag = 'sflag constant byte address 0x0 - dummy sync flag']
  #allocation65 [shape = 's32[]', space=sflag, size = 0x4, offset = 0, fixed_abs, tag = 'sflag constant byte address 0x0 - dummy sync flag']
  #allocation66 [shape = 's32[]', space=sflag, size = 0x4, offset = 0, fixed_abs, tag = 'sflag constant byte address 0x0 - dummy sync flag']
  #allocation67 [shape = 's32[]', space=sflag, size = 0x4, offset = 0, fixed_abs, tag = 'sflag constant byte address 0x0 - dummy sync flag']
  #allocation68 [shape = 's32[]', space=sflag, size = 0x4, offset = 0, fixed_abs, tag = 'sflag constant byte address 0x0 - dummy sync flag']
  #allocation69 [shape = 's32[]', space=sflag, size = 0x4, offset = 0, fixed_abs, tag = 'sflag constant byte address 0x0 - dummy sync flag']
  #allocation70 [shape = 's32[]', space=sflag, size = 0x4, offset = 0, fixed_abs, tag = 'sflag constant byte address 0x0 - dummy sync flag']
  #allocation71 [shape = 's32[]', space=sflag, size = 0x4, offset = 0, fixed_abs, tag = 'sflag constant byte address 0x0 - dummy sync flag']
  #allocation72 [shape = 's32[]', space=sflag, size = 0x4, offset = 0, fixed_abs, tag = 'sflag constant byte address 0x0 - dummy sync flag']
  #allocation73 [shape = 's32[]', space=sflag, size = 0x4, offset = 0, fixed_abs, tag = 'sflag constant byte address 0x0 - dummy sync flag']
  #allocation74 [shape = 's32[]', space=sflag, size = 0x4, offset = 0, fixed_abs, tag = 'sflag constant byte address 0x0 - dummy sync flag']
  #allocation75 [shape = 's32[]', space=sflag, size = 0x4, offset = 0, fixed_abs, tag = 'sflag constant byte address 0x0 - dummy sync flag']
  #allocation76 [shape = 's32[]', space=sflag, size = 0x4, offset = 0, fixed_abs, tag = 'sflag constant byte address 0x0 - dummy sync flag']
  #allocation77 [shape = 's32[]', space=sflag, size = 0x4, offset = 0, fixed_abs, tag = 'sflag constant byte address 0x0 - dummy sync flag']
  #allocation78 [shape = 's32[]', space=sflag, size = 0x4, offset = 0, fixed_abs, tag = 'sflag constant byte address 0x0 - dummy sync flag']
  #allocation79 [shape = 's32[]', space=sflag, size = 0x4, offset = 0, fixed_abs, tag = 'sflag constant byte address 0x0 - dummy sync flag']
  #allocation80 [shape = 's32[]', space=sflag, size = 0x4, offset = 0, fixed_abs, tag = 'sflag constant byte address 0x0 - dummy sync flag']
  #allocation81 [shape = 's32[]', space=sflag, size = 0x4, offset = 0, fixed_abs, tag = 'sflag constant byte address 0x0 - dummy sync flag']
  #allocation82 [shape = 's32[]', space=sflag, size = 0x4, offset = 0, fixed_abs, tag = 'sflag constant byte address 0x0 - dummy sync flag']
  #allocation83 [shape = 's32[]', space=sflag, size = 0x4, offset = 0, fixed_abs, tag = 'sflag constant byte address 0x0 - dummy sync flag']
  #allocation84 [shape = 's32[]', space=sflag, size = 0x4, offset = 0, fixed_abs, tag = 'sflag constant byte address 0x0 - dummy sync flag']
  #allocation85 [shape = 's32[]', space=sflag, size = 0x4, offset = 0, fixed_abs, tag = 'sflag constant byte address 0x0 - dummy sync flag']
  #allocation86 [shape = 's32[]', space=sflag, size = 0x4, offset = 0, fixed_abs, tag = 'sflag constant byte address 0x0 - dummy sync flag']
  #allocation87 [shape = 's32[]', space=sflag, size = 0x4, offset = 0, fixed_abs, tag = 'sflag constant byte address 0x0 - dummy sync flag']
  #allocation88 [shape = 's32[]', space=sflag, size = 0x4, offset = 0, fixed_abs, tag = 'sflag constant byte address 0x0 - dummy sync flag']
  #allocation89 [shape = 's32[]', space=sflag, size = 0x4, offset = 0, fixed_abs, tag = 'sflag constant byte address 0x0 - dummy sync flag']
  #allocation90 [shape = 's32[]', space=sflag, size = 0x4, offset = 0, fixed_abs, tag = 'sflag constant byte address 0x0 - dummy sync flag']
  #allocation91 [shape = 's32[]', space=sflag, size = 0x4, offset = 0, fixed_abs, tag = 'sflag constant byte address 0x0 - dummy sync flag']
  #allocation92 [shape = 's32[]', space=sflag, size = 0x4, offset = 0, fixed_abs, tag = 'sflag constant byte address 0x0 - dummy sync flag']
  #allocation93 [shape = 's32[]', space=sflag, size = 0x4, offset = 0, fixed_abs, tag = 'sflag constant byte address 0x0 - dummy sync flag']
  #allocation94 [shape = 's32[]', space=sflag, size = 0x4, offset = 0, fixed_abs, tag = 'sflag constant byte address 0x0 - dummy sync flag']
  #allocation95 [shape = 's32[]', space=sflag, size = 0x4, offset = 0, fixed_abs, tag = 'sflag constant byte address 0x0 - dummy sync flag']
  #allocation96 [shape = 's32[]', space=sflag, size = 0x4, offset = 0, fixed_abs, tag = 'sflag constant byte address 0x0 - dummy sync flag']
  #allocation97 [shape = 's32[]', space=sflag, size = 0x4, offset = 0, fixed_abs, tag = 'sflag constant byte address 0x0 - dummy sync flag']
  #allocation98 [shape = 's32[]', space=sflag, size = 0x4, offset = 0, fixed_abs, tag = 'sflag constant byte address 0x0 - dummy sync flag']
  #allocation99 [shape = 's32[]', space=sflag, size = 0x4, offset = 0, fixed_abs, tag = 'sflag constant byte address 0x0 - dummy sync flag']
  #allocation100 [shape = 's32[]', space=sflag, size = 0x4, offset = 0, fixed_abs, tag = 'sflag constant byte address 0x0 - dummy sync flag']
  #allocation101 [shape = 's32[]', space=sflag, size = 0x4, offset = 0, fixed_abs, tag = 'sflag constant byte address 0x0 - dummy sync flag']
  #allocation102 [shape = 's32[]', space=sflag, size = 0x4, offset = 0, fixed_abs, tag = 'sflag constant byte address 0x0 - dummy sync flag']
  #allocation103 [shape = 's32[]', space=sflag, size = 0x4, offset = 0, fixed_abs, tag = 'sflag constant byte address 0x0 - dummy sync flag']
  #allocation104 [shape = 's32[]', space=sflag, size = 0x4, offset = 0, fixed_abs, tag = 'sflag constant byte address 0x0 - dummy sync flag']
  #allocation105 [shape = 's32[]', space=sflag, size = 0x4, offset = 0, fixed_abs, tag = 'sflag constant byte address 0x0 - dummy sync flag']
  #allocation106 [shape = 's32[]', space=sflag, size = 0x4, offset = 0, fixed_abs, tag = 'sflag constant byte address 0x0 - dummy sync flag']
  #allocation107 [shape = 's32[]', space=sflag, size = 0x4, offset = 0, fixed_abs, tag = 'sflag constant byte address 0x0 - dummy sync flag']
  #allocation108 [shape = 's32[]', space=sflag, size = 0x4, offset = 0, fixed_abs, tag = 'sflag constant byte address 0x0 - dummy sync flag']
  #allocation109 [shape = 's32[]', space=sflag, size = 0x4, offset = 0, fixed_abs, tag = 'sflag constant byte address 0x0 - dummy sync flag']
  #allocation110 [shape = 's32[]', space=sflag, size = 0x4, offset = 0, fixed_abs, tag = 'sflag constant byte address 0x0 - dummy sync flag']
  #allocation111 [shape = 's32[]', space=sflag, size = 0x4, offset = 0, fixed_abs, tag = 'sflag constant byte address 0x0 - dummy sync flag']
  #allocation112 [shape = 's32[]', space=sflag, size = 0x4, offset = 0, fixed_abs, tag = 'sflag constant byte address 0x0 - dummy sync flag']
  #allocation113 [shape = 's32[]', space=sflag, size = 0x4, offset = 0, fixed_abs, tag = 'sflag constant byte address 0x0 - dummy sync flag']
  #allocation114 [shape = 's32[]', space=sflag, size = 0x4, offset = 0, fixed_abs, tag = 'sflag constant byte address 0x0 - dummy sync flag']
  #allocation115 [shape = 's32[]', space=sflag, size = 0x4, offset = 0, fixed_abs, tag = 'sflag constant byte address 0x0 - dummy sync flag']
  #allocation116 [shape = 's32[]', space=sflag, size = 0x4, offset = 0, fixed_abs, tag = 'sflag constant byte address 0x0 - dummy sync flag']
  #allocation117 [shape = 's32[]', space=sflag, size = 0x4, offset = 0, fixed_abs, tag = 'sflag constant byte address 0x0 - dummy sync flag']
  #allocation118 [shape = 's32[]', space=sflag, size = 0x4, offset = 0, fixed_abs, tag = 'sflag constant byte address 0x0 - dummy sync flag']
  #allocation119 [shape = 's32[]', space=sflag, size = 0x4, offset = 0, fixed_abs, tag = 'sflag constant byte address 0x0 - dummy sync flag']
  #allocation120 [shape = 's32[]', space=sflag, size = 0x4, offset = 0, fixed_abs, tag = 'sflag constant byte address 0x0 - dummy sync flag']
  #allocation121 [shape = 's32[]', space=sflag, size = 0x4, offset = 0, fixed_abs, tag = 'sflag constant byte address 0x0 - dummy sync flag']
  #allocation122 [shape = 's32[]', space=sflag, size = 0x4, offset = 0, fixed_abs, tag = 'sflag constant byte address 0x0 - dummy sync flag']
  #allocation123 [shape = 's32[]', space=sflag, size = 0x4, offset = 0, fixed_abs, tag = 'sflag constant byte address 0x0 - dummy sync flag']
  #allocation124 [shape = 's32[]', space=sflag, size = 0x4, offset = 0, fixed_abs, tag = 'sflag constant byte address 0x0 - dummy sync flag']
  #allocation125 [shape = 's32[]', space=sflag, size = 0x4, offset = 0, fixed_abs, tag = 'sflag constant byte address 0x0 - dummy sync flag']
  #allocation126 [shape = 's32[]', space=sflag, size = 0x4, offset = 0, fixed_abs, tag = 'sflag constant byte address 0x0 - dummy sync flag']
  #allocation127 [shape = 's32[]', space=sflag, size = 0x4, offset = 0, fixed_abs, tag = 'sflag constant byte address 0x0 - dummy sync flag']
  #allocation128 [shape = 's32[]', space=sflag, size = 0x4, offset = 0, fixed_abs, tag = 'sflag constant byte address 0x0 - dummy sync flag']
  #allocation129 [shape = 's32[]', space=sflag, size = 0x4, offset = 0, fixed_abs, tag = 'sflag constant byte address 0x0 - dummy sync flag']
  %s0 = inlined_call_operand.hbm [shape: s32[32], index: 0, kind: input, shape index: {}]
  %s1 = inlined_call_operand.vmem [shape: s32[32], index: 1, kind: input, shape index: {}]
  %s2 = inlined_call_operand.vmem [shape: s32[32], index: 2, kind: input, shape index: {}]
  %s3 = inlined_call_operand.hbm [shape: s32[32], index: 3, kind: input, shape index: {}]
  %s4 = inlined_call_operand.hbm [shape: f32[64,128], index: 4, kind: input, shape index: {}]
  %s5 = inlined_call_operand.vmem [shape: f32[16,128], index: 5, kind: input, shape index: {}]
  %s6 = inlined_call_operand.hbm [shape: f32[32,128], index: 6, kind: output, shape index: {0}]
  %s7 = inlined_call_operand.hbm [shape: f32[32,128], index: 7, kind: output, shape index: {1}]
  %8 = xla_tuple %s6, %s7
  %s9 = sld [smem:[#allocation0]]
  $region713: #{tpu_custom_call.1} parent=0
    _
  %s11 = ssub.s32 1, %s9
  %s12 = scalar_select 0, %s11, %s9
  %14 = dma.hbm_to_smem %s0, 16, [#allocation8], [#allocation7]
  %s15 = sshll.u32 %s1, 4
  %s16 = int_to_ptr.vmem [resolvable:$true] %s15
  %18 = dma.vmem_to_smem %s16, 16, [#allocation9], [#allocation7]
  %s19 = sshll.u32 %s2, 4
  %s20 = int_to_ptr.vmem [resolvable:$true] %s19
  %22 = dma.vmem_to_smem %s20, 16, [#allocation10], [#allocation7]
  %24 = dma.hbm_to_smem %s3, 16, [#allocation11], [#allocation7]
  %25 = dma.done [#allocation7], 64
  %26 = sfence
  $region1: #{tpu_custom_call.1} parent=0
    #allocation12 [shape = 'u8[8192]{0}', space=vmem, size = 0x2000, scoped, tag = 'output window, operand 0']
    #allocation13 [shape = 's32[2]{0}', space=sflag, size = 0x8, scoped, tag = 'scoped memory for tpu_custom_call.1']
    #allocation14 [shape = 'u8[8192]{0}', space=vmem, size = 0x2000, scoped, tag = 'output window, operand 1']
    #allocation15 [shape = 's32[2]{0}', space=sflag, size = 0x8, scoped, tag = 'scoped memory for tpu_custom_call.1']
    %27 = vsyncpa [#allocation13], 0
    %s28 = scalar_lea.sflag [#allocation13], 1
    %29 = vsyncpa %s28, 0
    %30 = vsyncpa [#allocation15], 0
    %s31 = scalar_lea.sflag [#allocation15], 1
    %32 = vsyncpa %s31, 0
    loop: start=0, step=1, limit=5
    $region2: #{tpu_custom_call.1} parent=1 // loop_pre_header
      _
    $region3: #{tpu_custom_call.1} parent=1 // loop_header
      %s34 = sphi 0, %s38
      %p35 = scmp.ge.s32.totalorder %s34, 5
      %s43 = sphi 0, %s45
      %s46 = sphi 0, %s43
      %s56 = sphi 0, %s46
      %s62 = sphi 0, %s64
      %s65 = sphi 0, %s62
      %s75 = sphi 0, %s65
    $region4: #{tpu_custom_call.1} parent=1 // loop_header_branch
      %37 = sbr.rel (%p35) target = $region8
    $region5: #{tpu_custom_call.1} parent=1 // loop_body
      %s39 = ssub.s32 %s34, 1
      %s40 = sadd.s32 %s34, 1
      %s41 = ssub.s32 %s34, %s40
      %p42 = scmp.eq.s32.totalorder %s41, 0
      %s44 = sadd.s32 %s43, 1
      %s45 = scalar_select %p42, %s43, %s44
      %p47 = pneg %p42
      %p48 = scmp.eq.s32.totalorder %s34, 3
      %p49 = por %p47, %p48
      %p50 = scmp.ne.s32.totalorder %s43, %s46
      %p51 = scmp.eq.s32.totalorder %s34, 0
      %p52 = por %p50, %p51
      %p53 = scmp.ne.s32.totalorder %s43, %s46
      %p54 = scmp.eq.s32.totalorder %s39, 3
      %p55 = por %p53, %p54
      %p57 = scmp.ne.s32.totalorder %s46, %s56
      %p58 = scmp.eq.s32.totalorder %s39, 0
      %p59 = por %p57, %p58
      %s60 = ssub.s32 %s34, %s40
      %p61 = scmp.eq.s32.totalorder %s60, 0
      %s63 = sadd.s32 %s62, 1
      %s64 = scalar_select %p61, %s62, %s63
      %p66 = pneg %p61
      %p67 = scmp.eq.s32.totalorder %s34, 3
      %p68 = por %p66, %p67
      %p69 = scmp.ne.s32.totalorder %s62, %s65
      %p70 = scmp.eq.s32.totalorder %s34, 0
      %p71 = por %p69, %p70
      %p72 = scmp.ne.s32.totalorder %s62, %s65
      %p73 = scmp.eq.s32.totalorder %s39, 3
      %p74 = por %p72, %p73
      %p76 = scmp.ne.s32.totalorder %s65, %s75
      %p77 = scmp.eq.s32.totalorder %s39, 0
      %p78 = por %p76, %p77
      %p79 = scmp.lt.s32.totalorder %s34, 4
      // Predicated region
      $region9: #{tpu_custom_call.1} parent=5 // pred_check
        %p80 = pneg %p79
      $region10: #{tpu_custom_call.1} parent=5 // pred_check_branch
        %82 = sbr.rel (%p80) target = $region12
      $region11: #{tpu_custom_call.1} parent=5 // pred_region
        %p83 = pneg %p52
        %p84 = pneg %p49
        %s85 = sand.u32 %s43, 1
        %s86 = scalar_lea.sflag [#allocation13], %s85
        %s87 = sand.u32 %s43, 1
        %s88 = smul.addr %s87, 8
        %s89 = scalar_lea.vmem [#allocation12], %s88
        %p90 = pneg %p71
        %p91 = pneg %p68
        %s92 = sand.u32 %s62, 1
        %s93 = scalar_lea.sflag [#allocation15], %s92
        %s94 = sand.u32 %s62, 1
        %s95 = smul.addr %s94, 8
        %s96 = scalar_lea.vmem [#allocation14], %s95
        %p97 = scmp.lt.s32.totalorder %s34, 0
        %s98 = ssub.s32 0, %s34
        %s99 = scalar_select %p97, %s98, %s34
        %s100 = sand.u32 %s99, 1
        %s101 = ssub.s32 0, %s100
        %s102 = scalar_select %p97, %s101, %s100
        %p103 = scmp.eq.s32.totalorder %s34, 0
        // Predicated region
        $region13: #{tpu_custom_call.1} parent=11 // pred_check
          %p104 = pneg %p103
        $region14: #{tpu_custom_call.1} parent=11 // pred_check_branch
          %106 = sbr.rel (%p104) target = $region16
        $region15: #{tpu_custom_call.1} parent=11 // pred_region
          %s107 = sld [smem:[#allocation8]]
          %s108 = smul.addr %s107, 16
          %s109 = scalar_lea.hbm %s4, %s108
          // Predicated region
          $region17: #{tpu_custom_call.1} parent=15 // pred_check
            _
          $region18: #{tpu_custom_call.1} parent=15 // pred_check_branch
            %111 = sbr.rel target = $region20
          $region19: #{tpu_custom_call.1} parent=15 // pred_region
            %112 = sst [smem:[#allocation18]] [#allocation17]
            %113 = sst [smem:[#allocation19]] [#allocation16]
          $region20: #{tpu_custom_call.1} parent=15 // pred_fallthru
            _
          %115 = shalt.err (0)
          %s117 = sshll.u32 [#allocation2], 4
          %s118 = int_to_ptr.vmem [resolvable:$true] %s117
          %120 = dma.hbm_to_vmem [thread:$0]  %s109, 16, %s118, [#allocation6]
          %s121 = sld [smem:[#allocation9]]
          %s122 = scalar_lea.vmem %s5, %s121
          %s123 = scalar_lea.sflag [#allocation6], 2
          %p125 = scmp.lt.u32.totalorder 1, 8
          %p126 = pneg %p125
          // Predicated region
          $region21: #{tpu_custom_call.1} parent=15 // pred_check
            _
          $region22: #{tpu_custom_call.1} parent=15 // pred_check_branch
            %128 = sbr.rel (%p125) target = $region24
          $region23: #{tpu_custom_call.1} parent=15 // pred_region
            %s143 = sand.u32 1, 7
            %p144 = scmp.eq.s32.totalorder %s143, 0
            %p145 = pneg %p144
            // Predicated region
            $region36: #{tpu_custom_call.1} parent=23 // pred_check
              _
            $region37: #{tpu_custom_call.1} parent=23 // pred_check_branch
              %147 = sbr.rel (%p144) target = $region39
            $region38: #{tpu_custom_call.1} parent=23 // pred_region
              %s148 = sand.u32 1, 7
              %s149 = ssub.s32 1, %s148
              %s150 = scalar_lea.vmem %s122, %s149
              %s151 = ssub.s32 1, %s148
              %s152 = scalar_lea.vmem [#allocation3], %s151
              %s153 = sshllo.u32 0, %s148
              loop: start=0, step=1, limit=1
              $region40: #{tpu_custom_call.1} parent=38 // loop_pre_header
                _
              $region41: #{tpu_custom_call.1} parent=38 // loop_header
                %s155 = sphi 0, %s159
                %p156 = scmp.ge.s32.totalorder %s155, 1
                %s160 = sphi %s150, %s150
                %s161 = sphi %s152, %s152
              $region42: #{tpu_custom_call.1} parent=38 // loop_header_branch
                %158 = sbr.rel (%p156) target = $region46
              $region43: #{tpu_custom_call.1} parent=38 // loop_body
                %v162 = vld [vmem:[%s160] sm:%s153]
                %163 = vst [vmem:[%s161] sm:%s153] %v162
              $region44: #{tpu_custom_call.1} parent=38 // loop_footer
                %s159 = sadd.s32 1, %s155
              $region45: #{tpu_custom_call.1} parent=38 // loop_footer_branch
                %154 = sbr.rel target = $region41
              $region46: #{tpu_custom_call.1} parent=38 // loop_exit
                _
            $region39: #{tpu_custom_call.1} parent=23 // pred_fallthru
              _
          $region24: #{tpu_custom_call.1} parent=15 // pred_fallthru
            _
          // Predicated region
          $region25: #{tpu_custom_call.1} parent=15 // pred_check
            %p129 = pneg %p125
          $region26: #{tpu_custom_call.1} parent=15 // pred_check_branch
            %131 = sbr.rel (%p129) target = $region28
          $region27: #{tpu_custom_call.1} parent=15 // pred_region
            %s132 = sshllo.u32 0, 1
            loop: start=0, step=1, limit=1
            $region29: #{tpu_custom_call.1} parent=27 // loop_pre_header
              _
            $region30: #{tpu_custom_call.1} parent=27 // loop_header
              %s134 = sphi 0, %s138
              %p135 = scmp.ge.s32.totalorder %s134, 1
              %s139 = sphi %s122, %s122
              %s140 = sphi [#allocation3], [#allocation3]
            $region31: #{tpu_custom_call.1} parent=27 // loop_header_branch
              %137 = sbr.rel (%p135) target = $region35
            $region32: #{tpu_custom_call.1} parent=27 // loop_body
              %v141 = vld [vmem:[%s139] sm:%s132]
              %142 = vst [vmem:[%s140] sm:%s132] %v141
            $region33: #{tpu_custom_call.1} parent=27 // loop_footer
              %s138 = sadd.s32 1, %s134
            $region34: #{tpu_custom_call.1} parent=27 // loop_footer_branch
              %133 = sbr.rel target = $region30
            $region35: #{tpu_custom_call.1} parent=27 // loop_exit
              _
          $region28: #{tpu_custom_call.1} parent=15 // pred_fallthru
            _
          // Predicated region
          $region47: #{tpu_custom_call.1} parent=15 // pred_check
            _
          $region48: #{tpu_custom_call.1} parent=15 // pred_check_branch
            %166 = sbr.rel (0) target = $region50
          $region49: #{tpu_custom_call.1} parent=15 // pred_region
            %167 = vsyncadd %s123, 16
          $region50: #{tpu_custom_call.1} parent=15 // pred_fallthru
            _
          %s168 = sld [smem:[#allocation10]]
          %s169 = smul.addr %s168, 16
          %s170 = scalar_lea.hbm %s4, %s169
          %s171 = scalar_lea.sflag [#allocation6], 4
          // Predicated region
          $region51: #{tpu_custom_call.1} parent=15 // pred_check
            _
          $region52: #{tpu_custom_call.1} parent=15 // pred_check_branch
            %173 = sbr.rel target = $region54
          $region53: #{tpu_custom_call.1} parent=15 // pred_region
            %174 = sst [smem:[#allocation18]] [#allocation22]
            %175 = sst [smem:[#allocation19]] [#allocation21]
          $region54: #{tpu_custom_call.1} parent=15 // pred_fallthru
            _
          %177 = shalt.err (0)
          %s179 = sshll.u32 [#allocation4], 4
          %s180 = int_to_ptr.vmem [resolvable:$true] %s179
          %182 = dma.hbm_to_vmem [thread:$0]  %s170, 16, %s180, %s171
          %s183 = sld [smem:[#allocation11]]
          %s184 = smul.addr %s183, 16
          %s185 = scalar_lea.hbm %s4, %s184
          %s186 = scalar_lea.sflag [#allocation6], 6
          // Predicated region
          $region55: #{tpu_custom_call.1} parent=15 // pred_check
            _
          $region56: #{tpu_custom_call.1} parent=15 // pred_check_branch
            %188 = sbr.rel target = $region58
          $region57: #{tpu_custom_call.1} parent=15 // pred_region
            %189 = sst [smem:[#allocation18]] [#allocation24]
            %190 = sst [smem:[#allocation19]] [#allocation23]
          $region58: #{tpu_custom_call.1} parent=15 // pred_fallthru
            _
          %192 = shalt.err (0)
          %s194 = sshll.u32 [#allocation5], 4
          %s195 = int_to_ptr.vmem [resolvable:$true] %s194
          %197 = dma.hbm_to_vmem [thread:$0]  %s185, 16, %s195, %s186
          %s198 = sld [smem:[#allocation8 + $0x1]]
          %s199 = smul.addr %s198, 16
          %s200 = scalar_lea.hbm %s4, %s199
          %s201 = scalar_lea.vmem [#allocation2], 1
          // Predicated region
          $region59: #{tpu_custom_call.1} parent=15 // pred_check
            _
          $region60: #{tpu_custom_call.1} parent=15 // pred_check_branch
            %203 = sbr.rel target = $region62
          $region61: #{tpu_custom_call.1} parent=15 // pred_region
            %204 = sst [smem:[#allocation18]] [#allocation26]
            %205 = sst [smem:[#allocation19]] [#allocation25]
          $region62: #{tpu_custom_call.1} parent=15 // pred_fallthru
            _
          %207 = shalt.err (0)
          %s209 = sshll.u32 %s201, 4
          %s210 = int_to_ptr.vmem [resolvable:$true] %s209
          %212 = dma.hbm_to_vmem [thread:$0]  %s200, 16, %s210, [#allocation6]
          %s213 = sld [smem:[#allocation9 + $0x1]]
          %s214 = scalar_lea.vmem %s5, %s213
          %s215 = scalar_lea.vmem [#allocation3], 1
          %p217 = scmp.lt.u32.totalorder 1, 8
          %p218 = pneg %p217
          // Predicated region
          $region63: #{tpu_custom_call.1} parent=15 // pred_check
            _
          $region64: #{tpu_custom_call.1} parent=15 // pred_check_branch
            %220 = sbr.rel (%p217) target = $region66
          $region65: #{tpu_custom_call.1} parent=15 // pred_region
            %s235 = sand.u32 1, 7
            %p236 = scmp.eq.s32.totalorder %s235, 0
            %p237 = pneg %p236
            // Predicated region
            $region78: #{tpu_custom_call.1} parent=65 // pred_check
              _
            $region79: #{tpu_custom_call.1} parent=65 // pred_check_branch
              %239 = sbr.rel (%p236) target = $region81
            $region80: #{tpu_custom_call.1} parent=65 // pred_region
              %s240 = sand.u32 1, 7
              %s241 = ssub.s32 1, %s240
              %s242 = scalar_lea.vmem %s214, %s241
              %s243 = ssub.s32 1, %s240
              %s244 = scalar_lea.vmem %s215, %s243 [#allocation3]
              %s245 = sshllo.u32 0, %s240
              loop: start=0, step=1, limit=1
              $region82: #{tpu_custom_call.1} parent=80 // loop_pre_header
                _
              $region83: #{tpu_custom_call.1} parent=80 // loop_header
                %s247 = sphi 0, %s251
                %p248 = scmp.ge.s32.totalorder %s247, 1
                %s252 = sphi %s242, %s242
                %s253 = sphi %s244, %s244
              $region84: #{tpu_custom_call.1} parent=80 // loop_header_branch
                %250 = sbr.rel (%p248) target = $region88
              $region85: #{tpu_custom_call.1} parent=80 // loop_body
                %v254 = vld [vmem:[%s252] sm:%s245]
                %255 = vst [vmem:[%s253] sm:%s245] %v254
              $region86: #{tpu_custom_call.1} parent=80 // loop_footer
                %s251 = sadd.s32 1, %s247
              $region87: #{tpu_custom_call.1} parent=80 // loop_footer_branch
                %246 = sbr.rel target = $region83
              $region88: #{tpu_custom_call.1} parent=80 // loop_exit
                _
            $region81: #{tpu_custom_call.1} parent=65 // pred_fallthru
              _
          $region66: #{tpu_custom_call.1} parent=15 // pred_fallthru
            _
          // Predicated region
          $region67: #{tpu_custom_call.1} parent=15 // pred_check
            %p221 = pneg %p217
          $region68: #{tpu_custom_call.1} parent=15 // pred_check_branch
            %223 = sbr.rel (%p221) target = $region70
          $region69: #{tpu_custom_call.1} parent=15 // pred_region
            %s224 = sshllo.u32 0, 1
            loop: start=0, step=1, limit=1
            $region71: #{tpu_custom_call.1} parent=69 // loop_pre_header
              _
            $region72: #{tpu_custom_call.1} parent=69 // loop_header
              %s226 = sphi 0, %s230
              %p227 = scmp.ge.s32.totalorder %s226, 1
              %s231 = sphi %s214, %s214
              %s232 = sphi %s215, %s215
            $region73: #{tpu_custom_call.1} parent=69 // loop_header_branch
              %229 = sbr.rel (%p227) target = $region77
            $region74: #{tpu_custom_call.1} parent=69 // loop_body
              %v233 = vld [vmem:[%s231] sm:%s224]
              %234 = vst [vmem:[%s232] sm:%s224] %v233
            $region75: #{tpu_custom_call.1} parent=69 // loop_footer
              %s230 = sadd.s32 1, %s226
            $region76: #{tpu_custom_call.1} parent=69 // loop_footer_branch
              %225 = sbr.rel target = $region72
            $region77: #{tpu_custom_call.1} parent=69 // loop_exit
              _
          $region70: #{tpu_custom_call.1} parent=15 // pred_fallthru
            _
          // Predicated region
          $region89: #{tpu_custom_call.1} parent=15 // pred_check
            _
          $region90: #{tpu_custom_call.1} parent=15 // pred_check_branch
            %258 = sbr.rel (0) target = $region92
          $region91: #{tpu_custom_call.1} parent=15 // pred_region
            %259 = vsyncadd %s123, 16
          $region92: #{tpu_custom_call.1} parent=15 // pred_fallthru
            _
          %s260 = sld [smem:[#allocation10 + $0x1]]
          %s261 = smul.addr %s260, 16
          %s262 = scalar_lea.hbm %s4, %s261
          %s263 = scalar_lea.vmem [#allocation4], 1
          // Predicated region
          $region93: #{tpu_custom_call.1} parent=15 // pred_check
            _
          $region94: #{tpu_custom_call.1} parent=15 // pred_check_branch
            %265 = sbr.rel target = $region96
          $region95: #{tpu_custom_call.1} parent=15 // pred_region
            %266 = sst [smem:[#allocation18]] [#allocation29]
            %267 = sst [smem:[#allocation19]] [#allocation28]
          $region96: #{tpu_custom_call.1} parent=15 // pred_fallthru
            _
          %269 = shalt.err (0)
          %s271 = sshll.u32 %s263, 4
          %s272 = int_to_ptr.vmem [resolvable:$true] %s271
          %274 = dma.hbm_to_vmem [thread:$0]  %s262, 16, %s272, %s171
          %s275 = sld [smem:[#allocation11 + $0x1]]
          %s276 = smul.addr %s275, 16
          %s277 = scalar_lea.hbm %s4, %s276
          %s278 = scalar_lea.vmem [#allocation5], 1
          // Predicated region
          $region97: #{tpu_custom_call.1} parent=15 // pred_check
            _
          $region98: #{tpu_custom_call.1} parent=15 // pred_check_branch
            %280 = sbr.rel target = $region100
          $region99: #{tpu_custom_call.1} parent=15 // pred_region
            %281 = sst [smem:[#allocation18]] [#allocation31]
            %282 = sst [smem:[#allocation19]] [#allocation30]
          $region100: #{tpu_custom_call.1} parent=15 // pred_fallthru
            _
          %284 = shalt.err (0)
          %s286 = sshll.u32 %s278, 4
          %s287 = int_to_ptr.vmem [resolvable:$true] %s286
          %289 = dma.hbm_to_vmem [thread:$0]  %s277, 16, %s287, %s186
          %s290 = sld [smem:[#allocation8 + $0x2]]
          %s291 = smul.addr %s290, 16
          %s292 = scalar_lea.hbm %s4, %s291
          %s293 = scalar_lea.vmem [#allocation2], 2
          // Predicated region
          $region101: #{tpu_custom_call.1} parent=15 // pred_check
            _
          $region102: #{tpu_custom_call.1} parent=15 // pred_check_branch
            %295 = sbr.rel target = $region104
          $region103: #{tpu_custom_call.1} parent=15 // pred_region
            %296 = sst [smem:[#allocation18]] [#allocation33]
            %297 = sst [smem:[#allocation19]] [#allocation32]
          $region104: #{tpu_custom_call.1} parent=15 // pred_fallthru
            _
          %299 = shalt.err (0)
          %s301 = sshll.u32 %s293, 4
          %s302 = int_to_ptr.vmem [resolvable:$true] %s301
          %304 = dma.hbm_to_vmem [thread:$0]  %s292, 16, %s302, [#allocation6]
          %s305 = sld [smem:[#allocation9 + $0x2]]
          %s306 = scalar_lea.vmem %s5, %s305
          %s307 = scalar_lea.vmem [#allocation3], 2
          %p309 = scmp.lt.u32.totalorder 1, 8
          %p310 = pneg %p309
          // Predicated region
          $region105: #{tpu_custom_call.1} parent=15 // pred_check
            _
          $region106: #{tpu_custom_call.1} parent=15 // pred_check_branch
            %312 = sbr.rel (%p309) target = $region108
          $region107: #{tpu_custom_call.1} parent=15 // pred_region
            %s327 = sand.u32 1, 7
            %p328 = scmp.eq.s32.totalorder %s327, 0
            %p329 = pneg %p328
            // Predicated region
            $region120: #{tpu_custom_call.1} parent=107 // pred_check
              _
            $region121: #{tpu_custom_call.1} parent=107 // pred_check_branch
              %331 = sbr.rel (%p328) target = $region123
            $region122: #{tpu_custom_call.1} parent=107 // pred_region
              %s332 = sand.u32 1, 7
              %s333 = ssub.s32 1, %s332
              %s334 = scalar_lea.vmem %s306, %s333
              %s335 = ssub.s32 1, %s332
              %s336 = scalar_lea.vmem %s307, %s335 [#allocation3]
              %s337 = sshllo.u32 0, %s332
              loop: start=0, step=1, limit=1
              $region124: #{tpu_custom_call.1} parent=122 // loop_pre_header
                _
              $region125: #{tpu_custom_call.1} parent=122 // loop_header
                %s339 = sphi 0, %s343
                %p340 = scmp.ge.s32.totalorder %s339, 1
                %s344 = sphi %s334, %s334
                %s345 = sphi %s336, %s336
              $region126: #{tpu_custom_call.1} parent=122 // loop_header_branch
                %342 = sbr.rel (%p340) target = $region130
              $region127: #{tpu_custom_call.1} parent=122 // loop_body
                %v346 = vld [vmem:[%s344] sm:%s337]
                %347 = vst [vmem:[%s345] sm:%s337] %v346
              $region128: #{tpu_custom_call.1} parent=122 // loop_footer
                %s343 = sadd.s32 1, %s339
              $region129: #{tpu_custom_call.1} parent=122 // loop_footer_branch
                %338 = sbr.rel target = $region125
              $region130: #{tpu_custom_call.1} parent=122 // loop_exit
                _
            $region123: #{tpu_custom_call.1} parent=107 // pred_fallthru
              _
          $region108: #{tpu_custom_call.1} parent=15 // pred_fallthru
            _
          // Predicated region
          $region109: #{tpu_custom_call.1} parent=15 // pred_check
            %p313 = pneg %p309
          $region110: #{tpu_custom_call.1} parent=15 // pred_check_branch
            %315 = sbr.rel (%p313) target = $region112
          $region111: #{tpu_custom_call.1} parent=15 // pred_region
            %s316 = sshllo.u32 0, 1
            loop: start=0, step=1, limit=1
            $region113: #{tpu_custom_call.1} parent=111 // loop_pre_header
              _
            $region114: #{tpu_custom_call.1} parent=111 // loop_header
              %s318 = sphi 0, %s322
              %p319 = scmp.ge.s32.totalorder %s318, 1
              %s323 = sphi %s306, %s306
              %s324 = sphi %s307, %s307
            $region115: #{tpu_custom_call.1} parent=111 // loop_header_branch
              %321 = sbr.rel (%p319) target = $region119
            $region116: #{tpu_custom_call.1} parent=111 // loop_body
              %v325 = vld [vmem:[%s323] sm:%s316]
              %326 = vst [vmem:[%s324] sm:%s316] %v325
            $region117: #{tpu_custom_call.1} parent=111 // loop_footer
              %s322 = sadd.s32 1, %s318
            $region118: #{tpu_custom_call.1} parent=111 // loop_footer_branch
              %317 = sbr.rel target = $region114
            $region119: #{tpu_custom_call.1} parent=111 // loop_exit
              _
          $region112: #{tpu_custom_call.1} parent=15 // pred_fallthru
            _
          // Predicated region
          $region131: #{tpu_custom_call.1} parent=15 // pred_check
            _
          $region132: #{tpu_custom_call.1} parent=15 // pred_check_branch
            %350 = sbr.rel (0) target = $region134
          $region133: #{tpu_custom_call.1} parent=15 // pred_region
            %351 = vsyncadd %s123, 16
          $region134: #{tpu_custom_call.1} parent=15 // pred_fallthru
            _
          %s352 = sld [smem:[#allocation10 + $0x2]]
          %s353 = smul.addr %s352, 16
          %s354 = scalar_lea.hbm %s4, %s353
          %s355 = scalar_lea.vmem [#allocation4], 2
          // Predicated region
          $region135: #{tpu_custom_call.1} parent=15 // pred_check
            _
          $region136: #{tpu_custom_call.1} parent=15 // pred_check_branch
            %357 = sbr.rel target = $region138
          $region137: #{tpu_custom_call.1} parent=15 // pred_region
            %358 = sst [smem:[#allocation18]] [#allocation36]
            %359 = sst [smem:[#allocation19]] [#allocation35]
          $region138: #{tpu_custom_call.1} parent=15 // pred_fallthru
            _
          %361 = shalt.err (0)
          %s363 = sshll.u32 %s355, 4
          %s364 = int_to_ptr.vmem [resolvable:$true] %s363
          %366 = dma.hbm_to_vmem [thread:$0]  %s354, 16, %s364, %s171
          %s367 = sld [smem:[#allocation11 + $0x2]]
          %s368 = smul.addr %s367, 16
          %s369 = scalar_lea.hbm %s4, %s368
          %s370 = scalar_lea.vmem [#allocation5], 2
          // Predicated region
          $region139: #{tpu_custom_call.1} parent=15 // pred_check
            _
          $region140: #{tpu_custom_call.1} parent=15 // pred_check_branch
            %372 = sbr.rel target = $region142
          $region141: #{tpu_custom_call.1} parent=15 // pred_region
            %373 = sst [smem:[#allocation18]] [#allocation38]
            %374 = sst [smem:[#allocation19]] [#allocation37]
          $region142: #{tpu_custom_call.1} parent=15 // pred_fallthru
            _
          %376 = shalt.err (0)
          %s378 = sshll.u32 %s370, 4
          %s379 = int_to_ptr.vmem [resolvable:$true] %s378
          %381 = dma.hbm_to_vmem [thread:$0]  %s369, 16, %s379, %s186
          %s382 = sld [smem:[#allocation8 + $0x3]]
          %s383 = smul.addr %s382, 16
          %s384 = scalar_lea.hbm %s4, %s383
          %s385 = scalar_lea.vmem [#allocation2], 3
          // Predicated region
          $region143: #{tpu_custom_call.1} parent=15 // pred_check
            _
          $region144: #{tpu_custom_call.1} parent=15 // pred_check_branch
            %387 = sbr.rel target = $region146
          $region145: #{tpu_custom_call.1} parent=15 // pred_region
            %388 = sst [smem:[#allocation18]] [#allocation40]
            %389 = sst [smem:[#allocation19]] [#allocation39]
          $region146: #{tpu_custom_call.1} parent=15 // pred_fallthru
            _
          %391 = shalt.err (0)
          %s393 = sshll.u32 %s385, 4
          %s394 = int_to_ptr.vmem [resolvable:$true] %s393
          %396 = dma.hbm_to_vmem [thread:$0]  %s384, 16, %s394, [#allocation6]
          %s397 = sld [smem:[#allocation9 + $0x3]]
          %s398 = scalar_lea.vmem %s5, %s397
          %s399 = scalar_lea.vmem [#allocation3], 3
          %p401 = scmp.lt.u32.totalorder 1, 8
          %p402 = pneg %p401
          // Predicated region
          $region147: #{tpu_custom_call.1} parent=15 // pred_check
            _
          $region148: #{tpu_custom_call.1} parent=15 // pred_check_branch
            %404 = sbr.rel (%p401) target = $region150
          $region149: #{tpu_custom_call.1} parent=15 // pred_region
            %s419 = sand.u32 1, 7
            %p420 = scmp.eq.s32.totalorder %s419, 0
            %p421 = pneg %p420
            // Predicated region
            $region162: #{tpu_custom_call.1} parent=149 // pred_check
              _
            $region163: #{tpu_custom_call.1} parent=149 // pred_check_branch
              %423 = sbr.rel (%p420) target = $region165
            $region164: #{tpu_custom_call.1} parent=149 // pred_region
              %s424 = sand.u32 1, 7
              %s425 = ssub.s32 1, %s424
              %s426 = scalar_lea.vmem %s398, %s425
              %s427 = ssub.s32 1, %s424
              %s428 = scalar_lea.vmem %s399, %s427 [#allocation3]
              %s429 = sshllo.u32 0, %s424
              loop: start=0, step=1, limit=1
              $region166: #{tpu_custom_call.1} parent=164 // loop_pre_header
                _
              $region167: #{tpu_custom_call.1} parent=164 // loop_header
                %s431 = sphi 0, %s435
                %p432 = scmp.ge.s32.totalorder %s431, 1
                %s436 = sphi %s426, %s426
                %s437 = sphi %s428, %s428
              $region168: #{tpu_custom_call.1} parent=164 // loop_header_branch
                %434 = sbr.rel (%p432) target = $region172
              $region169: #{tpu_custom_call.1} parent=164 // loop_body
                %v438 = vld [vmem:[%s436] sm:%s429]
                %439 = vst [vmem:[%s437] sm:%s429] %v438
              $region170: #{tpu_custom_call.1} parent=164 // loop_footer
                %s435 = sadd.s32 1, %s431
              $region171: #{tpu_custom_call.1} parent=164 // loop_footer_branch
                %430 = sbr.rel target = $region167
              $region172: #{tpu_custom_call.1} parent=164 // loop_exit
                _
            $region165: #{tpu_custom_call.1} parent=149 // pred_fallthru
              _
          $region150: #{tpu_custom_call.1} parent=15 // pred_fallthru
            _
          // Predicated region
          $region151: #{tpu_custom_call.1} parent=15 // pred_check
            %p405 = pneg %p401
          $region152: #{tpu_custom_call.1} parent=15 // pred_check_branch
            %407 = sbr.rel (%p405) target = $region154
          $region153: #{tpu_custom_call.1} parent=15 // pred_region
            %s408 = sshllo.u32 0, 1
            loop: start=0, step=1, limit=1
            $region155: #{tpu_custom_call.1} parent=153 // loop_pre_header
              _
            $region156: #{tpu_custom_call.1} parent=153 // loop_header
              %s410 = sphi 0, %s414
              %p411 = scmp.ge.s32.totalorder %s410, 1
              %s415 = sphi %s398, %s398
              %s416 = sphi %s399, %s399
            $region157: #{tpu_custom_call.1} parent=153 // loop_header_branch
              %413 = sbr.rel (%p411) target = $region161
            $region158: #{tpu_custom_call.1} parent=153 // loop_body
              %v417 = vld [vmem:[%s415] sm:%s408]
              %418 = vst [vmem:[%s416] sm:%s408] %v417
            $region159: #{tpu_custom_call.1} parent=153 // loop_footer
              %s414 = sadd.s32 1, %s410
            $region160: #{tpu_custom_call.1} parent=153 // loop_footer_branch
              %409 = sbr.rel target = $region156
            $region161: #{tpu_custom_call.1} parent=153 // loop_exit
              _
          $region154: #{tpu_custom_call.1} parent=15 // pred_fallthru
            _
          // Predicated region
          $region173: #{tpu_custom_call.1} parent=15 // pred_check
            _
          $region174: #{tpu_custom_call.1} parent=15 // pred_check_branch
            %442 = sbr.rel (0) target = $region176
          $region175: #{tpu_custom_call.1} parent=15 // pred_region
            %443 = vsyncadd %s123, 16
          $region176: #{tpu_custom_call.1} parent=15 // pred_fallthru
            _
          %s444 = sld [smem:[#allocation10 + $0x3]]
          %s445 = smul.addr %s444, 16
          %s446 = scalar_lea.hbm %s4, %s445
          %s447 = scalar_lea.vmem [#allocation4], 3
          // Predicated region
          $region177: #{tpu_custom_call.1} parent=15 // pred_check
            _
          $region178: #{tpu_custom_call.1} parent=15 // pred_check_branch
            %449 = sbr.rel target = $region180
          $region179: #{tpu_custom_call.1} parent=15 // pred_region
            %450 = sst [smem:[#allocation18]] [#allocation43]
            %451 = sst [smem:[#allocation19]] [#allocation42]
          $region180: #{tpu_custom_call.1} parent=15 // pred_fallthru
            _
          %453 = shalt.err (0)
          %s455 = sshll.u32 %s447, 4
          %s456 = int_to_ptr.vmem [resolvable:$true] %s455
          %458 = dma.hbm_to_vmem [thread:$0]  %s446, 16, %s456, %s171
          %s459 = sld [smem:[#allocation11 + $0x3]]
          %s460 = smul.addr %s459, 16
          %s461 = scalar_lea.hbm %s4, %s460
          %s462 = scalar_lea.vmem [#allocation5], 3
          // Predicated region
          $region181: #{tpu_custom_call.1} parent=15 // pred_check
            _
          $region182: #{tpu_custom_call.1} parent=15 // pred_check_branch
            %464 = sbr.rel target = $region184
          $region183: #{tpu_custom_call.1} parent=15 // pred_region
            %465 = sst [smem:[#allocation18]] [#allocation45]
            %466 = sst [smem:[#allocation19]] [#allocation44]
          $region184: #{tpu_custom_call.1} parent=15 // pred_fallthru
            _
          %468 = shalt.err (0)
          %s470 = sshll.u32 %s462, 4
          %s471 = int_to_ptr.vmem [resolvable:$true] %s470
          %473 = dma.hbm_to_vmem [thread:$0]  %s461, 16, %s471, %s186
          %s474 = sld [smem:[#allocation8 + $0x4]]
          %s475 = smul.addr %s474, 16
          %s476 = scalar_lea.hbm %s4, %s475
          %s477 = scalar_lea.vmem [#allocation2], 4
          // Predicated region
          $region185: #{tpu_custom_call.1} parent=15 // pred_check
            _
          $region186: #{tpu_custom_call.1} parent=15 // pred_check_branch
            %479 = sbr.rel target = $region188
          $region187: #{tpu_custom_call.1} parent=15 // pred_region
            %480 = sst [smem:[#allocation18]] [#allocation47]
            %481 = sst [smem:[#allocation19]] [#allocation46]
          $region188: #{tpu_custom_call.1} parent=15 // pred_fallthru
            _
          %483 = shalt.err (0)
          %s485 = sshll.u32 %s477, 4
          %s486 = int_to_ptr.vmem [resolvable:$true] %s485
          %488 = dma.hbm_to_vmem [thread:$0]  %s476, 16, %s486, [#allocation6]
          %s489 = sld [smem:[#allocation9 + $0x4]]
          %s490 = scalar_lea.vmem %s5, %s489
          %s491 = scalar_lea.vmem [#allocation3], 4
          %p493 = scmp.lt.u32.totalorder 1, 8
          %p494 = pneg %p493
          // Predicated region
          $region189: #{tpu_custom_call.1} parent=15 // pred_check
            _
          $region190: #{tpu_custom_call.1} parent=15 // pred_check_branch
            %496 = sbr.rel (%p493) target = $region192
          $region191: #{tpu_custom_call.1} parent=15 // pred_region
            %s511 = sand.u32 1, 7
            %p512 = scmp.eq.s32.totalorder %s511, 0
            %p513 = pneg %p512
            // Predicated region
            $region204: #{tpu_custom_call.1} parent=191 // pred_check
              _
            $region205: #{tpu_custom_call.1} parent=191 // pred_check_branch
              %515 = sbr.rel (%p512) target = $region207
            $region206: #{tpu_custom_call.1} parent=191 // pred_region
              %s516 = sand.u32 1, 7
              %s517 = ssub.s32 1, %s516
              %s518 = scalar_lea.vmem %s490, %s517
              %s519 = ssub.s32 1, %s516
              %s520 = scalar_lea.vmem %s491, %s519 [#allocation3]
              %s521 = sshllo.u32 0, %s516
              loop: start=0, step=1, limit=1
              $region208: #{tpu_custom_call.1} parent=206 // loop_pre_header
                _
              $region209: #{tpu_custom_call.1} parent=206 // loop_header
                %s523 = sphi 0, %s527
                %p524 = scmp.ge.s32.totalorder %s523, 1
                %s528 = sphi %s518, %s518
                %s529 = sphi %s520, %s520
              $region210: #{tpu_custom_call.1} parent=206 // loop_header_branch
                %526 = sbr.rel (%p524) target = $region214
              $region211: #{tpu_custom_call.1} parent=206 // loop_body
                %v530 = vld [vmem:[%s528] sm:%s521]
                %531 = vst [vmem:[%s529] sm:%s521] %v530
              $region212: #{tpu_custom_call.1} parent=206 // loop_footer
                %s527 = sadd.s32 1, %s523
              $region213: #{tpu_custom_call.1} parent=206 // loop_footer_branch
                %522 = sbr.rel target = $region209
              $region214: #{tpu_custom_call.1} parent=206 // loop_exit
                _
            $region207: #{tpu_custom_call.1} parent=191 // pred_fallthru
              _
          $region192: #{tpu_custom_call.1} parent=15 // pred_fallthru
            _
          // Predicated region
          $region193: #{tpu_custom_call.1} parent=15 // pred_check
            %p497 = pneg %p493
          $region194: #{tpu_custom_call.1} parent=15 // pred_check_branch
            %499 = sbr.rel (%p497) target = $region196
          $region195: #{tpu_custom_call.1} parent=15 // pred_region
            %s500 = sshllo.u32 0, 1
            loop: start=0, step=1, limit=1
            $region197: #{tpu_custom_call.1} parent=195 // loop_pre_header
              _
            $region198: #{tpu_custom_call.1} parent=195 // loop_header
              %s502 = sphi 0, %s506
              %p503 = scmp.ge.s32.totalorder %s502, 1
              %s507 = sphi %s490, %s490
              %s508 = sphi %s491, %s491
            $region199: #{tpu_custom_call.1} parent=195 // loop_header_branch
              %505 = sbr.rel (%p503) target = $region203
            $region200: #{tpu_custom_call.1} parent=195 // loop_body
              %v509 = vld [vmem:[%s507] sm:%s500]
              %510 = vst [vmem:[%s508] sm:%s500] %v509
            $region201: #{tpu_custom_call.1} parent=195 // loop_footer
              %s506 = sadd.s32 1, %s502
            $region202: #{tpu_custom_call.1} parent=195 // loop_footer_branch
              %501 = sbr.rel target = $region198
            $region203: #{tpu_custom_call.1} parent=195 // loop_exit
              _
          $region196: #{tpu_custom_call.1} parent=15 // pred_fallthru
            _
          // Predicated region
          $region215: #{tpu_custom_call.1} parent=15 // pred_check
            _
          $region216: #{tpu_custom_call.1} parent=15 // pred_check_branch
            %534 = sbr.rel (0) target = $region218
          $region217: #{tpu_custom_call.1} parent=15 // pred_region
            %535 = vsyncadd %s123, 16
          $region218: #{tpu_custom_call.1} parent=15 // pred_fallthru
            _
          %s536 = sld [smem:[#allocation10 + $0x4]]
          %s537 = smul.addr %s536, 16
          %s538 = scalar_lea.hbm %s4, %s537
          %s539 = scalar_lea.vmem [#allocation4], 4
          // Predicated region
          $region219: #{tpu_custom_call.1} parent=15 // pred_check
            _
          $region220: #{tpu_custom_call.1} parent=15 // pred_check_branch
            %541 = sbr.rel target = $region222
          $region221: #{tpu_custom_call.1} parent=15 // pred_region
            %542 = sst [smem:[#allocation18]] [#allocation50]
            %543 = sst [smem:[#allocation19]] [#allocation49]
          $region222: #{tpu_custom_call.1} parent=15 // pred_fallthru
            _
          %545 = shalt.err (0)
          %s547 = sshll.u32 %s539, 4
          %s548 = int_to_ptr.vmem [resolvable:$true] %s547
          %550 = dma.hbm_to_vmem [thread:$0]  %s538, 16, %s548, %s171
          %s551 = sld [smem:[#allocation11 + $0x4]]
          %s552 = smul.addr %s551, 16
          %s553 = scalar_lea.hbm %s4, %s552
          %s554 = scalar_lea.vmem [#allocation5], 4
          // Predicated region
          $region223: #{tpu_custom_call.1} parent=15 // pred_check
            _
          $region224: #{tpu_custom_call.1} parent=15 // pred_check_branch
            %556 = sbr.rel target = $region226
          $region225: #{tpu_custom_call.1} parent=15 // pred_region
            %557 = sst [smem:[#allocation18]] [#allocation52]
            %558 = sst [smem:[#allocation19]] [#allocation51]
          $region226: #{tpu_custom_call.1} parent=15 // pred_fallthru
            _
          %560 = shalt.err (0)
          %s562 = sshll.u32 %s554, 4
          %s563 = int_to_ptr.vmem [resolvable:$true] %s562
          %565 = dma.hbm_to_vmem [thread:$0]  %s553, 16, %s563, %s186
          %s566 = sld [smem:[#allocation8 + $0x5]]
          %s567 = smul.addr %s566, 16
          %s568 = scalar_lea.hbm %s4, %s567
          %s569 = scalar_lea.vmem [#allocation2], 5
          // Predicated region
          $region227: #{tpu_custom_call.1} parent=15 // pred_check
            _
          $region228: #{tpu_custom_call.1} parent=15 // pred_check_branch
            %571 = sbr.rel target = $region230
          $region229: #{tpu_custom_call.1} parent=15 // pred_region
            %572 = sst [smem:[#allocation18]] [#allocation54]
            %573 = sst [smem:[#allocation19]] [#allocation53]
          $region230: #{tpu_custom_call.1} parent=15 // pred_fallthru
            _
          %575 = shalt.err (0)
          %s577 = sshll.u32 %s569, 4
          %s578 = int_to_ptr.vmem [resolvable:$true] %s577
          %580 = dma.hbm_to_vmem [thread:$0]  %s568, 16, %s578, [#allocation6]
          %s581 = sld [smem:[#allocation9 + $0x5]]
          %s582 = scalar_lea.vmem %s5, %s581
          %s583 = scalar_lea.vmem [#allocation3], 5
          %p585 = scmp.lt.u32.totalorder 1, 8
          %p586 = pneg %p585
          // Predicated region
          $region231: #{tpu_custom_call.1} parent=15 // pred_check
            _
          $region232: #{tpu_custom_call.1} parent=15 // pred_check_branch
            %588 = sbr.rel (%p585) target = $region234
          $region233: #{tpu_custom_call.1} parent=15 // pred_region
            %s603 = sand.u32 1, 7
            %p604 = scmp.eq.s32.totalorder %s603, 0
            %p605 = pneg %p604
            // Predicated region
            $region246: #{tpu_custom_call.1} parent=233 // pred_check
              _
            $region247: #{tpu_custom_call.1} parent=233 // pred_check_branch
              %607 = sbr.rel (%p604) target = $region249
            $region248: #{tpu_custom_call.1} parent=233 // pred_region
              %s608 = sand.u32 1, 7
              %s609 = ssub.s32 1, %s608
              %s610 = scalar_lea.vmem %s582, %s609
              %s611 = ssub.s32 1, %s608
              %s612 = scalar_lea.vmem %s583, %s611 [#allocation3]
              %s613 = sshllo.u32 0, %s608
              loop: start=0, step=1, limit=1
              $region250: #{tpu_custom_call.1} parent=248 // loop_pre_header
                _
              $region251: #{tpu_custom_call.1} parent=248 // loop_header
                %s615 = sphi 0, %s619
                %p616 = scmp.ge.s32.totalorder %s615, 1
                %s620 = sphi %s610, %s610
                %s621 = sphi %s612, %s612
              $region252: #{tpu_custom_call.1} parent=248 // loop_header_branch
                %618 = sbr.rel (%p616) target = $region256
              $region253: #{tpu_custom_call.1} parent=248 // loop_body
                %v622 = vld [vmem:[%s620] sm:%s613]
                %623 = vst [vmem:[%s621] sm:%s613] %v622
              $region254: #{tpu_custom_call.1} parent=248 // loop_footer
                %s619 = sadd.s32 1, %s615
              $region255: #{tpu_custom_call.1} parent=248 // loop_footer_branch
                %614 = sbr.rel target = $region251
              $region256: #{tpu_custom_call.1} parent=248 // loop_exit
                _
            $region249: #{tpu_custom_call.1} parent=233 // pred_fallthru
              _
          $region234: #{tpu_custom_call.1} parent=15 // pred_fallthru
            _
          // Predicated region
          $region235: #{tpu_custom_call.1} parent=15 // pred_check
            %p589 = pneg %p585
          $region236: #{tpu_custom_call.1} parent=15 // pred_check_branch
            %591 = sbr.rel (%p589) target = $region238
          $region237: #{tpu_custom_call.1} parent=15 // pred_region
            %s592 = sshllo.u32 0, 1
            loop: start=0, step=1, limit=1
            $region239: #{tpu_custom_call.1} parent=237 // loop_pre_header
              _
            $region240: #{tpu_custom_call.1} parent=237 // loop_header
              %s594 = sphi 0, %s598
              %p595 = scmp.ge.s32.totalorder %s594, 1
              %s599 = sphi %s582, %s582
              %s600 = sphi %s583, %s583
            $region241: #{tpu_custom_call.1} parent=237 // loop_header_branch
              %597 = sbr.rel (%p595) target = $region245
            $region242: #{tpu_custom_call.1} parent=237 // loop_body
              %v601 = vld [vmem:[%s599] sm:%s592]
              %602 = vst [vmem:[%s600] sm:%s592] %v601
            $region243: #{tpu_custom_call.1} parent=237 // loop_footer
              %s598 = sadd.s32 1, %s594
            $region244: #{tpu_custom_call.1} parent=237 // loop_footer_branch
              %593 = sbr.rel target = $region240
            $region245: #{tpu_custom_call.1} parent=237 // loop_exit
              _
          $region238: #{tpu_custom_call.1} parent=15 // pred_fallthru
            _
          // Predicated region
          $region257: #{tpu_custom_call.1} parent=15 // pred_check
            _
          $region258: #{tpu_custom_call.1} parent=15 // pred_check_branch
            %626 = sbr.rel (0) target = $region260
          $region259: #{tpu_custom_call.1} parent=15 // pred_region
            %627 = vsyncadd %s123, 16
          $region260: #{tpu_custom_call.1} parent=15 // pred_fallthru
            _
          %s628 = sld [smem:[#allocation10 + $0x5]]
          %s629 = smul.addr %s628, 16
          %s630 = scalar_lea.hbm %s4, %s629
          %s631 = scalar_lea.vmem [#allocation4], 5
          // Predicated region
          $region261: #{tpu_custom_call.1} parent=15 // pred_check
            _
          $region262: #{tpu_custom_call.1} parent=15 // pred_check_branch
            %633 = sbr.rel target = $region264
          $region263: #{tpu_custom_call.1} parent=15 // pred_region
            %634 = sst [smem:[#allocation18]] [#allocation57]
            %635 = sst [smem:[#allocation19]] [#allocation56]
          $region264: #{tpu_custom_call.1} parent=15 // pred_fallthru
            _
          %637 = shalt.err (0)
          %s639 = sshll.u32 %s631, 4
          %s640 = int_to_ptr.vmem [resolvable:$true] %s639
          %642 = dma.hbm_to_vmem [thread:$0]  %s630, 16, %s640, %s171
          %s643 = sld [smem:[#allocation11 + $0x5]]
          %s644 = smul.addr %s643, 16
          %s645 = scalar_lea.hbm %s4, %s644
          %s646 = scalar_lea.vmem [#allocation5], 5
          // Predicated region
          $region265: #{tpu_custom_call.1} parent=15 // pred_check
            _
          $region266: #{tpu_custom_call.1} parent=15 // pred_check_branch
            %648 = sbr.rel target = $region268
          $region267: #{tpu_custom_call.1} parent=15 // pred_region
            %649 = sst [smem:[#allocation18]] [#allocation59]
            %650 = sst [smem:[#allocation19]] [#allocation58]
          $region268: #{tpu_custom_call.1} parent=15 // pred_fallthru
            _
          %652 = shalt.err (0)
          %s654 = sshll.u32 %s646, 4
          %s655 = int_to_ptr.vmem [resolvable:$true] %s654
          %657 = dma.hbm_to_vmem [thread:$0]  %s645, 16, %s655, %s186
          %s658 = sld [smem:[#allocation8 + $0x6]]
          %s659 = smul.addr %s658, 16
          %s660 = scalar_lea.hbm %s4, %s659
          %s661 = scalar_lea.vmem [#allocation2], 6
          // Predicated region
          $region269: #{tpu_custom_call.1} parent=15 // pred_check
            _
          $region270: #{tpu_custom_call.1} parent=15 // pred_check_branch
            %663 = sbr.rel target = $region272
          $region271: #{tpu_custom_call.1} parent=15 // pred_region
            %664 = sst [smem:[#allocation18]] [#allocation61]
            %665 = sst [smem:[#allocation19]] [#allocation60]
          $region272: #{tpu_custom_call.1} parent=15 // pred_fallthru
            _
          %667 = shalt.err (0)
          %s669 = sshll.u32 %s661, 4
          %s670 = int_to_ptr.vmem [resolvable:$true] %s669
          %672 = dma.hbm_to_vmem [thread:$0]  %s660, 16, %s670, [#allocation6]
          %s673 = sld [smem:[#allocation9 + $0x6]]
          %s674 = scalar_lea.vmem %s5, %s673
          %s675 = scalar_lea.vmem [#allocation3], 6
          %p677 = scmp.lt.u32.totalorder 1, 8
          %p678 = pneg %p677
          // Predicated region
          $region273: #{tpu_custom_call.1} parent=15 // pred_check
            _
          $region274: #{tpu_custom_call.1} parent=15 // pred_check_branch
            %680 = sbr.rel (%p677) target = $region276
          $region275: #{tpu_custom_call.1} parent=15 // pred_region
            %s695 = sand.u32 1, 7
            %p696 = scmp.eq.s32.totalorder %s695, 0
            %p697 = pneg %p696
            // Predicated region
            $region288: #{tpu_custom_call.1} parent=275 // pred_check
              _
            $region289: #{tpu_custom_call.1} parent=275 // pred_check_branch
              %699 = sbr.rel (%p696) target = $region291
            $region290: #{tpu_custom_call.1} parent=275 // pred_region
              %s700 = sand.u32 1, 7
              %s701 = ssub.s32 1, %s700
              %s702 = scalar_lea.vmem %s674, %s701
              %s703 = ssub.s32 1, %s700
              %s704 = scalar_lea.vmem %s675, %s703 [#allocation3]
              %s705 = sshllo.u32 0, %s700
              loop: start=0, step=1, limit=1
              $region292: #{tpu_custom_call.1} parent=290 // loop_pre_header
                _
              $region293: #{tpu_custom_call.1} parent=290 // loop_header
                %s707 = sphi 0, %s711
                %p708 = scmp.ge.s32.totalorder %s707, 1
                %s712 = sphi %s702, %s702
                %s713 = sphi %s704, %s704
              $region294: #{tpu_custom_call.1} parent=290 // loop_header_branch
                %710 = sbr.rel (%p708) target = $region298
              $region295: #{tpu_custom_call.1} parent=290 // loop_body
                %v714 = vld [vmem:[%s712] sm:%s705]
                %715 = vst [vmem:[%s713] sm:%s705] %v714
              $region296: #{tpu_custom_call.1} parent=290 // loop_footer
                %s711 = sadd.s32 1, %s707
              $region297: #{tpu_custom_call.1} parent=290 // loop_footer_branch
                %706 = sbr.rel target = $region293
              $region298: #{tpu_custom_call.1} parent=290 // loop_exit
                _
            $region291: #{tpu_custom_call.1} parent=275 // pred_fallthru
              _
          $region276: #{tpu_custom_call.1} parent=15 // pred_fallthru
            _
          // Predicated region
          $region277: #{tpu_custom_call.1} parent=15 // pred_check
            %p681 = pneg %p677
          $region278: #{tpu_custom_call.1} parent=15 // pred_check_branch
            %683 = sbr.rel (%p681) target = $region280
          $region279: #{tpu_custom_call.1} parent=15 // pred_region
            %s684 = sshllo.u32 0, 1
            loop: start=0, step=1, limit=1
            $region281: #{tpu_custom_call.1} parent=279 // loop_pre_header
              _
            $region282: #{tpu_custom_call.1} parent=279 // loop_header
              %s686 = sphi 0, %s690
              %p687 = scmp.ge.s32.totalorder %s686, 1
              %s691 = sphi %s674, %s674
              %s692 = sphi %s675, %s675
            $region283: #{tpu_custom_call.1} parent=279 // loop_header_branch
              %689 = sbr.rel (%p687) target = $region287
            $region284: #{tpu_custom_call.1} parent=279 // loop_body
              %v693 = vld [vmem:[%s691] sm:%s684]
              %694 = vst [vmem:[%s692] sm:%s684] %v693
            $region285: #{tpu_custom_call.1} parent=279 // loop_footer
              %s690 = sadd.s32 1, %s686
            $region286: #{tpu_custom_call.1} parent=279 // loop_footer_branch
              %685 = sbr.rel target = $region282
            $region287: #{tpu_custom_call.1} parent=279 // loop_exit
              _
          $region280: #{tpu_custom_call.1} parent=15 // pred_fallthru
            _
          // Predicated region
          $region299: #{tpu_custom_call.1} parent=15 // pred_check
            _
          $region300: #{tpu_custom_call.1} parent=15 // pred_check_branch
            %718 = sbr.rel (0) target = $region302
          $region301: #{tpu_custom_call.1} parent=15 // pred_region
            %719 = vsyncadd %s123, 16
          $region302: #{tpu_custom_call.1} parent=15 // pred_fallthru
            _
          %s720 = sld [smem:[#allocation10 + $0x6]]
          %s721 = smul.addr %s720, 16
          %s722 = scalar_lea.hbm %s4, %s721
          %s723 = scalar_lea.vmem [#allocation4], 6
          // Predicated region
          $region303: #{tpu_custom_call.1} parent=15 // pred_check
            _
          $region304: #{tpu_custom_call.1} parent=15 // pred_check_branch
            %725 = sbr.rel target = $region306
          $region305: #{tpu_custom_call.1} parent=15 // pred_region
            %726 = sst [smem:[#allocation18]] [#allocation64]
            %727 = sst [smem:[#allocation19]] [#allocation63]
          $region306: #{tpu_custom_call.1} parent=15 // pred_fallthru
            _
          %729 = shalt.err (0)
          %s731 = sshll.u32 %s723, 4
          %s732 = int_to_ptr.vmem [resolvable:$true] %s731
          %734 = dma.hbm_to_vmem [thread:$0]  %s722, 16, %s732, %s171
          %s735 = sld [smem:[#allocation11 + $0x6]]
          %s736 = smul.addr %s735, 16
          %s737 = scalar_lea.hbm %s4, %s736
          %s738 = scalar_lea.vmem [#allocation5], 6
          // Predicated region
          $region307: #{tpu_custom_call.1} parent=15 // pred_check
            _
          $region308: #{tpu_custom_call.1} parent=15 // pred_check_branch
            %740 = sbr.rel target = $region310
          $region309: #{tpu_custom_call.1} parent=15 // pred_region
            %741 = sst [smem:[#allocation18]] [#allocation66]
            %742 = sst [smem:[#allocation19]] [#allocation65]
          $region310: #{tpu_custom_call.1} parent=15 // pred_fallthru
            _
          %744 = shalt.err (0)
          %s746 = sshll.u32 %s738, 4
          %s747 = int_to_ptr.vmem [resolvable:$true] %s746
          %749 = dma.hbm_to_vmem [thread:$0]  %s737, 16, %s747, %s186
          %s750 = sld [smem:[#allocation8 + $0x7]]
          %s751 = smul.addr %s750, 16
          %s752 = scalar_lea.hbm %s4, %s751
          %s753 = scalar_lea.vmem [#allocation2], 7
          // Predicated region
          $region311: #{tpu_custom_call.1} parent=15 // pred_check
            _
          $region312: #{tpu_custom_call.1} parent=15 // pred_check_branch
            %755 = sbr.rel target = $region314
          $region313: #{tpu_custom_call.1} parent=15 // pred_region
            %756 = sst [smem:[#allocation18]] [#allocation68]
            %757 = sst [smem:[#allocation19]] [#allocation67]
          $region314: #{tpu_custom_call.1} parent=15 // pred_fallthru
            _
          %759 = shalt.err (0)
          %s761 = sshll.u32 %s753, 4
          %s762 = int_to_ptr.vmem [resolvable:$true] %s761
          %764 = dma.hbm_to_vmem [thread:$0]  %s752, 16, %s762, [#allocation6]
          %s765 = sld [smem:[#allocation9 + $0x7]]
          %s766 = scalar_lea.vmem %s5, %s765
          %s767 = scalar_lea.vmem [#allocation3], 7
          %p769 = scmp.lt.u32.totalorder 1, 8
          %p770 = pneg %p769
          // Predicated region
          $region315: #{tpu_custom_call.1} parent=15 // pred_check
            _
          $region316: #{tpu_custom_call.1} parent=15 // pred_check_branch
            %772 = sbr.rel (%p769) target = $region318
          $region317: #{tpu_custom_call.1} parent=15 // pred_region
            %s787 = sand.u32 1, 7
            %p788 = scmp.eq.s32.totalorder %s787, 0
            %p789 = pneg %p788
            // Predicated region
            $region330: #{tpu_custom_call.1} parent=317 // pred_check
              _
            $region331: #{tpu_custom_call.1} parent=317 // pred_check_branch
              %791 = sbr.rel (%p788) target = $region333
            $region332: #{tpu_custom_call.1} parent=317 // pred_region
              %s792 = sand.u32 1, 7
              %s793 = ssub.s32 1, %s792
              %s794 = scalar_lea.vmem %s766, %s793
              %s795 = ssub.s32 1, %s792
              %s796 = scalar_lea.vmem %s767, %s795 [#allocation3]
              %s797 = sshllo.u32 0, %s792
              loop: start=0, step=1, limit=1
              $region334: #{tpu_custom_call.1} parent=332 // loop_pre_header
                _
              $region335: #{tpu_custom_call.1} parent=332 // loop_header
                %s799 = sphi 0, %s803
                %p800 = scmp.ge.s32.totalorder %s799, 1
                %s804 = sphi %s794, %s794
                %s805 = sphi %s796, %s796
              $region336: #{tpu_custom_call.1} parent=332 // loop_header_branch
                %802 = sbr.rel (%p800) target = $region340
              $region337: #{tpu_custom_call.1} parent=332 // loop_body
                %v806 = vld [vmem:[%s804] sm:%s797]
                %807 = vst [vmem:[%s805] sm:%s797] %v806
              $region338: #{tpu_custom_call.1} parent=332 // loop_footer
                %s803 = sadd.s32 1, %s799
              $region339: #{tpu_custom_call.1} parent=332 // loop_footer_branch
                %798 = sbr.rel target = $region335
              $region340: #{tpu_custom_call.1} parent=332 // loop_exit
                _
            $region333: #{tpu_custom_call.1} parent=317 // pred_fallthru
              _
          $region318: #{tpu_custom_call.1} parent=15 // pred_fallthru
            _
          // Predicated region
          $region319: #{tpu_custom_call.1} parent=15 // pred_check
            %p773 = pneg %p769
          $region320: #{tpu_custom_call.1} parent=15 // pred_check_branch
            %775 = sbr.rel (%p773) target = $region322
          $region321: #{tpu_custom_call.1} parent=15 // pred_region
            %s776 = sshllo.u32 0, 1
            loop: start=0, step=1, limit=1
            $region323: #{tpu_custom_call.1} parent=321 // loop_pre_header
              _
            $region324: #{tpu_custom_call.1} parent=321 // loop_header
              %s778 = sphi 0, %s782
              %p779 = scmp.ge.s32.totalorder %s778, 1
              %s783 = sphi %s766, %s766
              %s784 = sphi %s767, %s767
            $region325: #{tpu_custom_call.1} parent=321 // loop_header_branch
              %781 = sbr.rel (%p779) target = $region329
            $region326: #{tpu_custom_call.1} parent=321 // loop_body
              %v785 = vld [vmem:[%s783] sm:%s776]
              %786 = vst [vmem:[%s784] sm:%s776] %v785
            $region327: #{tpu_custom_call.1} parent=321 // loop_footer
              %s782 = sadd.s32 1, %s778
            $region328: #{tpu_custom_call.1} parent=321 // loop_footer_branch
              %777 = sbr.rel target = $region324
            $region329: #{tpu_custom_call.1} parent=321 // loop_exit
              _
          $region322: #{tpu_custom_call.1} parent=15 // pred_fallthru
            _
          // Predicated region
          $region341: #{tpu_custom_call.1} parent=15 // pred_check
            _
          $region342: #{tpu_custom_call.1} parent=15 // pred_check_branch
            %810 = sbr.rel (0) target = $region344
          $region343: #{tpu_custom_call.1} parent=15 // pred_region
            %811 = vsyncadd %s123, 16
          $region344: #{tpu_custom_call.1} parent=15 // pred_fallthru
            _
          %s812 = sld [smem:[#allocation10 + $0x7]]
          %s813 = smul.addr %s812, 16
          %s814 = scalar_lea.hbm %s4, %s813
          %s815 = scalar_lea.vmem [#allocation4], 7
          // Predicated region
          $region345: #{tpu_custom_call.1} parent=15 // pred_check
            _
          $region346: #{tpu_custom_call.1} parent=15 // pred_check_branch
            %817 = sbr.rel target = $region348
          $region347: #{tpu_custom_call.1} parent=15 // pred_region
            %818 = sst [smem:[#allocation18]] [#allocation71]
            %819 = sst [smem:[#allocation19]] [#allocation70]
          $region348: #{tpu_custom_call.1} parent=15 // pred_fallthru
            _
          %821 = shalt.err (0)
          %s823 = sshll.u32 %s815, 4
          %s824 = int_to_ptr.vmem [resolvable:$true] %s823
          %826 = dma.hbm_to_vmem [thread:$0]  %s814, 16, %s824, %s171
          %s827 = sld [smem:[#allocation11 + $0x7]]
          %s828 = smul.addr %s827, 16
          %s829 = scalar_lea.hbm %s4, %s828
          %s830 = scalar_lea.vmem [#allocation5], 7
          // Predicated region
          $region349: #{tpu_custom_call.1} parent=15 // pred_check
            _
          $region350: #{tpu_custom_call.1} parent=15 // pred_check_branch
            %832 = sbr.rel target = $region352
          $region351: #{tpu_custom_call.1} parent=15 // pred_region
            %833 = sst [smem:[#allocation18]] [#allocation73]
            %834 = sst [smem:[#allocation19]] [#allocation72]
          $region352: #{tpu_custom_call.1} parent=15 // pred_fallthru
            _
          %836 = shalt.err (0)
          %s838 = sshll.u32 %s830, 4
          %s839 = int_to_ptr.vmem [resolvable:$true] %s838
          %841 = dma.hbm_to_vmem [thread:$0]  %s829, 16, %s839, %s186
        $region16: #{tpu_custom_call.1} parent=11 // pred_fallthru
          _
        %s842 = sadd.s32 %s34, 1
        %p843 = scmp.lt.s32.totalorder %s842, 4
        // Predicated region
        $region353: #{tpu_custom_call.1} parent=11 // pred_check
          %p844 = pneg %p843
        $region354: #{tpu_custom_call.1} parent=11 // pred_check_branch
          %846 = sbr.rel (%p844) target = $region356
        $region355: #{tpu_custom_call.1} parent=11 // pred_region
          %s847 = ssub.s32 1, %s102
          %s848 = smul.u32 %s842, 8
          %s849 = sld [smem:[#allocation8 + %s848]]
          %s850 = smul.addr %s849, 16
          %s851 = scalar_lea.hbm %s4, %s850
          %s852 = smul.u32 %s847, 8
          %s853 = scalar_lea.vmem [#allocation2], %s852
          %s854 = scalar_lea.sflag [#allocation6], %s847
          // Predicated region
          $region357: #{tpu_custom_call.1} parent=355 // pred_check
            _
          $region358: #{tpu_custom_call.1} parent=355 // pred_check_branch
            %856 = sbr.rel target = $region360
          $region359: #{tpu_custom_call.1} parent=355 // pred_region
            %857 = sst [smem:[#allocation18]] [#allocation75]
            %858 = sst [smem:[#allocation19]] [#allocation74]
          $region360: #{tpu_custom_call.1} parent=355 // pred_fallthru
            _
          %860 = shalt.err (0)
          %s862 = sshll.u32 %s853, 4
          %s863 = int_to_ptr.vmem [resolvable:$true] %s862
          %865 = dma.hbm_to_vmem [thread:$0]  %s851, 16, %s863, %s854
          %s866 = sld [smem:[#allocation9 + %s848]]
          %s867 = scalar_lea.vmem %s5, %s866
          %s868 = scalar_lea.vmem [#allocation3], %s852
          %s869 = sadd.s32 %s847, 2
          %s870 = scalar_lea.sflag [#allocation6], %s869
          %p872 = scmp.lt.u32.totalorder 1, 8
          %p873 = pneg %p872
          // Predicated region
          $region361: #{tpu_custom_call.1} parent=355 // pred_check
            _
          $region362: #{tpu_custom_call.1} parent=355 // pred_check_branch
            %875 = sbr.rel (%p872) target = $region364
          $region363: #{tpu_custom_call.1} parent=355 // pred_region
            %s890 = sand.u32 1, 7
            %p891 = scmp.eq.s32.totalorder %s890, 0
            %p892 = pneg %p891
            // Predicated region
            $region376: #{tpu_custom_call.1} parent=363 // pred_check
              _
            $region377: #{tpu_custom_call.1} parent=363 // pred_check_branch
              %894 = sbr.rel (%p891) target = $region379
            $region378: #{tpu_custom_call.1} parent=363 // pred_region
              %s895 = sand.u32 1, 7
              %s896 = ssub.s32 1, %s895
              %s897 = scalar_lea.vmem %s867, %s896
              %s898 = ssub.s32 1, %s895
              %s899 = scalar_lea.vmem %s868, %s898 [#allocation3]
              %s900 = sshllo.u32 0, %s895
              loop: start=0, step=1, limit=1
              $region380: #{tpu_custom_call.1} parent=378 // loop_pre_header
                _
              $region381: #{tpu_custom_call.1} parent=378 // loop_header
                %s902 = sphi 0, %s906
                %p903 = scmp.ge.s32.totalorder %s902, 1
                %s907 = sphi %s897, %s897
                %s908 = sphi %s899, %s899
              $region382: #{tpu_custom_call.1} parent=378 // loop_header_branch
                %905 = sbr.rel (%p903) target = $region386
              $region383: #{tpu_custom_call.1} parent=378 // loop_body
                %v909 = vld [vmem:[%s907] sm:%s900]
                %910 = vst [vmem:[%s908] sm:%s900] %v909
              $region384: #{tpu_custom_call.1} parent=378 // loop_footer
                %s906 = sadd.s32 1, %s902
              $region385: #{tpu_custom_call.1} parent=378 // loop_footer_branch
                %901 = sbr.rel target = $region381
              $region386: #{tpu_custom_call.1} parent=378 // loop_exit
                _
            $region379: #{tpu_custom_call.1} parent=363 // pred_fallthru
              _
          $region364: #{tpu_custom_call.1} parent=355 // pred_fallthru
            _
          // Predicated region
          $region365: #{tpu_custom_call.1} parent=355 // pred_check
            %p876 = pneg %p872
          $region366: #{tpu_custom_call.1} parent=355 // pred_check_branch
            %878 = sbr.rel (%p876) target = $region368
          $region367: #{tpu_custom_call.1} parent=355 // pred_region
            %s879 = sshllo.u32 0, 1
            loop: start=0, step=1, limit=1
            $region369: #{tpu_custom_call.1} parent=367 // loop_pre_header
              _
            $region370: #{tpu_custom_call.1} parent=367 // loop_header
              %s881 = sphi 0, %s885
              %p882 = scmp.ge.s32.totalorder %s881, 1
              %s886 = sphi %s867, %s867
              %s887 = sphi %s868, %s868
            $region371: #{tpu_custom_call.1} parent=367 // loop_header_branch
              %884 = sbr.rel (%p882) target = $region375
            $region372: #{tpu_custom_call.1} parent=367 // loop_body
              %v888 = vld [vmem:[%s886] sm:%s879]
              %889 = vst [vmem:[%s887] sm:%s879] %v888
            $region373: #{tpu_custom_call.1} parent=367 // loop_footer
              %s885 = sadd.s32 1, %s881
            $region374: #{tpu_custom_call.1} parent=367 // loop_footer_branch
              %880 = sbr.rel target = $region370
            $region375: #{tpu_custom_call.1} parent=367 // loop_exit
              _
          $region368: #{tpu_custom_call.1} parent=355 // pred_fallthru
            _
          // Predicated region
          $region387: #{tpu_custom_call.1} parent=355 // pred_check
            _
          $region388: #{tpu_custom_call.1} parent=355 // pred_check_branch
            %913 = sbr.rel (0) target = $region390
          $region389: #{tpu_custom_call.1} parent=355 // pred_region
            %914 = vsyncadd %s870, 16
          $region390: #{tpu_custom_call.1} parent=355 // pred_fallthru
            _
          %s915 = sld [smem:[#allocation10 + %s848]]
          %s916 = smul.addr %s915, 16
          %s917 = scalar_lea.hbm %s4, %s916
          %s918 = scalar_lea.vmem [#allocation4], %s852
          %s919 = sadd.s32 %s847, 4
          %s920 = scalar_lea.sflag [#allocation6], %s919
          // Predicated region
          $region391: #{tpu_custom_call.1} parent=355 // pred_check
            _
          $region392: #{tpu_custom_call.1} parent=355 // pred_check_branch
            %922 = sbr.rel target = $region394
          $region393: #{tpu_custom_call.1} parent=355 // pred_region
            %923 = sst [smem:[#allocation18]] [#allocation78]
            %924 = sst [smem:[#allocation19]] [#allocation77]
          $region394: #{tpu_custom_call.1} parent=355 // pred_fallthru
            _
          %926 = shalt.err (0)
          %s928 = sshll.u32 %s918, 4
          %s929 = int_to_ptr.vmem [resolvable:$true] %s928
          %931 = dma.hbm_to_vmem [thread:$0]  %s917, 16, %s929, %s920
          %s932 = sld [smem:[#allocation11 + %s848]]
          %s933 = smul.addr %s932, 16
          %s934 = scalar_lea.hbm %s4, %s933
          %s935 = scalar_lea.vmem [#allocation5], %s852
          %s936 = sadd.s32 %s847, 6
          %s937 = scalar_lea.sflag [#allocation6], %s936
          // Predicated region
          $region395: #{tpu_custom_call.1} parent=355 // pred_check
            _
          $region396: #{tpu_custom_call.1} parent=355 // pred_check_branch
            %939 = sbr.rel target = $region398
          $region397: #{tpu_custom_call.1} parent=355 // pred_region
            %940 = sst [smem:[#allocation18]] [#allocation80]
            %941 = sst [smem:[#allocation19]] [#allocation79]
          $region398: #{tpu_custom_call.1} parent=355 // pred_fallthru
            _
          %943 = shalt.err (0)
          %s945 = sshll.u32 %s935, 4
          %s946 = int_to_ptr.vmem [resolvable:$true] %s945
          %948 = dma.hbm_to_vmem [thread:$0]  %s934, 16, %s946, %s937
          %s949 = sadd.s32 %s848, 1
          %s950 = sld [smem:[#allocation8 + %s949]]
          %s951 = smul.addr %s950, 16
          %s952 = scalar_lea.hbm %s4, %s951
          %s953 = sadd.s32 1, %s852
          %s954 = scalar_lea.vmem [#allocation2], %s953
          // Predicated region
          $region399: #{tpu_custom_call.1} parent=355 // pred_check
            _
          $region400: #{tpu_custom_call.1} parent=355 // pred_check_branch
            %956 = sbr.rel target = $region402
          $region401: #{tpu_custom_call.1} parent=355 // pred_region
            %957 = sst [smem:[#allocation18]] [#allocation82]
            %958 = sst [smem:[#allocation19]] [#allocation81]
          $region402: #{tpu_custom_call.1} parent=355 // pred_fallthru
            _
          %960 = shalt.err (0)
          %s962 = sshll.u32 %s954, 4
          %s963 = int_to_ptr.vmem [resolvable:$true] %s962
          %965 = dma.hbm_to_vmem [thread:$0]  %s952, 16, %s963, %s854
          %s966 = sld [smem:[#allocation9 + %s949]]
          %s967 = scalar_lea.vmem %s5, %s966
          %s968 = scalar_lea.vmem [#allocation3], %s953
          %p970 = scmp.lt.u32.totalorder 1, 8
          %p971 = pneg %p970
          // Predicated region
          $region403: #{tpu_custom_call.1} parent=355 // pred_check
            _
          $region404: #{tpu_custom_call.1} parent=355 // pred_check_branch
            %973 = sbr.rel (%p970) target = $region406
          $region405: #{tpu_custom_call.1} parent=355 // pred_region
            %s988 = sand.u32 1, 7
            %p989 = scmp.eq.s32.totalorder %s988, 0
            %p990 = pneg %p989
            // Predicated region
            $region418: #{tpu_custom_call.1} parent=405 // pred_check
              _
            $region419: #{tpu_custom_call.1} parent=405 // pred_check_branch
              %992 = sbr.rel (%p989) target = $region421
            $region420: #{tpu_custom_call.1} parent=405 // pred_region
              %s993 = sand.u32 1, 7
              %s994 = ssub.s32 1, %s993
              %s995 = scalar_lea.vmem %s967, %s994
              %s996 = ssub.s32 1, %s993
              %s997 = scalar_lea.vmem %s968, %s996 [#allocation3]
              %s998 = sshllo.u32 0, %s993
              loop: start=0, step=1, limit=1
              $region422: #{tpu_custom_call.1} parent=420 // loop_pre_header
                _
              $region423: #{tpu_custom_call.1} parent=420 // loop_header
                %s1000 = sphi 0, %s1004
                %p1001 = scmp.ge.s32.totalorder %s1000, 1
                %s1005 = sphi %s995, %s995
                %s1006 = sphi %s997, %s997
              $region424: #{tpu_custom_call.1} parent=420 // loop_header_branch
                %1003 = sbr.rel (%p1001) target = $region428
              $region425: #{tpu_custom_call.1} parent=420 // loop_body
                %v1007 = vld [vmem:[%s1005] sm:%s998]
                %1008 = vst [vmem:[%s1006] sm:%s998] %v1007
              $region426: #{tpu_custom_call.1} parent=420 // loop_footer
                %s1004 = sadd.s32 1, %s1000
              $region427: #{tpu_custom_call.1} parent=420 // loop_footer_branch
                %999 = sbr.rel target = $region423
              $region428: #{tpu_custom_call.1} parent=420 // loop_exit
                _
            $region421: #{tpu_custom_call.1} parent=405 // pred_fallthru
              _
          $region406: #{tpu_custom_call.1} parent=355 // pred_fallthru
            _
          // Predicated region
          $region407: #{tpu_custom_call.1} parent=355 // pred_check
            %p974 = pneg %p970
          $region408: #{tpu_custom_call.1} parent=355 // pred_check_branch
            %976 = sbr.rel (%p974) target = $region410
          $region409: #{tpu_custom_call.1} parent=355 // pred_region
            %s977 = sshllo.u32 0, 1
            loop: start=0, step=1, limit=1
            $region411: #{tpu_custom_call.1} parent=409 // loop_pre_header
              _
            $region412: #{tpu_custom_call.1} parent=409 // loop_header
              %s979 = sphi 0, %s983
              %p980 = scmp.ge.s32.totalorder %s979, 1
              %s984 = sphi %s967, %s967
              %s985 = sphi %s968, %s968
            $region413: #{tpu_custom_call.1} parent=409 // loop_header_branch
              %982 = sbr.rel (%p980) target = $region417
            $region414: #{tpu_custom_call.1} parent=409 // loop_body
              %v986 = vld [vmem:[%s984] sm:%s977]
              %987 = vst [vmem:[%s985] sm:%s977] %v986
            $region415: #{tpu_custom_call.1} parent=409 // loop_footer
              %s983 = sadd.s32 1, %s979
            $region416: #{tpu_custom_call.1} parent=409 // loop_footer_branch
              %978 = sbr.rel target = $region412
            $region417: #{tpu_custom_call.1} parent=409 // loop_exit
              _
          $region410: #{tpu_custom_call.1} parent=355 // pred_fallthru
            _
          // Predicated region
          $region429: #{tpu_custom_call.1} parent=355 // pred_check
            _
          $region430: #{tpu_custom_call.1} parent=355 // pred_check_branch
            %1011 = sbr.rel (0) target = $region432
          $region431: #{tpu_custom_call.1} parent=355 // pred_region
            %1012 = vsyncadd %s870, 16
          $region432: #{tpu_custom_call.1} parent=355 // pred_fallthru
            _
          %s1013 = sld [smem:[#allocation10 + %s949]]
          %s1014 = smul.addr %s1013, 16
          %s1015 = scalar_lea.hbm %s4, %s1014
          %s1016 = scalar_lea.vmem [#allocation4], %s953
          // Predicated region
          $region433: #{tpu_custom_call.1} parent=355 // pred_check
            _
          $region434: #{tpu_custom_call.1} parent=355 // pred_check_branch
            %1018 = sbr.rel target = $region436
          $region435: #{tpu_custom_call.1} parent=355 // pred_region
            %1019 = sst [smem:[#allocation18]] [#allocation85]
            %1020 = sst [smem:[#allocation19]] [#allocation84]
          $region436: #{tpu_custom_call.1} parent=355 // pred_fallthru
            _
          %1022 = shalt.err (0)
          %s1024 = sshll.u32 %s1016, 4
          %s1025 = int_to_ptr.vmem [resolvable:$true] %s1024
          %1027 = dma.hbm_to_vmem [thread:$0]  %s1015, 16, %s1025, %s920
          %s1028 = sld [smem:[#allocation11 + %s949]]
          %s1029 = smul.addr %s1028, 16
          %s1030 = scalar_lea.hbm %s4, %s1029
          %s1031 = scalar_lea.vmem [#allocation5], %s953
          // Predicated region
          $region437: #{tpu_custom_call.1} parent=355 // pred_check
            _
          $region438: #{tpu_custom_call.1} parent=355 // pred_check_branch
            %1033 = sbr.rel target = $region440
          $region439: #{tpu_custom_call.1} parent=355 // pred_region
            %1034 = sst [smem:[#allocation18]] [#allocation87]
            %1035 = sst [smem:[#allocation19]] [#allocation86]
          $region440: #{tpu_custom_call.1} parent=355 // pred_fallthru
            _
          %1037 = shalt.err (0)
          %s1039 = sshll.u32 %s1031, 4
          %s1040 = int_to_ptr.vmem [resolvable:$true] %s1039
          %1042 = dma.hbm_to_vmem [thread:$0]  %s1030, 16, %s1040, %s937
          %s1043 = sadd.s32 %s848, 2
          %s1044 = sld [smem:[#allocation8 + %s1043]]
          %s1045 = smul.addr %s1044, 16
          %s1046 = scalar_lea.hbm %s4, %s1045
          %s1047 = sadd.s32 2, %s852
          %s1048 = scalar_lea.vmem [#allocation2], %s1047
          // Predicated region
          $region441: #{tpu_custom_call.1} parent=355 // pred_check
            _
          $region442: #{tpu_custom_call.1} parent=355 // pred_check_branch
            %1050 = sbr.rel target = $region444
          $region443: #{tpu_custom_call.1} parent=355 // pred_region
            %1051 = sst [smem:[#allocation18]] [#allocation89]
            %1052 = sst [smem:[#allocation19]] [#allocation88]
          $region444: #{tpu_custom_call.1} parent=355 // pred_fallthru
            _
          %1054 = shalt.err (0)
          %s1056 = sshll.u32 %s1048, 4
          %s1057 = int_to_ptr.vmem [resolvable:$true] %s1056
          %1059 = dma.hbm_to_vmem [thread:$0]  %s1046, 16, %s1057, %s854
          %s1060 = sld [smem:[#allocation9 + %s1043]]
          %s1061 = scalar_lea.vmem %s5, %s1060
          %s1062 = scalar_lea.vmem [#allocation3], %s1047
          %p1064 = scmp.lt.u32.totalorder 1, 8
          %p1065 = pneg %p1064
          // Predicated region
          $region445: #{tpu_custom_call.1} parent=355 // pred_check
            _
          $region446: #{tpu_custom_call.1} parent=355 // pred_check_branch
            %1067 = sbr.rel (%p1064) target = $region448
          $region447: #{tpu_custom_call.1} parent=355 // pred_region
            %s1082 = sand.u32 1, 7
            %p1083 = scmp.eq.s32.totalorder %s1082, 0
            %p1084 = pneg %p1083
            // Predicated region
            $region460: #{tpu_custom_call.1} parent=447 // pred_check
              _
            $region461: #{tpu_custom_call.1} parent=447 // pred_check_branch
              %1086 = sbr.rel (%p1083) target = $region463
            $region462: #{tpu_custom_call.1} parent=447 // pred_region
              %s1087 = sand.u32 1, 7
              %s1088 = ssub.s32 1, %s1087
              %s1089 = scalar_lea.vmem %s1061, %s1088
              %s1090 = ssub.s32 1, %s1087
              %s1091 = scalar_lea.vmem %s1062, %s1090 [#allocation3]
              %s1092 = sshllo.u32 0, %s1087
              loop: start=0, step=1, limit=1
              $region464: #{tpu_custom_call.1} parent=462 // loop_pre_header
                _
              $region465: #{tpu_custom_call.1} parent=462 // loop_header
                %s1094 = sphi 0, %s1098
                %p1095 = scmp.ge.s32.totalorder %s1094, 1
                %s1099 = sphi %s1089, %s1089
                %s1100 = sphi %s1091, %s1091
              $region466: #{tpu_custom_call.1} parent=462 // loop_header_branch
                %1097 = sbr.rel (%p1095) target = $region470
              $region467: #{tpu_custom_call.1} parent=462 // loop_body
                %v1101 = vld [vmem:[%s1099] sm:%s1092]
                %1102 = vst [vmem:[%s1100] sm:%s1092] %v1101
              $region468: #{tpu_custom_call.1} parent=462 // loop_footer
                %s1098 = sadd.s32 1, %s1094
              $region469: #{tpu_custom_call.1} parent=462 // loop_footer_branch
                %1093 = sbr.rel target = $region465
              $region470: #{tpu_custom_call.1} parent=462 // loop_exit
                _
            $region463: #{tpu_custom_call.1} parent=447 // pred_fallthru
              _
          $region448: #{tpu_custom_call.1} parent=355 // pred_fallthru
            _
          // Predicated region
          $region449: #{tpu_custom_call.1} parent=355 // pred_check
            %p1068 = pneg %p1064
          $region450: #{tpu_custom_call.1} parent=355 // pred_check_branch
            %1070 = sbr.rel (%p1068) target = $region452
          $region451: #{tpu_custom_call.1} parent=355 // pred_region
            %s1071 = sshllo.u32 0, 1
            loop: start=0, step=1, limit=1
            $region453: #{tpu_custom_call.1} parent=451 // loop_pre_header
              _
            $region454: #{tpu_custom_call.1} parent=451 // loop_header
              %s1073 = sphi 0, %s1077
              %p1074 = scmp.ge.s32.totalorder %s1073, 1
              %s1078 = sphi %s1061, %s1061
              %s1079 = sphi %s1062, %s1062
            $region455: #{tpu_custom_call.1} parent=451 // loop_header_branch
              %1076 = sbr.rel (%p1074) target = $region459
            $region456: #{tpu_custom_call.1} parent=451 // loop_body
              %v1080 = vld [vmem:[%s1078] sm:%s1071]
              %1081 = vst [vmem:[%s1079] sm:%s1071] %v1080
            $region457: #{tpu_custom_call.1} parent=451 // loop_footer
              %s1077 = sadd.s32 1, %s1073
            $region458: #{tpu_custom_call.1} parent=451 // loop_footer_branch
              %1072 = sbr.rel target = $region454
            $region459: #{tpu_custom_call.1} parent=451 // loop_exit
              _
          $region452: #{tpu_custom_call.1} parent=355 // pred_fallthru
            _
          // Predicated region
          $region471: #{tpu_custom_call.1} parent=355 // pred_check
            _
          $region472: #{tpu_custom_call.1} parent=355 // pred_check_branch
            %1105 = sbr.rel (0) target = $region474
          $region473: #{tpu_custom_call.1} parent=355 // pred_region
            %1106 = vsyncadd %s870, 16
          $region474: #{tpu_custom_call.1} parent=355 // pred_fallthru
            _
          %s1107 = sld [smem:[#allocation10 + %s1043]]
          %s1108 = smul.addr %s1107, 16
          %s1109 = scalar_lea.hbm %s4, %s1108
          %s1110 = scalar_lea.vmem [#allocation4], %s1047
          // Predicated region
          $region475: #{tpu_custom_call.1} parent=355 // pred_check
            _
          $region476: #{tpu_custom_call.1} parent=355 // pred_check_branch
            %1112 = sbr.rel target = $region478
          $region477: #{tpu_custom_call.1} parent=355 // pred_region
            %1113 = sst [smem:[#allocation18]] [#allocation92]
            %1114 = sst [smem:[#allocation19]] [#allocation91]
          $region478: #{tpu_custom_call.1} parent=355 // pred_fallthru
            _
          %1116 = shalt.err (0)
          %s1118 = sshll.u32 %s1110, 4
          %s1119 = int_to_ptr.vmem [resolvable:$true] %s1118
          %1121 = dma.hbm_to_vmem [thread:$0]  %s1109, 16, %s1119, %s920
          %s1122 = sld [smem:[#allocation11 + %s1043]]
          %s1123 = smul.addr %s1122, 16
          %s1124 = scalar_lea.hbm %s4, %s1123
          %s1125 = scalar_lea.vmem [#allocation5], %s1047
          // Predicated region
          $region479: #{tpu_custom_call.1} parent=355 // pred_check
            _
          $region480: #{tpu_custom_call.1} parent=355 // pred_check_branch
            %1127 = sbr.rel target = $region482
          $region481: #{tpu_custom_call.1} parent=355 // pred_region
            %1128 = sst [smem:[#allocation18]] [#allocation94]
            %1129 = sst [smem:[#allocation19]] [#allocation93]
          $region482: #{tpu_custom_call.1} parent=355 // pred_fallthru
            _
          %1131 = shalt.err (0)
          %s1133 = sshll.u32 %s1125, 4
          %s1134 = int_to_ptr.vmem [resolvable:$true] %s1133
          %1136 = dma.hbm_to_vmem [thread:$0]  %s1124, 16, %s1134, %s937
          %s1137 = sadd.s32 %s848, 3
          %s1138 = sld [smem:[#allocation8 + %s1137]]
          %s1139 = smul.addr %s1138, 16
          %s1140 = scalar_lea.hbm %s4, %s1139
          %s1141 = sadd.s32 3, %s852
          %s1142 = scalar_lea.vmem [#allocation2], %s1141
          // Predicated region
          $region483: #{tpu_custom_call.1} parent=355 // pred_check
            _
          $region484: #{tpu_custom_call.1} parent=355 // pred_check_branch
            %1144 = sbr.rel target = $region486
          $region485: #{tpu_custom_call.1} parent=355 // pred_region
            %1145 = sst [smem:[#allocation18]] [#allocation96]
            %1146 = sst [smem:[#allocation19]] [#allocation95]
          $region486: #{tpu_custom_call.1} parent=355 // pred_fallthru
            _
          %1148 = shalt.err (0)
          %s1150 = sshll.u32 %s1142, 4
          %s1151 = int_to_ptr.vmem [resolvable:$true] %s1150
          %1153 = dma.hbm_to_vmem [thread:$0]  %s1140, 16, %s1151, %s854
          %s1154 = sld [smem:[#allocation9 + %s1137]]
          %s1155 = scalar_lea.vmem %s5, %s1154
          %s1156 = scalar_lea.vmem [#allocation3], %s1141
          %p1158 = scmp.lt.u32.totalorder 1, 8
          %p1159 = pneg %p1158
          // Predicated region
          $region487: #{tpu_custom_call.1} parent=355 // pred_check
            _
          $region488: #{tpu_custom_call.1} parent=355 // pred_check_branch
            %1161 = sbr.rel (%p1158) target = $region490
          $region489: #{tpu_custom_call.1} parent=355 // pred_region
            %s1176 = sand.u32 1, 7
            %p1177 = scmp.eq.s32.totalorder %s1176, 0
            %p1178 = pneg %p1177
            // Predicated region
            $region502: #{tpu_custom_call.1} parent=489 // pred_check
              _
            $region503: #{tpu_custom_call.1} parent=489 // pred_check_branch
              %1180 = sbr.rel (%p1177) target = $region505
            $region504: #{tpu_custom_call.1} parent=489 // pred_region
              %s1181 = sand.u32 1, 7
              %s1182 = ssub.s32 1, %s1181
              %s1183 = scalar_lea.vmem %s1155, %s1182
              %s1184 = ssub.s32 1, %s1181
              %s1185 = scalar_lea.vmem %s1156, %s1184 [#allocation3]
              %s1186 = sshllo.u32 0, %s1181
              loop: start=0, step=1, limit=1
              $region506: #{tpu_custom_call.1} parent=504 // loop_pre_header
                _
              $region507: #{tpu_custom_call.1} parent=504 // loop_header
                %s1188 = sphi 0, %s1192
                %p1189 = scmp.ge.s32.totalorder %s1188, 1
                %s1193 = sphi %s1183, %s1183
                %s1194 = sphi %s1185, %s1185
              $region508: #{tpu_custom_call.1} parent=504 // loop_header_branch
                %1191 = sbr.rel (%p1189) target = $region512
              $region509: #{tpu_custom_call.1} parent=504 // loop_body
                %v1195 = vld [vmem:[%s1193] sm:%s1186]
                %1196 = vst [vmem:[%s1194] sm:%s1186] %v1195
              $region510: #{tpu_custom_call.1} parent=504 // loop_footer
                %s1192 = sadd.s32 1, %s1188
              $region511: #{tpu_custom_call.1} parent=504 // loop_footer_branch
                %1187 = sbr.rel target = $region507
              $region512: #{tpu_custom_call.1} parent=504 // loop_exit
                _
            $region505: #{tpu_custom_call.1} parent=489 // pred_fallthru
              _
          $region490: #{tpu_custom_call.1} parent=355 // pred_fallthru
            _
          // Predicated region
          $region491: #{tpu_custom_call.1} parent=355 // pred_check
            %p1162 = pneg %p1158
          $region492: #{tpu_custom_call.1} parent=355 // pred_check_branch
            %1164 = sbr.rel (%p1162) target = $region494
          $region493: #{tpu_custom_call.1} parent=355 // pred_region
            %s1165 = sshllo.u32 0, 1
            loop: start=0, step=1, limit=1
            $region495: #{tpu_custom_call.1} parent=493 // loop_pre_header
              _
            $region496: #{tpu_custom_call.1} parent=493 // loop_header
              %s1167 = sphi 0, %s1171
              %p1168 = scmp.ge.s32.totalorder %s1167, 1
              %s1172 = sphi %s1155, %s1155
              %s1173 = sphi %s1156, %s1156
            $region497: #{tpu_custom_call.1} parent=493 // loop_header_branch
              %1170 = sbr.rel (%p1168) target = $region501
            $region498: #{tpu_custom_call.1} parent=493 // loop_body
              %v1174 = vld [vmem:[%s1172] sm:%s1165]
              %1175 = vst [vmem:[%s1173] sm:%s1165] %v1174
            $region499: #{tpu_custom_call.1} parent=493 // loop_footer
              %s1171 = sadd.s32 1, %s1167
            $region500: #{tpu_custom_call.1} parent=493 // loop_footer_branch
              %1166 = sbr.rel target = $region496
            $region501: #{tpu_custom_call.1} parent=493 // loop_exit
              _
          $region494: #{tpu_custom_call.1} parent=355 // pred_fallthru
            _
          // Predicated region
          $region513: #{tpu_custom_call.1} parent=355 // pred_check
            _
          $region514: #{tpu_custom_call.1} parent=355 // pred_check_branch
            %1199 = sbr.rel (0) target = $region516
          $region515: #{tpu_custom_call.1} parent=355 // pred_region
            %1200 = vsyncadd %s870, 16
          $region516: #{tpu_custom_call.1} parent=355 // pred_fallthru
            _
          %s1201 = sld [smem:[#allocation10 + %s1137]]
          %s1202 = smul.addr %s1201, 16
          %s1203 = scalar_lea.hbm %s4, %s1202
          %s1204 = scalar_lea.vmem [#allocation4], %s1141
          // Predicated region
          $region517: #{tpu_custom_call.1} parent=355 // pred_check
            _
          $region518: #{tpu_custom_call.1} parent=355 // pred_check_branch
            %1206 = sbr.rel target = $region520
          $region519: #{tpu_custom_call.1} parent=355 // pred_region
            %1207 = sst [smem:[#allocation18]] [#allocation99]
            %1208 = sst [smem:[#allocation19]] [#allocation98]
          $region520: #{tpu_custom_call.1} parent=355 // pred_fallthru
            _
          %1210 = shalt.err (0)
          %s1212 = sshll.u32 %s1204, 4
          %s1213 = int_to_ptr.vmem [resolvable:$true] %s1212
          %1215 = dma.hbm_to_vmem [thread:$0]  %s1203, 16, %s1213, %s920
          %s1216 = sld [smem:[#allocation11 + %s1137]]
          %s1217 = smul.addr %s1216, 16
          %s1218 = scalar_lea.hbm %s4, %s1217
          %s1219 = scalar_lea.vmem [#allocation5], %s1141
          // Predicated region
          $region521: #{tpu_custom_call.1} parent=355 // pred_check
            _
          $region522: #{tpu_custom_call.1} parent=355 // pred_check_branch
            %1221 = sbr.rel target = $region524
          $region523: #{tpu_custom_call.1} parent=355 // pred_region
            %1222 = sst [smem:[#allocation18]] [#allocation101]
            %1223 = sst [smem:[#allocation19]] [#allocation100]
          $region524: #{tpu_custom_call.1} parent=355 // pred_fallthru
            _
          %1225 = shalt.err (0)
          %s1227 = sshll.u32 %s1219, 4
          %s1228 = int_to_ptr.vmem [resolvable:$true] %s1227
          %1230 = dma.hbm_to_vmem [thread:$0]  %s1218, 16, %s1228, %s937
          %s1231 = sadd.s32 %s848, 4
          %s1232 = sld [smem:[#allocation8 + %s1231]]
          %s1233 = smul.addr %s1232, 16
          %s1234 = scalar_lea.hbm %s4, %s1233
          %s1235 = sadd.s32 4, %s852
          %s1236 = scalar_lea.vmem [#allocation2], %s1235
          // Predicated region
          $region525: #{tpu_custom_call.1} parent=355 // pred_check
            _
          $region526: #{tpu_custom_call.1} parent=355 // pred_check_branch
            %1238 = sbr.rel target = $region528
          $region527: #{tpu_custom_call.1} parent=355 // pred_region
            %1239 = sst [smem:[#allocation18]] [#allocation103]
            %1240 = sst [smem:[#allocation19]] [#allocation102]
          $region528: #{tpu_custom_call.1} parent=355 // pred_fallthru
            _
          %1242 = shalt.err (0)
          %s1244 = sshll.u32 %s1236, 4
          %s1245 = int_to_ptr.vmem [resolvable:$true] %s1244
          %1247 = dma.hbm_to_vmem [thread:$0]  %s1234, 16, %s1245, %s854
          %s1248 = sld [smem:[#allocation9 + %s1231]]
          %s1249 = scalar_lea.vmem %s5, %s1248
          %s1250 = scalar_lea.vmem [#allocation3], %s1235
          %p1252 = scmp.lt.u32.totalorder 1, 8
          %p1253 = pneg %p1252
          // Predicated region
          $region529: #{tpu_custom_call.1} parent=355 // pred_check
            _
          $region530: #{tpu_custom_call.1} parent=355 // pred_check_branch
            %1255 = sbr.rel (%p1252) target = $region532
          $region531: #{tpu_custom_call.1} parent=355 // pred_region
            %s1270 = sand.u32 1, 7
            %p1271 = scmp.eq.s32.totalorder %s1270, 0
            %p1272 = pneg %p1271
            // Predicated region
            $region544: #{tpu_custom_call.1} parent=531 // pred_check
              _
            $region545: #{tpu_custom_call.1} parent=531 // pred_check_branch
              %1274 = sbr.rel (%p1271) target = $region547
            $region546: #{tpu_custom_call.1} parent=531 // pred_region
              %s1275 = sand.u32 1, 7
              %s1276 = ssub.s32 1, %s1275
              %s1277 = scalar_lea.vmem %s1249, %s1276
              %s1278 = ssub.s32 1, %s1275
              %s1279 = scalar_lea.vmem %s1250, %s1278 [#allocation3]
              %s1280 = sshllo.u32 0, %s1275
              loop: start=0, step=1, limit=1
              $region548: #{tpu_custom_call.1} parent=546 // loop_pre_header
                _
              $region549: #{tpu_custom_call.1} parent=546 // loop_header
                %s1282 = sphi 0, %s1286
                %p1283 = scmp.ge.s32.totalorder %s1282, 1
                %s1287 = sphi %s1277, %s1277
                %s1288 = sphi %s1279, %s1279
              $region550: #{tpu_custom_call.1} parent=546 // loop_header_branch
                %1285 = sbr.rel (%p1283) target = $region554
              $region551: #{tpu_custom_call.1} parent=546 // loop_body
                %v1289 = vld [vmem:[%s1287] sm:%s1280]
                %1290 = vst [vmem:[%s1288] sm:%s1280] %v1289
              $region552: #{tpu_custom_call.1} parent=546 // loop_footer
                %s1286 = sadd.s32 1, %s1282
              $region553: #{tpu_custom_call.1} parent=546 // loop_footer_branch
                %1281 = sbr.rel target = $region549
              $region554: #{tpu_custom_call.1} parent=546 // loop_exit
                _
            $region547: #{tpu_custom_call.1} parent=531 // pred_fallthru
              _
          $region532: #{tpu_custom_call.1} parent=355 // pred_fallthru
            _
          // Predicated region
          $region533: #{tpu_custom_call.1} parent=355 // pred_check
            %p1256 = pneg %p1252
          $region534: #{tpu_custom_call.1} parent=355 // pred_check_branch
            %1258 = sbr.rel (%p1256) target = $region536
          $region535: #{tpu_custom_call.1} parent=355 // pred_region
            %s1259 = sshllo.u32 0, 1
            loop: start=0, step=1, limit=1
            $region537: #{tpu_custom_call.1} parent=535 // loop_pre_header
              _
            $region538: #{tpu_custom_call.1} parent=535 // loop_header
              %s1261 = sphi 0, %s1265
              %p1262 = scmp.ge.s32.totalorder %s1261, 1
              %s1266 = sphi %s1249, %s1249
              %s1267 = sphi %s1250, %s1250
            $region539: #{tpu_custom_call.1} parent=535 // loop_header_branch
              %1264 = sbr.rel (%p1262) target = $region543
            $region540: #{tpu_custom_call.1} parent=535 // loop_body
              %v1268 = vld [vmem:[%s1266] sm:%s1259]
              %1269 = vst [vmem:[%s1267] sm:%s1259] %v1268
            $region541: #{tpu_custom_call.1} parent=535 // loop_footer
              %s1265 = sadd.s32 1, %s1261
            $region542: #{tpu_custom_call.1} parent=535 // loop_footer_branch
              %1260 = sbr.rel target = $region538
            $region543: #{tpu_custom_call.1} parent=535 // loop_exit
              _
          $region536: #{tpu_custom_call.1} parent=355 // pred_fallthru
            _
          // Predicated region
          $region555: #{tpu_custom_call.1} parent=355 // pred_check
            _
          $region556: #{tpu_custom_call.1} parent=355 // pred_check_branch
            %1293 = sbr.rel (0) target = $region558
          $region557: #{tpu_custom_call.1} parent=355 // pred_region
            %1294 = vsyncadd %s870, 16
          $region558: #{tpu_custom_call.1} parent=355 // pred_fallthru
            _
          %s1295 = sld [smem:[#allocation10 + %s1231]]
          %s1296 = smul.addr %s1295, 16
          %s1297 = scalar_lea.hbm %s4, %s1296
          %s1298 = scalar_lea.vmem [#allocation4], %s1235
          // Predicated region
          $region559: #{tpu_custom_call.1} parent=355 // pred_check
            _
          $region560: #{tpu_custom_call.1} parent=355 // pred_check_branch
            %1300 = sbr.rel target = $region562
          $region561: #{tpu_custom_call.1} parent=355 // pred_region
            %1301 = sst [smem:[#allocation18]] [#allocation106]
            %1302 = sst [smem:[#allocation19]] [#allocation105]
          $region562: #{tpu_custom_call.1} parent=355 // pred_fallthru
            _
          %1304 = shalt.err (0)
          %s1306 = sshll.u32 %s1298, 4
          %s1307 = int_to_ptr.vmem [resolvable:$true] %s1306
          %1309 = dma.hbm_to_vmem [thread:$0]  %s1297, 16, %s1307, %s920
          %s1310 = sld [smem:[#allocation11 + %s1231]]
          %s1311 = smul.addr %s1310, 16
          %s1312 = scalar_lea.hbm %s4, %s1311
          %s1313 = scalar_lea.vmem [#allocation5], %s1235
          // Predicated region
          $region563: #{tpu_custom_call.1} parent=355 // pred_check
            _
          $region564: #{tpu_custom_call.1} parent=355 // pred_check_branch
            %1315 = sbr.rel target = $region566
          $region565: #{tpu_custom_call.1} parent=355 // pred_region
            %1316 = sst [smem:[#allocation18]] [#allocation108]
            %1317 = sst [smem:[#allocation19]] [#allocation107]
          $region566: #{tpu_custom_call.1} parent=355 // pred_fallthru
            _
          %1319 = shalt.err (0)
          %s1321 = sshll.u32 %s1313, 4
          %s1322 = int_to_ptr.vmem [resolvable:$true] %s1321
          %1324 = dma.hbm_to_vmem [thread:$0]  %s1312, 16, %s1322, %s937
          %s1325 = sadd.s32 %s848, 5
          %s1326 = sld [smem:[#allocation8 + %s1325]]
          %s1327 = smul.addr %s1326, 16
          %s1328 = scalar_lea.hbm %s4, %s1327
          %s1329 = sadd.s32 5, %s852
          %s1330 = scalar_lea.vmem [#allocation2], %s1329
          // Predicated region
          $region567: #{tpu_custom_call.1} parent=355 // pred_check
            _
          $region568: #{tpu_custom_call.1} parent=355 // pred_check_branch
            %1332 = sbr.rel target = $region570
          $region569: #{tpu_custom_call.1} parent=355 // pred_region
            %1333 = sst [smem:[#allocation18]] [#allocation110]
            %1334 = sst [smem:[#allocation19]] [#allocation109]
          $region570: #{tpu_custom_call.1} parent=355 // pred_fallthru
            _
          %1336 = shalt.err (0)
          %s1338 = sshll.u32 %s1330, 4
          %s1339 = int_to_ptr.vmem [resolvable:$true] %s1338
          %1341 = dma.hbm_to_vmem [thread:$0]  %s1328, 16, %s1339, %s854
          %s1342 = sld [smem:[#allocation9 + %s1325]]
          %s1343 = scalar_lea.vmem %s5, %s1342
          %s1344 = scalar_lea.vmem [#allocation3], %s1329
          %p1346 = scmp.lt.u32.totalorder 1, 8
          %p1347 = pneg %p1346
          // Predicated region
          $region571: #{tpu_custom_call.1} parent=355 // pred_check
            _
          $region572: #{tpu_custom_call.1} parent=355 // pred_check_branch
            %1349 = sbr.rel (%p1346) target = $region574
          $region573: #{tpu_custom_call.1} parent=355 // pred_region
            %s1364 = sand.u32 1, 7
            %p1365 = scmp.eq.s32.totalorder %s1364, 0
            %p1366 = pneg %p1365
            // Predicated region
            $region586: #{tpu_custom_call.1} parent=573 // pred_check
              _
            $region587: #{tpu_custom_call.1} parent=573 // pred_check_branch
              %1368 = sbr.rel (%p1365) target = $region589
            $region588: #{tpu_custom_call.1} parent=573 // pred_region
              %s1369 = sand.u32 1, 7
              %s1370 = ssub.s32 1, %s1369
              %s1371 = scalar_lea.vmem %s1343, %s1370
              %s1372 = ssub.s32 1, %s1369
              %s1373 = scalar_lea.vmem %s1344, %s1372 [#allocation3]
              %s1374 = sshllo.u32 0, %s1369
              loop: start=0, step=1, limit=1
              $region590: #{tpu_custom_call.1} parent=588 // loop_pre_header
                _
              $region591: #{tpu_custom_call.1} parent=588 // loop_header
                %s1376 = sphi 0, %s1380
                %p1377 = scmp.ge.s32.totalorder %s1376, 1
                %s1381 = sphi %s1371, %s1371
                %s1382 = sphi %s1373, %s1373
              $region592: #{tpu_custom_call.1} parent=588 // loop_header_branch
                %1379 = sbr.rel (%p1377) target = $region596
              $region593: #{tpu_custom_call.1} parent=588 // loop_body
                %v1383 = vld [vmem:[%s1381] sm:%s1374]
                %1384 = vst [vmem:[%s1382] sm:%s1374] %v1383
              $region594: #{tpu_custom_call.1} parent=588 // loop_footer
                %s1380 = sadd.s32 1, %s1376
              $region595: #{tpu_custom_call.1} parent=588 // loop_footer_branch
                %1375 = sbr.rel target = $region591
              $region596: #{tpu_custom_call.1} parent=588 // loop_exit
                _
            $region589: #{tpu_custom_call.1} parent=573 // pred_fallthru
              _
          $region574: #{tpu_custom_call.1} parent=355 // pred_fallthru
            _
          // Predicated region
          $region575: #{tpu_custom_call.1} parent=355 // pred_check
            %p1350 = pneg %p1346
          $region576: #{tpu_custom_call.1} parent=355 // pred_check_branch
            %1352 = sbr.rel (%p1350) target = $region578
          $region577: #{tpu_custom_call.1} parent=355 // pred_region
            %s1353 = sshllo.u32 0, 1
            loop: start=0, step=1, limit=1
            $region579: #{tpu_custom_call.1} parent=577 // loop_pre_header
              _
            $region580: #{tpu_custom_call.1} parent=577 // loop_header
              %s1355 = sphi 0, %s1359
              %p1356 = scmp.ge.s32.totalorder %s1355, 1
              %s1360 = sphi %s1343, %s1343
              %s1361 = sphi %s1344, %s1344
            $region581: #{tpu_custom_call.1} parent=577 // loop_header_branch
              %1358 = sbr.rel (%p1356) target = $region585
            $region582: #{tpu_custom_call.1} parent=577 // loop_body
              %v1362 = vld [vmem:[%s1360] sm:%s1353]
              %1363 = vst [vmem:[%s1361] sm:%s1353] %v1362
            $region583: #{tpu_custom_call.1} parent=577 // loop_footer
              %s1359 = sadd.s32 1, %s1355
            $region584: #{tpu_custom_call.1} parent=577 // loop_footer_branch
              %1354 = sbr.rel target = $region580
            $region585: #{tpu_custom_call.1} parent=577 // loop_exit
              _
          $region578: #{tpu_custom_call.1} parent=355 // pred_fallthru
            _
          // Predicated region
          $region597: #{tpu_custom_call.1} parent=355 // pred_check
            _
          $region598: #{tpu_custom_call.1} parent=355 // pred_check_branch
            %1387 = sbr.rel (0) target = $region600
          $region599: #{tpu_custom_call.1} parent=355 // pred_region
            %1388 = vsyncadd %s870, 16
          $region600: #{tpu_custom_call.1} parent=355 // pred_fallthru
            _
          %s1389 = sld [smem:[#allocation10 + %s1325]]
          %s1390 = smul.addr %s1389, 16
          %s1391 = scalar_lea.hbm %s4, %s1390
          %s1392 = scalar_lea.vmem [#allocation4], %s1329
          // Predicated region
          $region601: #{tpu_custom_call.1} parent=355 // pred_check
            _
          $region602: #{tpu_custom_call.1} parent=355 // pred_check_branch
            %1394 = sbr.rel target = $region604
          $region603: #{tpu_custom_call.1} parent=355 // pred_region
            %1395 = sst [smem:[#allocation18]] [#allocation113]
            %1396 = sst [smem:[#allocation19]] [#allocation112]
          $region604: #{tpu_custom_call.1} parent=355 // pred_fallthru
            _
          %1398 = shalt.err (0)
          %s1400 = sshll.u32 %s1392, 4
          %s1401 = int_to_ptr.vmem [resolvable:$true] %s1400
          %1403 = dma.hbm_to_vmem [thread:$0]  %s1391, 16, %s1401, %s920
          %s1404 = sld [smem:[#allocation11 + %s1325]]
          %s1405 = smul.addr %s1404, 16
          %s1406 = scalar_lea.hbm %s4, %s1405
          %s1407 = scalar_lea.vmem [#allocation5], %s1329
          // Predicated region
          $region605: #{tpu_custom_call.1} parent=355 // pred_check
            _
          $region606: #{tpu_custom_call.1} parent=355 // pred_check_branch
            %1409 = sbr.rel target = $region608
          $region607: #{tpu_custom_call.1} parent=355 // pred_region
            %1410 = sst [smem:[#allocation18]] [#allocation115]
            %1411 = sst [smem:[#allocation19]] [#allocation114]
          $region608: #{tpu_custom_call.1} parent=355 // pred_fallthru
            _
          %1413 = shalt.err (0)
          %s1415 = sshll.u32 %s1407, 4
          %s1416 = int_to_ptr.vmem [resolvable:$true] %s1415
          %1418 = dma.hbm_to_vmem [thread:$0]  %s1406, 16, %s1416, %s937
          %s1419 = sadd.s32 %s848, 6
          %s1420 = sld [smem:[#allocation8 + %s1419]]
          %s1421 = smul.addr %s1420, 16
          %s1422 = scalar_lea.hbm %s4, %s1421
          %s1423 = sadd.s32 6, %s852
          %s1424 = scalar_lea.vmem [#allocation2], %s1423
          // Predicated region
          $region609: #{tpu_custom_call.1} parent=355 // pred_check
            _
          $region610: #{tpu_custom_call.1} parent=355 // pred_check_branch
            %1426 = sbr.rel target = $region612
          $region611: #{tpu_custom_call.1} parent=355 // pred_region
            %1427 = sst [smem:[#allocation18]] [#allocation117]
            %1428 = sst [smem:[#allocation19]] [#allocation116]
          $region612: #{tpu_custom_call.1} parent=355 // pred_fallthru
            _
          %1430 = shalt.err (0)
          %s1432 = sshll.u32 %s1424, 4
          %s1433 = int_to_ptr.vmem [resolvable:$true] %s1432
          %1435 = dma.hbm_to_vmem [thread:$0]  %s1422, 16, %s1433, %s854
          %s1436 = sld [smem:[#allocation9 + %s1419]]
          %s1437 = scalar_lea.vmem %s5, %s1436
          %s1438 = scalar_lea.vmem [#allocation3], %s1423
          %p1440 = scmp.lt.u32.totalorder 1, 8
          %p1441 = pneg %p1440
          // Predicated region
          $region613: #{tpu_custom_call.1} parent=355 // pred_check
            _
          $region614: #{tpu_custom_call.1} parent=355 // pred_check_branch
            %1443 = sbr.rel (%p1440) target = $region616
          $region615: #{tpu_custom_call.1} parent=355 // pred_region
            %s1458 = sand.u32 1, 7
            %p1459 = scmp.eq.s32.totalorder %s1458, 0
            %p1460 = pneg %p1459
            // Predicated region
            $region628: #{tpu_custom_call.1} parent=615 // pred_check
              _
            $region629: #{tpu_custom_call.1} parent=615 // pred_check_branch
              %1462 = sbr.rel (%p1459) target = $region631
            $region630: #{tpu_custom_call.1} parent=615 // pred_region
              %s1463 = sand.u32 1, 7
              %s1464 = ssub.s32 1, %s1463
              %s1465 = scalar_lea.vmem %s1437, %s1464
              %s1466 = ssub.s32 1, %s1463
              %s1467 = scalar_lea.vmem %s1438, %s1466 [#allocation3]
              %s1468 = sshllo.u32 0, %s1463
              loop: start=0, step=1, limit=1
              $region632: #{tpu_custom_call.1} parent=630 // loop_pre_header
                _
              $region633: #{tpu_custom_call.1} parent=630 // loop_header
                %s1470 = sphi 0, %s1474
                %p1471 = scmp.ge.s32.totalorder %s1470, 1
                %s1475 = sphi %s1465, %s1465
                %s1476 = sphi %s1467, %s1467
              $region634: #{tpu_custom_call.1} parent=630 // loop_header_branch
                %1473 = sbr.rel (%p1471) target = $region638
              $region635: #{tpu_custom_call.1} parent=630 // loop_body
                %v1477 = vld [vmem:[%s1475] sm:%s1468]
                %1478 = vst [vmem:[%s1476] sm:%s1468] %v1477
              $region636: #{tpu_custom_call.1} parent=630 // loop_footer
                %s1474 = sadd.s32 1, %s1470
              $region637: #{tpu_custom_call.1} parent=630 // loop_footer_branch
                %1469 = sbr.rel target = $region633
              $region638: #{tpu_custom_call.1} parent=630 // loop_exit
                _
            $region631: #{tpu_custom_call.1} parent=615 // pred_fallthru
              _
          $region616: #{tpu_custom_call.1} parent=355 // pred_fallthru
            _
          // Predicated region
          $region617: #{tpu_custom_call.1} parent=355 // pred_check
            %p1444 = pneg %p1440
          $region618: #{tpu_custom_call.1} parent=355 // pred_check_branch
            %1446 = sbr.rel (%p1444) target = $region620
          $region619: #{tpu_custom_call.1} parent=355 // pred_region
            %s1447 = sshllo.u32 0, 1
            loop: start=0, step=1, limit=1
            $region621: #{tpu_custom_call.1} parent=619 // loop_pre_header
              _
            $region622: #{tpu_custom_call.1} parent=619 // loop_header
              %s1449 = sphi 0, %s1453
              %p1450 = scmp.ge.s32.totalorder %s1449, 1
              %s1454 = sphi %s1437, %s1437
              %s1455 = sphi %s1438, %s1438
            $region623: #{tpu_custom_call.1} parent=619 // loop_header_branch
              %1452 = sbr.rel (%p1450) target = $region627
            $region624: #{tpu_custom_call.1} parent=619 // loop_body
              %v1456 = vld [vmem:[%s1454] sm:%s1447]
              %1457 = vst [vmem:[%s1455] sm:%s1447] %v1456
            $region625: #{tpu_custom_call.1} parent=619 // loop_footer
              %s1453 = sadd.s32 1, %s1449
            $region626: #{tpu_custom_call.1} parent=619 // loop_footer_branch
              %1448 = sbr.rel target = $region622
            $region627: #{tpu_custom_call.1} parent=619 // loop_exit
              _
          $region620: #{tpu_custom_call.1} parent=355 // pred_fallthru
            _
          // Predicated region
          $region639: #{tpu_custom_call.1} parent=355 // pred_check
            _
          $region640: #{tpu_custom_call.1} parent=355 // pred_check_branch
            %1481 = sbr.rel (0) target = $region642
          $region641: #{tpu_custom_call.1} parent=355 // pred_region
            %1482 = vsyncadd %s870, 16
          $region642: #{tpu_custom_call.1} parent=355 // pred_fallthru
            _
          %s1483 = sld [smem:[#allocation10 + %s1419]]
          %s1484 = smul.addr %s1483, 16
          %s1485 = scalar_lea.hbm %s4, %s1484
          %s1486 = scalar_lea.vmem [#allocation4], %s1423
          // Predicated region
          $region643: #{tpu_custom_call.1} parent=355 // pred_check
            _
          $region644: #{tpu_custom_call.1} parent=355 // pred_check_branch
            %1488 = sbr.rel target = $region646
          $region645: #{tpu_custom_call.1} parent=355 // pred_region
            %1489 = sst [smem:[#allocation18]] [#allocation120]
            %1490 = sst [smem:[#allocation19]] [#allocation119]
          $region646: #{tpu_custom_call.1} parent=355 // pred_fallthru
            _
          %1492 = shalt.err (0)
          %s1494 = sshll.u32 %s1486, 4
          %s1495 = int_to_ptr.vmem [resolvable:$true] %s1494
          %1497 = dma.hbm_to_vmem [thread:$0]  %s1485, 16, %s1495, %s920
          %s1498 = sld [smem:[#allocation11 + %s1419]]
          %s1499 = smul.addr %s1498, 16
          %s1500 = scalar_lea.hbm %s4, %s1499
          %s1501 = scalar_lea.vmem [#allocation5], %s1423
          // Predicated region
          $region647: #{tpu_custom_call.1} parent=355 // pred_check
            _
          $region648: #{tpu_custom_call.1} parent=355 // pred_check_branch
            %1503 = sbr.rel target = $region650
          $region649: #{tpu_custom_call.1} parent=355 // pred_region
            %1504 = sst [smem:[#allocation18]] [#allocation122]
            %1505 = sst [smem:[#allocation19]] [#allocation121]
          $region650: #{tpu_custom_call.1} parent=355 // pred_fallthru
            _
          %1507 = shalt.err (0)
          %s1509 = sshll.u32 %s1501, 4
          %s1510 = int_to_ptr.vmem [resolvable:$true] %s1509
          %1512 = dma.hbm_to_vmem [thread:$0]  %s1500, 16, %s1510, %s937
          %s1513 = sadd.s32 %s848, 7
          %s1514 = sld [smem:[#allocation8 + %s1513]]
          %s1515 = smul.addr %s1514, 16
          %s1516 = scalar_lea.hbm %s4, %s1515
          %s1517 = sadd.s32 7, %s852
          %s1518 = scalar_lea.vmem [#allocation2], %s1517
          // Predicated region
          $region651: #{tpu_custom_call.1} parent=355 // pred_check
            _
          $region652: #{tpu_custom_call.1} parent=355 // pred_check_branch
            %1520 = sbr.rel target = $region654
          $region653: #{tpu_custom_call.1} parent=355 // pred_region
            %1521 = sst [smem:[#allocation18]] [#allocation124]
            %1522 = sst [smem:[#allocation19]] [#allocation123]
          $region654: #{tpu_custom_call.1} parent=355 // pred_fallthru
            _
          %1524 = shalt.err (0)
          %s1526 = sshll.u32 %s1518, 4
          %s1527 = int_to_ptr.vmem [resolvable:$true] %s1526
          %1529 = dma.hbm_to_vmem [thread:$0]  %s1516, 16, %s1527, %s854
          %s1530 = sld [smem:[#allocation9 + %s1513]]
          %s1531 = scalar_lea.vmem %s5, %s1530
          %s1532 = scalar_lea.vmem [#allocation3], %s1517
          %p1534 = scmp.lt.u32.totalorder 1, 8
          %p1535 = pneg %p1534
          // Predicated region
          $region655: #{tpu_custom_call.1} parent=355 // pred_check
            _
          $region656: #{tpu_custom_call.1} parent=355 // pred_check_branch
            %1537 = sbr.rel (%p1534) target = $region658
          $region657: #{tpu_custom_call.1} parent=355 // pred_region
            %s1552 = sand.u32 1, 7
            %p1553 = scmp.eq.s32.totalorder %s1552, 0
            %p1554 = pneg %p1553
            // Predicated region
            $region670: #{tpu_custom_call.1} parent=657 // pred_check
              _
            $region671: #{tpu_custom_call.1} parent=657 // pred_check_branch
              %1556 = sbr.rel (%p1553) target = $region673
            $region672: #{tpu_custom_call.1} parent=657 // pred_region
              %s1557 = sand.u32 1, 7
              %s1558 = ssub.s32 1, %s1557
              %s1559 = scalar_lea.vmem %s1531, %s1558
              %s1560 = ssub.s32 1, %s1557
              %s1561 = scalar_lea.vmem %s1532, %s1560 [#allocation3]
              %s1562 = sshllo.u32 0, %s1557
              loop: start=0, step=1, limit=1
              $region674: #{tpu_custom_call.1} parent=672 // loop_pre_header
                _
              $region675: #{tpu_custom_call.1} parent=672 // loop_header
                %s1564 = sphi 0, %s1568
                %p1565 = scmp.ge.s32.totalorder %s1564, 1
                %s1569 = sphi %s1559, %s1559
                %s1570 = sphi %s1561, %s1561
              $region676: #{tpu_custom_call.1} parent=672 // loop_header_branch
                %1567 = sbr.rel (%p1565) target = $region680
              $region677: #{tpu_custom_call.1} parent=672 // loop_body
                %v1571 = vld [vmem:[%s1569] sm:%s1562]
                %1572 = vst [vmem:[%s1570] sm:%s1562] %v1571
              $region678: #{tpu_custom_call.1} parent=672 // loop_footer
                %s1568 = sadd.s32 1, %s1564
              $region679: #{tpu_custom_call.1} parent=672 // loop_footer_branch
                %1563 = sbr.rel target = $region675
              $region680: #{tpu_custom_call.1} parent=672 // loop_exit
                _
            $region673: #{tpu_custom_call.1} parent=657 // pred_fallthru
              _
          $region658: #{tpu_custom_call.1} parent=355 // pred_fallthru
            _
          // Predicated region
          $region659: #{tpu_custom_call.1} parent=355 // pred_check
            %p1538 = pneg %p1534
          $region660: #{tpu_custom_call.1} parent=355 // pred_check_branch
            %1540 = sbr.rel (%p1538) target = $region662
          $region661: #{tpu_custom_call.1} parent=355 // pred_region
            %s1541 = sshllo.u32 0, 1
            loop: start=0, step=1, limit=1
            $region663: #{tpu_custom_call.1} parent=661 // loop_pre_header
              _
            $region664: #{tpu_custom_call.1} parent=661 // loop_header
              %s1543 = sphi 0, %s1547
              %p1544 = scmp.ge.s32.totalorder %s1543, 1
              %s1548 = sphi %s1531, %s1531
              %s1549 = sphi %s1532, %s1532
            $region665: #{tpu_custom_call.1} parent=661 // loop_header_branch
              %1546 = sbr.rel (%p1544) target = $region669
            $region666: #{tpu_custom_call.1} parent=661 // loop_body
              %v1550 = vld [vmem:[%s1548] sm:%s1541]
              %1551 = vst [vmem:[%s1549] sm:%s1541] %v1550
            $region667: #{tpu_custom_call.1} parent=661 // loop_footer
              %s1547 = sadd.s32 1, %s1543
            $region668: #{tpu_custom_call.1} parent=661 // loop_footer_branch
              %1542 = sbr.rel target = $region664
            $region669: #{tpu_custom_call.1} parent=661 // loop_exit
              _
          $region662: #{tpu_custom_call.1} parent=355 // pred_fallthru
            _
          // Predicated region
          $region681: #{tpu_custom_call.1} parent=355 // pred_check
            _
          $region682: #{tpu_custom_call.1} parent=355 // pred_check_branch
            %1575 = sbr.rel (0) target = $region684
          $region683: #{tpu_custom_call.1} parent=355 // pred_region
            %1576 = vsyncadd %s870, 16
          $region684: #{tpu_custom_call.1} parent=355 // pred_fallthru
            _
          %s1577 = sld [smem:[#allocation10 + %s1513]]
          %s1578 = smul.addr %s1577, 16
          %s1579 = scalar_lea.hbm %s4, %s1578
          %s1580 = scalar_lea.vmem [#allocation4], %s1517
          // Predicated region
          $region685: #{tpu_custom_call.1} parent=355 // pred_check
            _
          $region686: #{tpu_custom_call.1} parent=355 // pred_check_branch
            %1582 = sbr.rel target = $region688
          $region687: #{tpu_custom_call.1} parent=355 // pred_region
            %1583 = sst [smem:[#allocation18]] [#allocation127]
            %1584 = sst [smem:[#allocation19]] [#allocation126]
          $region688: #{tpu_custom_call.1} parent=355 // pred_fallthru
            _
          %1586 = shalt.err (0)
          %s1588 = sshll.u32 %s1580, 4
          %s1589 = int_to_ptr.vmem [resolvable:$true] %s1588
          %1591 = dma.hbm_to_vmem [thread:$0]  %s1579, 16, %s1589, %s920
          %s1592 = sld [smem:[#allocation11 + %s1513]]
          %s1593 = smul.addr %s1592, 16
          %s1594 = scalar_lea.hbm %s4, %s1593
          %s1595 = scalar_lea.vmem [#allocation5], %s1517
          // Predicated region
          $region689: #{tpu_custom_call.1} parent=355 // pred_check
            _
          $region690: #{tpu_custom_call.1} parent=355 // pred_check_branch
            %1597 = sbr.rel target = $region692
          $region691: #{tpu_custom_call.1} parent=355 // pred_region
            %1598 = sst [smem:[#allocation18]] [#allocation129]
            %1599 = sst [smem:[#allocation19]] [#allocation128]
          $region692: #{tpu_custom_call.1} parent=355 // pred_fallthru
            _
          %1601 = shalt.err (0)
          %s1603 = sshll.u32 %s1595, 4
          %s1604 = int_to_ptr.vmem [resolvable:$true] %s1603
          %1606 = dma.hbm_to_vmem [thread:$0]  %s1594, 16, %s1604, %s937
        $region356: #{tpu_custom_call.1} parent=11 // pred_fallthru
          _
        %s1607 = scalar_lea.sflag [#allocation6], %s102
        %s1608 = smul.u32 1, 1
        %s1609 = sshll.u32 %s1608, 4
        %1610 = dma.done %s1607, %s1609
        %s1611 = sadd.s32 %s102, 2
        %s1612 = scalar_lea.sflag [#allocation6], %s1611
        %s1613 = sshll.u32 %s1608, 4
        %1614 = dma.done %s1612, %s1613
        %s1615 = sadd.s32 %s102, 4
        %s1616 = scalar_lea.sflag [#allocation6], %s1615
        %s1617 = sshll.u32 %s1608, 4
        %1618 = dma.done %s1616, %s1617
        %s1619 = sadd.s32 %s102, 6
        %s1620 = scalar_lea.sflag [#allocation6], %s1619
        %s1621 = sshll.u32 %s1608, 4
        %1622 = dma.done %s1620, %s1621
        %s1623 = sshll.u32 %s1608, 4
        %1624 = dma.done %s1607, %s1623
        %s1625 = sshll.u32 %s1608, 4
        %1626 = dma.done %s1612, %s1625
        %s1627 = sshll.u32 %s1608, 4
        %1628 = dma.done %s1616, %s1627
        %s1629 = sshll.u32 %s1608, 4
        %1630 = dma.done %s1620, %s1629
        %s1631 = sshll.u32 %s1608, 4
        %1632 = dma.done %s1607, %s1631
        %s1633 = sshll.u32 %s1608, 4
        %1634 = dma.done %s1612, %s1633
        %s1635 = sshll.u32 %s1608, 4
        %1636 = dma.done %s1616, %s1635
        %s1637 = sshll.u32 %s1608, 4
        %1638 = dma.done %s1620, %s1637
        %s1639 = sshll.u32 %s1608, 4
        %1640 = dma.done %s1607, %s1639
        %s1641 = sshll.u32 %s1608, 4
        %1642 = dma.done %s1612, %s1641
        %s1643 = sshll.u32 %s1608, 4
        %1644 = dma.done %s1616, %s1643
        %s1645 = sshll.u32 %s1608, 4
        %1646 = dma.done %s1620, %s1645
        %s1647 = sshll.u32 %s1608, 4
        %1648 = dma.done %s1607, %s1647
        %s1649 = sshll.u32 %s1608, 4
        %1650 = dma.done %s1612, %s1649
        %s1651 = sshll.u32 %s1608, 4
        %1652 = dma.done %s1616, %s1651
        %s1653 = sshll.u32 %s1608, 4
        %1654 = dma.done %s1620, %s1653
        %s1655 = sshll.u32 %s1608, 4
        %1656 = dma.done %s1607, %s1655
        %s1657 = sshll.u32 %s1608, 4
        %1658 = dma.done %s1612, %s1657
        %s1659 = sshll.u32 %s1608, 4
        %1660 = dma.done %s1616, %s1659
        %s1661 = sshll.u32 %s1608, 4
        %1662 = dma.done %s1620, %s1661
        %s1663 = sshll.u32 %s1608, 4
        %1664 = dma.done %s1607, %s1663
        %s1665 = sshll.u32 %s1608, 4
        %1666 = dma.done %s1612, %s1665
        %s1667 = sshll.u32 %s1608, 4
        %1668 = dma.done %s1616, %s1667
        %s1669 = sshll.u32 %s1608, 4
        %1670 = dma.done %s1620, %s1669
        %s1671 = sshll.u32 %s1608, 4
        %1672 = dma.done %s1607, %s1671
        %s1673 = sshll.u32 %s1608, 4
        %1674 = dma.done %s1612, %s1673
        %s1675 = sshll.u32 %s1608, 4
        %1676 = dma.done %s1616, %s1675
        %s1677 = sshll.u32 %s1608, 4
        %1678 = dma.done %s1620, %s1677
        %s1679 = smul.u32 %s102, 8
        %s1680 = scalar_lea.vmem [#allocation2], %s1679
        %v1681 = vld [vmem:[%s1680] sm:$0xff]
        %s1682 = scalar_lea.vmem [#allocation3], %s1679
        %v1683 = vld [vmem:[%s1682] sm:$0xff]
        %v1684 = vadd.f32 %v1681, %v1683
        %s1685 = scalar_lea.vmem [#allocation4], %s1679
        %v1686 = vld [vmem:[%s1685] sm:$0xff]
        %v1687 = vsub.f32 %v1684, %v1686
        %1688 = vst [vmem:[%s89] sm:$0xff] %v1687
        %s1689 = scalar_lea.vmem [#allocation5], %s1679
        %v1690 = vld [vmem:[%s1689] sm:$0xff]
        %v1691 = vsub.f32 %v1684, %v1690
        %1692 = vst [vmem:[%s96] sm:$0xff] %v1691
        %s1693 = sand.u32 %s43, 1
        %s1694 = scalar_lea.sflag [#allocation13], %s1693
        %s1695 = sand.u32 %s43, 1
        %s1696 = smul.addr %s1695, 8
        %s1697 = scalar_lea.vmem [#allocation12], %s1696
        %s1698 = sand.u32 %s62, 1
        %s1699 = scalar_lea.sflag [#allocation15], %s1698
        %s1700 = sand.u32 %s62, 1
        %s1701 = smul.addr %s1700, 8
        %s1702 = scalar_lea.vmem [#allocation14], %s1701
        // Predicated region
        $region693: #{tpu_custom_call.1} parent=11 // pred_check
          %p1703 = pneg %p49
        $region694: #{tpu_custom_call.1} parent=11 // pred_check_branch
          %1705 = sbr.rel (%p1703) target = $region696
        $region695: #{tpu_custom_call.1} parent=11 // pred_region
          %s1707 = ssub.s32 128, 128
          %1708 = vsyncadd %s1694, %s1707
          %s1709 = smul.addr %s34, 128
          %s1710 = scalar_lea.hbm %s6, %s1709
          %s1712 = sshll.u32 %s1697, 4
          %s1713 = int_to_ptr.vmem [resolvable:$true] %s1712
          %1715 = dma.vmem_to_hbm [thread:$0]  %s1713, 128, %s1710, %s1694
        $region696: #{tpu_custom_call.1} parent=11 // pred_fallthru
          _
        // Predicated region
        $region697: #{tpu_custom_call.1} parent=11 // pred_check
          %p1716 = pneg %p68
        $region698: #{tpu_custom_call.1} parent=11 // pred_check_branch
          %1718 = sbr.rel (%p1716) target = $region700
        $region699: #{tpu_custom_call.1} parent=11 // pred_region
          %s1720 = ssub.s32 128, 128
          %1721 = vsyncadd %s1699, %s1720
          %s1722 = smul.addr %s34, 128
          %s1723 = scalar_lea.hbm %s7, %s1722
          %s1725 = sshll.u32 %s1702, 4
          %s1726 = int_to_ptr.vmem [resolvable:$true] %s1725
          %1728 = dma.vmem_to_hbm [thread:$0]  %s1726, 128, %s1723, %s1699
        $region700: #{tpu_custom_call.1} parent=11 // pred_fallthru
          _
      $region12: #{tpu_custom_call.1} parent=5 // pred_fallthru
        _
      %p1729 = scmp.le.s32.totalorder 1, %s34
      // Predicated region
      $region701: #{tpu_custom_call.1} parent=5 // pred_check
        %p1730 = pneg %p1729
      $region702: #{tpu_custom_call.1} parent=5 // pred_check_branch
        %1732 = sbr.rel (%p1730) target = $region704
      $region703: #{tpu_custom_call.1} parent=5 // pred_region
        %s1733 = ssub.s32 %s34, 1
        // Predicated region
        $region705: #{tpu_custom_call.1} parent=703 // pred_check
          %p1734 = pneg %p55
        $region706: #{tpu_custom_call.1} parent=703 // pred_check_branch
          %1736 = sbr.rel (%p1734) target = $region708
        $region707: #{tpu_custom_call.1} parent=703 // pred_region
          %s1737 = sand.u32 %s46, 1
          %s1738 = scalar_lea.sflag [#allocation13], %s1737
          %s1739 = sand.u32 %s46, 1
          %s1740 = smul.addr %s1739, 8
          %s1741 = scalar_lea.vmem [#allocation12], %s1740
          %1742 = dma.done %s1738, 128
        $region708: #{tpu_custom_call.1} parent=703 // pred_fallthru
          _
        // Predicated region
        $region709: #{tpu_custom_call.1} parent=703 // pred_check
          %p1743 = pneg %p74
        $region710: #{tpu_custom_call.1} parent=703 // pred_check_branch
          %1745 = sbr.rel (%p1743) target = $region712
        $region711: #{tpu_custom_call.1} parent=703 // pred_region
          %s1746 = sand.u32 %s65, 1
          %s1747 = scalar_lea.sflag [#allocation15], %s1746
          %s1748 = sand.u32 %s65, 1
          %s1749 = smul.addr %s1748, 8
          %s1750 = scalar_lea.vmem [#allocation14], %s1749
          %1751 = dma.done %s1747, 128
        $region712: #{tpu_custom_call.1} parent=703 // pred_fallthru
          _
      $region704: #{tpu_custom_call.1} parent=5 // pred_fallthru
        _
    $region6: #{tpu_custom_call.1} parent=1 // loop_footer
      %s38 = sadd.s32 1, %s34
    $region7: #{tpu_custom_call.1} parent=1 // loop_footer_branch
      %33 = sbr.rel target = $region3
    $region8: #{tpu_custom_call.1} parent=1 // loop_exit
      _
    %1752 = vsyncpa [#allocation13], 1
    %s1753 = scalar_lea.sflag [#allocation13], 1
    %1754 = vsyncpa %s1753, 1
    %1755 = vsyncpa [#allocation15], 1
    %s1756 = scalar_lea.sflag [#allocation15], 1
    %1757 = vsyncpa %s1756, 1
  %1758 = vsyncmov [#allocation6]
  %s1759 = vpop.sfrf %1758
  %p1760 = scmp.eq.s32.totalorder %s1759, 0
  %p1761 = pneg %p1760
  %1763 = shalt.err (%p1761)
  %s1764 = scalar_lea.sflag [#allocation6], 1
  %1765 = vsyncmov %s1764
  %s1766 = vpop.sfrf %1765
  %p1767 = scmp.eq.s32.totalorder %s1766, 0
  %p1768 = pneg %p1767
  %1770 = shalt.err (%p1768)
  %s1771 = scalar_lea.sflag [#allocation6], 2
  %1772 = vsyncmov %s1771
  %s1773 = vpop.sfrf %1772
  %p1774 = scmp.eq.s32.totalorder %s1773, 0
  %p1775 = pneg %p1774
  %1777 = shalt.err (%p1775)
  %s1778 = scalar_lea.sflag [#allocation6], 3
  %1779 = vsyncmov %s1778
  %s1780 = vpop.sfrf %1779
  %p1781 = scmp.eq.s32.totalorder %s1780, 0
  %p1782 = pneg %p1781
  %1784 = shalt.err (%p1782)
  %s1785 = scalar_lea.sflag [#allocation6], 4
  %1786 = vsyncmov %s1785
  %s1787 = vpop.sfrf %1786
  %p1788 = scmp.eq.s32.totalorder %s1787, 0
  %p1789 = pneg %p1788
  %1791 = shalt.err (%p1789)
  %s1792 = scalar_lea.sflag [#allocation6], 5
  %1793 = vsyncmov %s1792
  %s1794 = vpop.sfrf %1793
  %p1795 = scmp.eq.s32.totalorder %s1794, 0
  %p1796 = pneg %p1795
  %1798 = shalt.err (%p1796)
  %s1799 = scalar_lea.sflag [#allocation6], 6
  %1800 = vsyncmov %s1799
  %s1801 = vpop.sfrf %1800
  %p1802 = scmp.eq.s32.totalorder %s1801, 0
  %p1803 = pneg %p1802
  %1805 = shalt.err (%p1803)
  %s1806 = scalar_lea.sflag [#allocation6], 7
  %1807 = vsyncmov %s1806
  %s1808 = vpop.sfrf %1807
  %p1809 = scmp.eq.s32.totalorder %s1808, 0
  %p1810 = pneg %p1809
  %1812 = shalt.err (%p1810)

</llo_original>
